<compile_context>
chip_gen: v6e
topology: v6e:2x2x1
jax: 0.10.0
libtpu: 0.0.40
codegen_flags: <defaults>
</compile_context>

<pallas_src>
import functools

import jax
import jax.numpy as jnp
from jax import lax
from jax.experimental import pallas as pl
from jax.experimental.pallas import tpu as pltpu


# ----------------------------------------------------------------------------
# Shared bidirectional-LSTM recurrence (time-major, fused f/b recurrent matmul)
# ----------------------------------------------------------------------------
def _bilstm_recurrence(x_f_ref, x_b_ref, wih_f_ref, wih_b_ref, b_f_ref,
                       b_b_ref, whh_ref, xg_ref, store_fwd, store_bwd):
    """One bidirectional LSTM layer.

    x_f_ref : (S, B, D) time-major input; x_b_ref is the same, time-reversed.
    whh_ref : (2H, 8H) block-diagonal recurrent weight.  The fused gate axis is
              gate-major / direction-minor: [i_f,i_b, f_f,f_b, g_f,g_b, o_f,o_b]
              so the cell's elementwise math runs on contiguous 2H lane slices
              against the packed state [c_f | c_b] / [h_f | h_b].
    xg_ref  : (S, B, 8H) scratch holding the hoisted input projection.
    store_fwd(t, h_f) / store_bwd(t, h_b): per-step hidden-state sinks.
    """
    S, Bb, D = x_f_ref.shape
    H = whh_ref.shape[0] // 2
    G = 4 * H

    # Hoisted input projection for all timesteps of BOTH directions, with the
    # (b_ih + b_hh) biases folded in once.  x_b_ref is already time-reversed,
    # so row t of proj_b is the backward-direction input for loop step t.
    proj_f = (jnp.dot(x_f_ref[...].reshape(S * Bb, D), wih_f_ref[...],
                      preferred_element_type=jnp.float32)
              + b_f_ref[...]).reshape(S, Bb, G)
    proj_b = (jnp.dot(x_b_ref[...].reshape(S * Bb, D), wih_b_ref[...],
                      preferred_element_type=jnp.float32)
              + b_b_ref[...]).reshape(S, Bb, G)

    # One-time interleave of the per-gate H blocks into the fused
    # gate-major/direction-minor layout matching whh_ref's columns.
    for g in range(4):
        xg_ref[:, :, (2 * g) * H:(2 * g + 1) * H] = proj_f[:, :, g * H:(g + 1) * H]
        xg_ref[:, :, (2 * g + 1) * H:(2 * g + 2) * H] = proj_b[:, :, g * H:(g + 1) * H]

    whh = whh_ref[...]                           # hoisted out of the loop

    def step(t, carry):
        h_cat, c_cat = carry                     # (B, 2H) = [fwd | bwd]
        rt = S - 1 - t
        # Single fused recurrent matmul for both directions per step.
        gall = xg_ref[t] + jnp.dot(h_cat, whh,
                                   preferred_element_type=jnp.float32)
        i_c = jax.nn.sigmoid(gall[:, 0:2 * H])
        f_c = jax.nn.sigmoid(gall[:, 2 * H:4 * H])
        g_c = jnp.tanh(gall[:, 4 * H:6 * H])
        o_c = jax.nn.sigmoid(gall[:, 6 * H:8 * H])
        c_cat = f_c * c_cat + i_c * g_c
        h_cat = o_c * jnp.tanh(c_cat)
        store_fwd(t, h_cat[:, 0:H])              # forward hidden of time t
        store_bwd(rt, h_cat[:, H:2 * H])         # backward hidden of time rt
        return h_cat, c_cat

    z = jnp.zeros((Bb, 2 * H), jnp.float32)
    lax.fori_loop(0, S, step, (z, z), unroll=True)   # S is small: fully unroll


# ----------------------------------------------------------------------------
# Standalone BiLSTM layer kernel (only used when n_layers > 1).
# ----------------------------------------------------------------------------
def _bilstm_layer_kernel(x_f_ref, x_b_ref, wih_f_ref, wih_b_ref, b_f_ref,
                         b_b_ref, whh_ref, out_ref, xg_ref):
    H = whh_ref.shape[0] // 2

    def store_fwd(t, v):
        out_ref[t, :, 0:H] = v

    def store_bwd(t, v):
        out_ref[t, :, H:2 * H] = v

    _bilstm_recurrence(x_f_ref, x_b_ref, wih_f_ref, wih_b_ref, b_f_ref,
                       b_b_ref, whh_ref, xg_ref, store_fwd, store_bwd)


def bilstm_layer(x_tm, layer, batch_block=None):
    S, B, D = x_tm.shape
    H = layer["whh_blk"].shape[0] // 2
    bb = B if batch_block is None else batch_block    # v7x: pass B // 2
    x_rev = jnp.flip(x_tm, axis=0)
    return pl.pallas_call(
        _bilstm_layer_kernel,
        out_shape=jax.ShapeDtypeStruct((S, B, 2 * H), jnp.float32),
        grid=(pl.cdiv(B, bb),),
        in_specs=[pl.BlockSpec((S, bb, D), lambda i: (0, i, 0)),
                  pl.BlockSpec((S, bb, D), lambda i: (0, i, 0)),
                  pl.BlockSpec((D, 4 * H), lambda i: (0, 0)),
                  pl.BlockSpec((D, 4 * H), lambda i: (0, 0)),
                  pl.BlockSpec((1, 4 * H), lambda i: (0, 0)),
                  pl.BlockSpec((1, 4 * H), lambda i: (0, 0)),
                  pl.BlockSpec((2 * H, 8 * H), lambda i: (0, 0))],
        out_specs=pl.BlockSpec((S, bb, 2 * H), lambda i: (0, i, 0)),
        scratch_shapes=[pltpu.VMEM((S, bb, 8 * H), jnp.float32)],
        compiler_params=pltpu.CompilerParams(
            dimension_semantics=("parallel",)),
    )(x_tm, x_rev, layer["wih_f_t"], layer["wih_b_t"],
      layer["b_f"], layer["b_b"], layer["whh_blk"])


# ----------------------------------------------------------------------------
# Fused kernel: (last) BiLSTM layer + Linear(2H -> tags) + batched Viterbi.
# ----------------------------------------------------------------------------
def _bilstm_fc_viterbi_kernel(x_f_ref, x_b_ref, wih_f_ref, wih_b_ref, b_f_ref,
                              b_b_ref, whh_ref, wfct_ref, wfcb_ref, bfc_ref,
                              trans_ref, path_ref,
                              xg_ref, hf_ref, hb_ref, feats_ref, bptr_ref,
                              *, start_tag, stop_tag):
    S, Bb, H = hf_ref.shape
    Ts, Tp = trans_ref.shape

    # --- BiLSTM: hidden states land in time-major VMEM scratch (no HBM trip,
    # no epilogue copy). -------------------------------------------------------
    def store_fwd(t, v):
        hf_ref[t] = v

    def store_bwd(t, v):
        hb_ref[t] = v

    _bilstm_recurrence(x_f_ref, x_b_ref, wih_f_ref, wih_b_ref, b_f_ref,
                       b_b_ref, whh_ref, xg_ref, store_fwd, store_bwd)

    # --- Fused FC: W_fc split into fwd/bwd row halves, so the two direction
    # buffers are never lane-concatenated. -------------------------------------
    feats_ref[...] = (
        jnp.dot(hf_ref[...].reshape(S * Bb, H), wfct_ref[...],
                preferred_element_type=jnp.float32)
        + jnp.dot(hb_ref[...].reshape(S * Bb, H), wfcb_ref[...],
                  preferred_element_type=jnp.float32)
        + bfc_ref[...]
    ).reshape(S, Bb, Ts)

    # --- Batched Viterbi.  next-tag axis: Ts (=8) sublanes; prev-tag axis:
    # Tp (=128) lanes -> per-step reduction is (B, Ts, Tp), not (B, Tp, Tp). ----
    trans = trans_ref[...]                                     # (Ts, Tp)
    prev2 = lax.broadcasted_iota(jnp.int32, (Bb, Tp), 1)
    prev3 = lax.broadcasted_iota(jnp.int32, (Bb, Ts, Tp), 2)
    lane = lax.broadcasted_iota(jnp.int32, (1, Tp), 1)
    neg = jnp.float32(-10000.0)
    # One-hot (Ts, Tp) placement matrix putting the Ts per-next-tag results
    # back into the 128-lane forward variable; padded lanes get the same -1e4
    # sentinel the reference uses.  Sentinels are re-derived each step (never
    # compound), so magnitudes stay ~1e4..3e4 -- safe in f32.
    expand = (lax.broadcasted_iota(jnp.int32, (Ts, Tp), 0)
              == lax.broadcasted_iota(jnp.int32, (Ts, Tp), 1)).astype(jnp.float32)
    pad_bias = jnp.where(lane < Ts, jnp.float32(0.0), neg)     # (1, Tp)
    fv0 = jnp.where(prev2 == start_tag, jnp.float32(0.0), neg)  # (B, Tp)

    def vstep(t, fv):
        feat_t = feats_ref[t]                                  # (B, Ts)
        # scores[b, next, prev] = fv[b, prev] + trans[next, prev]
        scores = fv[:, None, :] + trans[None, :, :]            # (B, Ts, Tp)
        best = jnp.max(scores, axis=-1)                        # (B, Ts)
        # First-occurrence argmax (sentinel-min form, guaranteed Mosaic
        # lowering; the tensor is already 16x smaller than the old Tp x Tp).
        bidx = jnp.min(jnp.where(scores == best[:, :, None], prev3, Tp),
                       axis=-1).astype(jnp.int32)              # (B, Ts)
        bptr_ref[t] = bidx
        return jnp.dot(best + feat_t, expand,
                       preferred_element_type=jnp.float32) + pad_bias

    fv = lax.fori_loop(0, S, vstep, fv0, unroll=True)

    terminal = fv + trans[stop_tag:stop_tag + 1, :]            # (B, Tp)
    t_best = jnp.max(terminal, axis=-1, keepdims=True)
    bt = jnp.min(jnp.where(terminal == t_best, prev2, Tp),
                 axis=-1, keepdims=True).astype(jnp.int32)     # (B, 1)
    path_ref[S - 1] = bt.astype(jnp.float32)

    # Backtrack: one backpointer lookup per step, written straight into the
    # time-major output column (no O(S^2) masked-select accumulation).
    # TODO(synk): the PyTorch host-side assert that the popped first
    # backpointer equals START_TAG is not reproduced inside the kernel.
    tag_lane = lax.broadcasted_iota(jnp.int32, (Bb, Ts), 1)

    def back(k, bt_c):
        t = S - 1 - k
        row = bptr_ref[t]                                      # (B, Ts)
        new_bt = jnp.sum(jnp.where(tag_lane == bt_c, row, 0),
                         axis=-1, keepdims=True).astype(jnp.int32)
        path_ref[t - 1] = new_bt.astype(jnp.float32)
        return new_bt

    lax.fori_loop(0, S - 1, back, bt, unroll=True)


def bilstm_fc_viterbi(x_tm, layer, w_fc_top, w_fc_bot, b_fc_p, trans_p,
                      start_tag, stop_tag, batch_block=None):
    S, B, D = x_tm.shape
    H = layer["whh_blk"].shape[0] // 2
    Ts, Tp = trans_p.shape
    bb = B if batch_block is None else batch_block    # v7x: pass B // 2
    x_rev = jnp.flip(x_tm, axis=0)
    kernel = functools.partial(_bilstm_fc_viterbi_kernel,
                               start_tag=start_tag, stop_tag=stop_tag)
    path_tm = pl.pallas_call(
        kernel,
        out_shape=jax.ShapeDtypeStruct((S, B, 1), jnp.float32),
        grid=(pl.cdiv(B, bb),),
        in_specs=[pl.BlockSpec((S, bb, D), lambda i: (0, i, 0)),
                  pl.BlockSpec((S, bb, D), lambda i: (0, i, 0)),
                  pl.BlockSpec((D, 4 * H), lambda i: (0, 0)),
                  pl.BlockSpec((D, 4 * H), lambda i: (0, 0)),
                  pl.BlockSpec((1, 4 * H), lambda i: (0, 0)),
                  pl.BlockSpec((1, 4 * H), lambda i: (0, 0)),
                  pl.BlockSpec((2 * H, 8 * H), lambda i: (0, 0)),
                  pl.BlockSpec((H, Ts), lambda i: (0, 0)),
                  pl.BlockSpec((H, Ts), lambda i: (0, 0)),
                  pl.BlockSpec((1, Ts), lambda i: (0, 0)),
                  pl.BlockSpec((Ts, Tp), lambda i: (0, 0))],
        out_specs=pl.BlockSpec((S, bb, 1), lambda i: (0, i, 0)),
        scratch_shapes=[pltpu.VMEM((S, bb, 8 * H), jnp.float32),  # xg proj
                        pltpu.VMEM((S, bb, H), jnp.float32),      # fwd hidden
                        pltpu.VMEM((S, bb, H), jnp.float32),      # bwd hidden
                        pltpu.VMEM((S, bb, Ts), jnp.float32),     # tag feats
                        pltpu.VMEM((S, bb, Ts), jnp.int32)],      # backptrs
        compiler_params=pltpu.CompilerParams(
            dimension_semantics=("parallel",)),
    )(x_tm, x_rev, layer["wih_f_t"], layer["wih_b_t"], layer["b_f"],
      layer["b_b"], layer["whh_blk"], w_fc_top, w_fc_bot, b_fc_p, trans_p)
    # (S, B, 1) time-major -> (B, S), matching torch.Tensor(tag_seq).
    return jnp.transpose(path_tm[:, :, 0], (1, 0))


# ----------------------------------------------------------------------------
# Parameter setup (deterministic, synthetic) and full forward pass.
# ----------------------------------------------------------------------------
def make_params(key, vocab, E, H, n_layers, T, Ts, Tp, pad_idx,
                start_tag, stop_tag):
    def nxt():
        nonlocal key
        key, sub = jax.random.split(key)
        return sub

    scale = 0.1
    emb = jax.random.normal(nxt(), (vocab, E), jnp.float32) * scale
    emb = emb.at[pad_idx].set(0.0)                       # padding_idx row

    layers = []
    d_in = E
    for _ in range(n_layers):
        wih_f = jax.random.normal(nxt(), (4 * H, d_in), jnp.float32) * scale
        whh_f = jax.random.normal(nxt(), (4 * H, H), jnp.float32) * scale
        b_f = (jax.random.normal(nxt(), (4 * H,), jnp.float32) * scale
               + jax.random.normal(nxt(), (4 * H,), jnp.float32) * scale)
        wih_b = jax.random.normal(nxt(), (4 * H, d_in), jnp.float32) * scale
        whh_b = jax.random.normal(nxt(), (4 * H, H), jnp.float32) * scale
        b_b = (jax.random.normal(nxt(), (4 * H,), jnp.float32) * scale
               + jax.random.normal(nxt(), (4 * H,), jnp.float32) * scale)

        # Block-diagonal recurrent weight, fused gate axis gate-major /
        # direction-minor: column block (2g) <- Whh_f gate g (rows 0:H),
        # column block (2g+1) <- Whh_b gate g (rows H:2H).
        whh_blk = jnp.zeros((2 * H, 8 * H), jnp.float32)
        for g in range(4):
            whh_blk = whh_blk.at[0:H, (2 * g) * H:(2 * g + 1) * H].set(
                whh_f[g * H:(g + 1) * H, :].T)
            whh_blk = whh_blk.at[H:2 * H, (2 * g + 1) * H:(2 * g + 2) * H].set(
                whh_b[g * H:(g + 1) * H, :].T)

        layers.append(dict(
            wih_f_t=wih_f.T,                     # (d_in, 4H), gates i,f,g,o
            wih_b_t=wih_b.T,
            b_f=b_f.reshape(1, 4 * H),           # b_ih + b_hh fused
            b_b=b_b.reshape(1, 4 * H),
            whh_blk=whh_blk))                    # (2H, 8H)
        d_in = 2 * H

    w_fc = jax.random.normal(nxt(), (T, 2 * H), jnp.float32) * scale
    b_fc = jax.random.normal(nxt(), (T,), jnp.float32) * scale
    trans = jax.random.normal(nxt(), (T, T), jnp.float32)
    trans = trans.at[start_tag, :].set(-10000.0)
    trans = trans.at[:, stop_tag].set(-10000.0)

    # Tag-axis padding: next-tags padded to Ts sublanes, prev-tags to Tp lanes;
    # padded entries carry the same -1e4 sentinel as the reference so they can
    # never win the decode.
    w_fc_top = jnp.zeros((H, Ts), jnp.float32).at[:, :T].set(w_fc[:, 0:H].T)
    w_fc_bot = jnp.zeros((H, Ts), jnp.float32).at[:, :T].set(w_fc[:, H:2 * H].T)
    b_fc_p = jnp.full((1, Ts), -10000.0, jnp.float32).at[0, :T].set(b_fc)
    trans_p = jnp.full((Ts, Tp), -10000.0, jnp.float32).at[:T, :T].set(trans)

    return dict(emb=emb, layers=layers, w_fc_top=w_fc_top, w_fc_bot=w_fc_bot,
                b_fc=b_fc_p, trans=trans_p)


def bilstm_crf_forward(sentence, params, start_tag, stop_tag,
                       batch_block=None):
    # Embedding lookup (gather) + eval-mode dropout (identity) = plain-JAX
    # glue, produced directly in time-major (S, B, E) layout.
    x_tm = params["emb"][sentence.T]                         # (S, B, E)
    layers = params["layers"]
    for layer in layers[:-1]:                                # n_layers > 1 only
        x_tm = bilstm_layer(x_tm, layer, batch_block)
    return bilstm_fc_viterbi(x_tm, layers[-1], params["w_fc_top"],
                             params["w_fc_bot"], params["b_fc"],
                             params["trans"], start_tag, stop_tag, batch_block)


if __name__ == "__main__":
    tag2idx = {"B": 0, "I": 1, "O": 2, "START_TAG": 3, "STOP_TAG": 4}
    vocab, emb_dim, hidden_dim, n_layers, pad_idx = 20, 32, 32, 1, 0
    B, S = 2, 8
    T = len(tag2idx)
    Ts = 8 * ((T + 7) // 8)            # next-tag axis, sublane-padded  -> 8
    Tp = 128 * ((T + 127) // 128)      # prev-tag axis, lane-padded     -> 128

    key = jax.random.PRNGKey(0)
    pkey, dkey = jax.random.split(key)
    params = make_params(pkey, vocab, emb_dim, hidden_dim, n_layers, T, Ts, Tp,
                         pad_idx, tag2idx["START_TAG"], tag2idx["STOP_TAG"])
    sentence = jax.random.randint(dkey, (B, S), 1, vocab, dtype=jnp.int32)

    forward = jax.jit(bilstm_crf_forward,
                      static_argnames=("start_tag", "stop_tag", "batch_block"))
    tag_seq = forward(sentence, params, start_tag=tag2idx["START_TAG"],
                      stop_tag=tag2idx["STOP_TAG"])
    tag_seq = jax.block_until_ready(tag_seq)

    assert tag_seq.shape == (B, S) and tag_seq.dtype == jnp.float32
    assert 0 <= int(jnp.min(tag_seq)) and int(jnp.max(tag_seq)) < T
    print("KERNEL_OK")
</pallas_src>

<mosaic_0001>
module attributes {stable_mosaic.version = 11 : i64} {
  func.func @_bilstm_fc_viterbi_kernel(%arg0: i32, %arg1: memref<8x2x32xf32, #tpu.memory_space<vmem>>, %arg2: memref<8x2x32xf32, #tpu.memory_space<vmem>>, %arg3: memref<32x128xf32, #tpu.memory_space<vmem>>, %arg4: memref<32x128xf32, #tpu.memory_space<vmem>>, %arg5: memref<1x128xf32, #tpu.memory_space<vmem>>, %arg6: memref<1x128xf32, #tpu.memory_space<vmem>>, %arg7: memref<64x256xf32, #tpu.memory_space<vmem>>, %arg8: memref<32x8xf32, #tpu.memory_space<vmem>>, %arg9: memref<32x8xf32, #tpu.memory_space<vmem>>, %arg10: memref<1x8xf32, #tpu.memory_space<vmem>>, %arg11: memref<8x128xf32, #tpu.memory_space<vmem>>, %arg12: memref<8x2x1xf32, #tpu.memory_space<vmem>>, %arg13: memref<8x2x256xf32, #tpu.memory_space<vmem>>, %arg14: memref<8x2x32xf32, #tpu.memory_space<vmem>>, %arg15: memref<8x2x32xf32, #tpu.memory_space<vmem>>, %arg16: memref<8x2x8xf32, #tpu.memory_space<vmem>>, %arg17: memref<8x2x8xi32, #tpu.memory_space<vmem>>) attributes {dimension_semantics = [#tpu.dimension_semantics<parallel>], iteration_bounds = array<i64: 1>, scalar_prefetch = 0 : i64, scratch_operands = 5 : i64, tpu.core_type = #tpu.core_type<tc>, window_params = [{transform_indices = @transform_0, window_bounds = array<i64: 8, 2, 32>}, {transform_indices = @transform_1, window_bounds = array<i64: 8, 2, 32>}, {pipeline_mode = #tpu.pipeline_mode<synchronous>, transform_indices = @transform_2, window_bounds = array<i64: 32, 128>}, {pipeline_mode = #tpu.pipeline_mode<synchronous>, transform_indices = @transform_3, window_bounds = array<i64: 32, 128>}, {pipeline_mode = #tpu.pipeline_mode<synchronous>, transform_indices = @transform_4, window_bounds = array<i64: 1, 128>}, {pipeline_mode = #tpu.pipeline_mode<synchronous>, transform_indices = @transform_5, window_bounds = array<i64: 1, 128>}, {pipeline_mode = #tpu.pipeline_mode<synchronous>, transform_indices = @transform_6, window_bounds = array<i64: 64, 256>}, {pipeline_mode = #tpu.pipeline_mode<synchronous>, transform_indices = @transform_7, window_bounds = array<i64: 32, 8>}, {pipeline_mode = #tpu.pipeline_mode<synchronous>, transform_indices = @transform_8, window_bounds = array<i64: 32, 8>}, {pipeline_mode = #tpu.pipeline_mode<synchronous>, transform_indices = @transform_9, window_bounds = array<i64: 1, 8>}, {pipeline_mode = #tpu.pipeline_mode<synchronous>, transform_indices = @transform_10, window_bounds = array<i64: 8, 128>}, {transform_indices = @transform_11, window_bounds = array<i64: 8, 2, 1>}]} {
    %c0 = arith.constant 0 : index
    %c0_0 = arith.constant 0 : index
    %c0_1 = arith.constant 0 : index
    %0 = vector.load %arg1[%c0, %c0_0, %c0_1] : memref<8x2x32xf32, #tpu.memory_space<vmem>>, vector<8x2x32xf32>
    %1 = vector.shape_cast %0 : vector<8x2x32xf32> to vector<16x32xf32>
    %c0_2 = arith.constant 0 : index
    %c0_3 = arith.constant 0 : index
    %2 = vector.load %arg3[%c0_2, %c0_3] : memref<32x128xf32, #tpu.memory_space<vmem>>, vector<32x128xf32>
    %cst = arith.constant dense<0.000000e+00> : vector<16x128xf32>
    %3 = tpu.matmul %1, %2, %cst {dimension_numbers = #tpu.dot_dimension_numbers<[1], [0], [0], [1], [0, 0, 1, 1], [], []>} : vector<16x32xf32>, vector<32x128xf32>, vector<16x128xf32> -> vector<16x128xf32>
    %c0_4 = arith.constant 0 : index
    %c0_5 = arith.constant 0 : index
    %4 = vector.load %arg5[%c0_4, %c0_5] : memref<1x128xf32, #tpu.memory_space<vmem>>, vector<1x128xf32>
    %5 = vector.broadcast %4 : vector<1x128xf32> to vector<16x128xf32>
    %6 = arith.addf %3, %5 : vector<16x128xf32>
    %7 = vector.shape_cast %6 : vector<16x128xf32> to vector<8x2x128xf32>
    %c0_6 = arith.constant 0 : index
    %c0_7 = arith.constant 0 : index
    %c0_8 = arith.constant 0 : index
    %8 = vector.load %arg2[%c0_6, %c0_7, %c0_8] : memref<8x2x32xf32, #tpu.memory_space<vmem>>, vector<8x2x32xf32>
    %9 = vector.shape_cast %8 : vector<8x2x32xf32> to vector<16x32xf32>
    %c0_9 = arith.constant 0 : index
    %c0_10 = arith.constant 0 : index
    %10 = vector.load %arg4[%c0_9, %c0_10] : memref<32x128xf32, #tpu.memory_space<vmem>>, vector<32x128xf32>
    %cst_11 = arith.constant dense<0.000000e+00> : vector<16x128xf32>
    %11 = tpu.matmul %9, %10, %cst_11 {dimension_numbers = #tpu.dot_dimension_numbers<[1], [0], [0], [1], [0, 0, 1, 1], [], []>} : vector<16x32xf32>, vector<32x128xf32>, vector<16x128xf32> -> vector<16x128xf32>
    %c0_12 = arith.constant 0 : index
    %c0_13 = arith.constant 0 : index
    %12 = vector.load %arg6[%c0_12, %c0_13] : memref<1x128xf32, #tpu.memory_space<vmem>>, vector<1x128xf32>
    %13 = vector.broadcast %12 : vector<1x128xf32> to vector<16x128xf32>
    %14 = arith.addf %11, %13 : vector<16x128xf32>
    %15 = vector.shape_cast %14 : vector<16x128xf32> to vector<8x2x128xf32>
    %16 = vector.extract_strided_slice %7 {offsets = [0, 0, 0], sizes = [8, 2, 32], strides = [1, 1, 1]} : vector<8x2x128xf32> to vector<8x2x32xf32>
    %c0_14 = arith.constant 0 : index
    %c0_15 = arith.constant 0 : index
    %c0_16 = arith.constant 0 : index
    %17 = vector.load %arg13[%c0_14, %c0_15, %c0_16] : memref<8x2x256xf32, #tpu.memory_space<vmem>>, vector<8x2x32xf32>
    tpu.vector_store %arg13[%c0_14, %c0_15, %c0_16], %16 {strides = array<i32>} : memref<8x2x256xf32, #tpu.memory_space<vmem>>, vector<8x2x32xf32>,
    %18 = vector.extract_strided_slice %15 {offsets = [0, 0, 0], sizes = [8, 2, 32], strides = [1, 1, 1]} : vector<8x2x128xf32> to vector<8x2x32xf32>
    %c0_17 = arith.constant 0 : index
    %c0_18 = arith.constant 0 : index
    %c32 = arith.constant 32 : index
    %19 = vector.load %arg13[%c0_17, %c0_18, %c32] : memref<8x2x256xf32, #tpu.memory_space<vmem>>, vector<8x2x32xf32>
    tpu.vector_store %arg13[%c0_17, %c0_18, %c32], %18 {strides = array<i32>} : memref<8x2x256xf32, #tpu.memory_space<vmem>>, vector<8x2x32xf32>,
    %20 = vector.extract_strided_slice %7 {offsets = [0, 0, 32], sizes = [8, 2, 32], strides = [1, 1, 1]} : vector<8x2x128xf32> to vector<8x2x32xf32>
    %c0_19 = arith.constant 0 : index
    %c0_20 = arith.constant 0 : index
    %c64 = arith.constant 64 : index
    %21 = vector.load %arg13[%c0_19, %c0_20, %c64] : memref<8x2x256xf32, #tpu.memory_space<vmem>>, vector<8x2x32xf32>
    tpu.vector_store %arg13[%c0_19, %c0_20, %c64], %20 {strides = array<i32>} : memref<8x2x256xf32, #tpu.memory_space<vmem>>, vector<8x2x32xf32>,
    %22 = vector.extract_strided_slice %15 {offsets = [0, 0, 32], sizes = [8, 2, 32], strides = [1, 1, 1]} : vector<8x2x128xf32> to vector<8x2x32xf32>
    %c0_21 = arith.constant 0 : index
    %c0_22 = arith.constant 0 : index
    %c96 = arith.constant 96 : index
    %23 = vector.load %arg13[%c0_21, %c0_22, %c96] : memref<8x2x256xf32, #tpu.memory_space<vmem>>, vector<8x2x32xf32>
    tpu.vector_store %arg13[%c0_21, %c0_22, %c96], %22 {strides = array<i32>} : memref<8x2x256xf32, #tpu.memory_space<vmem>>, vector<8x2x32xf32>,
    %24 = vector.extract_strided_slice %7 {offsets = [0, 0, 64], sizes = [8, 2, 32], strides = [1, 1, 1]} : vector<8x2x128xf32> to vector<8x2x32xf32>
    %c0_23 = arith.constant 0 : index
    %c0_24 = arith.constant 0 : index
    %c128 = arith.constant 128 : index
    %25 = vector.load %arg13[%c0_23, %c0_24, %c128] : memref<8x2x256xf32, #tpu.memory_space<vmem>>, vector<8x2x32xf32>
    tpu.vector_store %arg13[%c0_23, %c0_24, %c128], %24 {strides = array<i32>} : memref<8x2x256xf32, #tpu.memory_space<vmem>>, vector<8x2x32xf32>,
    %26 = vector.extract_strided_slice %15 {offsets = [0, 0, 64], sizes = [8, 2, 32], strides = [1, 1, 1]} : vector<8x2x128xf32> to vector<8x2x32xf32>
    %c0_25 = arith.constant 0 : index
    %c0_26 = arith.constant 0 : index
    %c160 = arith.constant 160 : index
    %27 = vector.load %arg13[%c0_25, %c0_26, %c160] : memref<8x2x256xf32, #tpu.memory_space<vmem>>, vector<8x2x32xf32>
    tpu.vector_store %arg13[%c0_25, %c0_26, %c160], %26 {strides = array<i32>} : memref<8x2x256xf32, #tpu.memory_space<vmem>>, vector<8x2x32xf32>,
    %28 = vector.extract_strided_slice %7 {offsets = [0, 0, 96], sizes = [8, 2, 32], strides = [1, 1, 1]} : vector<8x2x128xf32> to vector<8x2x32xf32>
    %c0_27 = arith.constant 0 : index
    %c0_28 = arith.constant 0 : index
    %c192 = arith.constant 192 : index
    %29 = vector.load %arg13[%c0_27, %c0_28, %c192] : memref<8x2x256xf32, #tpu.memory_space<vmem>>, vector<8x2x32xf32>
    tpu.vector_store %arg13[%c0_27, %c0_28, %c192], %28 {strides = array<i32>} : memref<8x2x256xf32, #tpu.memory_space<vmem>>, vector<8x2x32xf32>,
    %30 = vector.extract_strided_slice %15 {offsets = [0, 0, 96], sizes = [8, 2, 32], strides = [1, 1, 1]} : vector<8x2x128xf32> to vector<8x2x32xf32>
    %c0_29 = arith.constant 0 : index
    %c0_30 = arith.constant 0 : index
    %c224 = arith.constant 224 : index
    %31 = vector.load %arg13[%c0_29, %c0_30, %c224] : memref<8x2x256xf32, #tpu.memory_space<vmem>>, vector<8x2x32xf32>
    tpu.vector_store %arg13[%c0_29, %c0_30, %c224], %30 {strides = array<i32>} : memref<8x2x256xf32, #tpu.memory_space<vmem>>, vector<8x2x32xf32>,
    %c0_31 = arith.constant 0 : index
    %c0_32 = arith.constant 0 : index
    %32 = vector.load %arg7[%c0_31, %c0_32] : memref<64x256xf32, #tpu.memory_space<vmem>>, vector<64x256xf32>
    %cst_33 = arith.constant 0.000000e+00 : f32
    %33 = vector.broadcast %cst_33 : f32 to vector<2x64xf32>
    %c0_i32 = arith.constant 0 : i32
    %c7_i32 = arith.constant 7 : i32
    %34 = arith.subi %c7_i32, %c0_i32 : i32
    %35 = arith.index_cast %c0_i32 : i32 to index
    %c0_34 = arith.constant 0 : index
    %c0_35 = arith.constant 0 : index
    %36 = vector.load %arg13[%35, %c0_34, %c0_35] : memref<8x2x256xf32, #tpu.memory_space<vmem>>, vector<1x2x256xf32>
    %37 = vector.shape_cast %36 : vector<1x2x256xf32> to vector<2x256xf32>
    %cst_36 = arith.constant dense<0.000000e+00> : vector<2x256xf32>
    %38 = tpu.matmul %33, %32, %cst_36 {dimension_numbers = #tpu.dot_dimension_numbers<[1], [0], [0], [1], [0, 0, 1, 1], [], []>} : vector<2x64xf32>, vector<64x256xf32>, vector<2x256xf32> -> vector<2x256xf32>
    %39 = arith.addf %37, %38 : vector<2x256xf32>
    %40 = vector.extract_strided_slice %39 {offsets = [0, 0], sizes = [2, 64], strides = [1, 1]} : vector<2x256xf32> to vector<2x64xf32>
    %41 = arith.negf %40 : vector<2x64xf32>
    %42 = math.exp %41 : vector<2x64xf32>
    %cst_37 = arith.constant 1.000000e+00 : f32
    %43 = vector.broadcast %cst_37 : f32 to vector<2x64xf32>
    %44 = arith.addf %43, %42 : vector<2x64xf32>
    %45 = arith.divf %43, %44 : vector<2x64xf32>
    %46 = vector.extract_strided_slice %39 {offsets = [0, 64], sizes = [2, 64], strides = [1, 1]} : vector<2x256xf32> to vector<2x64xf32>
    %47 = arith.negf %46 : vector<2x64xf32>
    %48 = math.exp %47 : vector<2x64xf32>
    %cst_38 = arith.constant 1.000000e+00 : f32
    %49 = vector.broadcast %cst_38 : f32 to vector<2x64xf32>
    %50 = arith.addf %49, %48 : vector<2x64xf32>
    %51 = arith.divf %49, %50 : vector<2x64xf32>
    %52 = vector.extract_strided_slice %39 {offsets = [0, 128], sizes = [2, 64], strides = [1, 1]} : vector<2x256xf32> to vector<2x64xf32>
    %53 = math.tanh %52 : vector<2x64xf32>
    %54 = vector.extract_strided_slice %39 {offsets = [0, 192], sizes = [2, 64], strides = [1, 1]} : vector<2x256xf32> to vector<2x64xf32>
    %55 = arith.negf %54 : vector<2x64xf32>
    %56 = math.exp %55 : vector<2x64xf32>
    %cst_39 = arith.constant 1.000000e+00 : f32
    %57 = vector.broadcast %cst_39 : f32 to vector<2x64xf32>
    %58 = arith.addf %57, %56 : vector<2x64xf32>
    %59 = arith.divf %57, %58 : vector<2x64xf32>
    %60 = arith.mulf %51, %33 : vector<2x64xf32>
    %61 = arith.mulf %45, %53 : vector<2x64xf32>
    %62 = arith.addf %60, %61 : vector<2x64xf32>
    %63 = math.tanh %62 : vector<2x64xf32>
    %64 = arith.mulf %59, %63 : vector<2x64xf32>
    %65 = vector.extract_strided_slice %64 {offsets = [0, 0], sizes = [2, 32], strides = [1, 1]} : vector<2x64xf32> to vector<2x32xf32>
    %66 = arith.index_cast %c0_i32 : i32 to index
    %c0_40 = arith.constant 0 : index
    %c0_41 = arith.constant 0 : index
    %67 = vector.load %arg14[%66, %c0_40, %c0_41] : memref<8x2x32xf32, #tpu.memory_space<vmem>>, vector<1x2x32xf32>
    %68 = vector.shape_cast %67 : vector<1x2x32xf32> to vector<2x32xf32>
    %69 = vector.shape_cast %65 : vector<2x32xf32> to vector<1x2x32xf32>
    tpu.vector_store %arg14[%66, %c0_40, %c0_41], %69 {strides = array<i32>} : memref<8x2x32xf32, #tpu.memory_space<vmem>>, vector<1x2x32xf32>,
    %70 = vector.extract_strided_slice %64 {offsets = [0, 32], sizes = [2, 32], strides = [1, 1]} : vector<2x64xf32> to vector<2x32xf32>
    %71 = arith.index_cast %34 : i32 to index
    %c0_42 = arith.constant 0 : index
    %c0_43 = arith.constant 0 : index
    %72 = vector.load %arg15[%71, %c0_42, %c0_43] : memref<8x2x32xf32, #tpu.memory_space<vmem>>, vector<1x2x32xf32>
    %73 = vector.shape_cast %72 : vector<1x2x32xf32> to vector<2x32xf32>
    %74 = vector.shape_cast %70 : vector<2x32xf32> to vector<1x2x32xf32>
    tpu.vector_store %arg15[%71, %c0_42, %c0_43], %74 {strides = array<i32>} : memref<8x2x32xf32, #tpu.memory_space<vmem>>, vector<1x2x32xf32>,
    %c1_i32 = arith.constant 1 : i32
    %c7_i32_44 = arith.constant 7 : i32
    %75 = arith.subi %c7_i32_44, %c1_i32 : i32
    %76 = arith.index_cast %c1_i32 : i32 to index
    %c0_45 = arith.constant 0 : index
    %c0_46 = arith.constant 0 : index
    %77 = vector.load %arg13[%76, %c0_45, %c0_46] : memref<8x2x256xf32, #tpu.memory_space<vmem>>, vector<1x2x256xf32>
    %78 = vector.shape_cast %77 : vector<1x2x256xf32> to vector<2x256xf32>
    %cst_47 = arith.constant dense<0.000000e+00> : vector<2x256xf32>
    %79 = tpu.matmul %64, %32, %cst_47 {dimension_numbers = #tpu.dot_dimension_numbers<[1], [0], [0], [1], [0, 0, 1, 1], [], []>} : vector<2x64xf32>, vector<64x256xf32>, vector<2x256xf32> -> vector<2x256xf32>
    %80 = arith.addf %78, %79 : vector<2x256xf32>
    %81 = vector.extract_strided_slice %80 {offsets = [0, 0], sizes = [2, 64], strides = [1, 1]} : vector<2x256xf32> to vector<2x64xf32>
    %82 = arith.negf %81 : vector<2x64xf32>
    %83 = math.exp %82 : vector<2x64xf32>
    %cst_48 = arith.constant 1.000000e+00 : f32
    %84 = vector.broadcast %cst_48 : f32 to vector<2x64xf32>
    %85 = arith.addf %84, %83 : vector<2x64xf32>
    %86 = arith.divf %84, %85 : vector<2x64xf32>
    %87 = vector.extract_strided_slice %80 {offsets = [0, 64], sizes = [2, 64], strides = [1, 1]} : vector<2x256xf32> to vector<2x64xf32>
    %88 = arith.negf %87 : vector<2x64xf32>
    %89 = math.exp %88 : vector<2x64xf32>
    %cst_49 = arith.constant 1.000000e+00 : f32
    %90 = vector.broadcast %cst_49 : f32 to vector<2x64xf32>
    %91 = arith.addf %90, %89 : vector<2x64xf32>
    %92 = arith.divf %90, %91 : vector<2x64xf32>
    %93 = vector.extract_strided_slice %80 {offsets = [0, 128], sizes = [2, 64], strides = [1, 1]} : vector<2x256xf32> to vector<2x64xf32>
    %94 = math.tanh %93 : vector<2x64xf32>
    %95 = vector.extract_strided_slice %80 {offsets = [0, 192], sizes = [2, 64], strides = [1, 1]} : vector<2x256xf32> to vector<2x64xf32>
    %96 = arith.negf %95 : vector<2x64xf32>
    %97 = math.exp %96 : vector<2x64xf32>
    %cst_50 = arith.constant 1.000000e+00 : f32
    %98 = vector.broadcast %cst_50 : f32 to vector<2x64xf32>
    %99 = arith.addf %98, %97 : vector<2x64xf32>
    %100 = arith.divf %98, %99 : vector<2x64xf32>
    %101 = arith.mulf %92, %62 : vector<2x64xf32>
    %102 = arith.mulf %86, %94 : vector<2x64xf32>
    %103 = arith.addf %101, %102 : vector<2x64xf32>
    %104 = math.tanh %103 : vector<2x64xf32>
    %105 = arith.mulf %100, %104 : vector<2x64xf32>
    %106 = vector.extract_strided_slice %105 {offsets = [0, 0], sizes = [2, 32], strides = [1, 1]} : vector<2x64xf32> to vector<2x32xf32>
    %107 = arith.index_cast %c1_i32 : i32 to index
    %c0_51 = arith.constant 0 : index
    %c0_52 = arith.constant 0 : index
    %108 = vector.load %arg14[%107, %c0_51, %c0_52] : memref<8x2x32xf32, #tpu.memory_space<vmem>>, vector<1x2x32xf32>
    %109 = vector.shape_cast %108 : vector<1x2x32xf32> to vector<2x32xf32>
    %110 = vector.shape_cast %106 : vector<2x32xf32> to vector<1x2x32xf32>
    tpu.vector_store %arg14[%107, %c0_51, %c0_52], %110 {strides = array<i32>} : memref<8x2x32xf32, #tpu.memory_space<vmem>>, vector<1x2x32xf32>,
    %111 = vector.extract_strided_slice %105 {offsets = [0, 32], sizes = [2, 32], strides = [1, 1]} : vector<2x64xf32> to vector<2x32xf32>
    %112 = arith.index_cast %75 : i32 to index
    %c0_53 = arith.constant 0 : index
    %c0_54 = arith.constant 0 : index
    %113 = vector.load %arg15[%112, %c0_53, %c0_54] : memref<8x2x32xf32, #tpu.memory_space<vmem>>, vector<1x2x32xf32>
    %114 = vector.shape_cast %113 : vector<1x2x32xf32> to vector<2x32xf32>
    %115 = vector.shape_cast %111 : vector<2x32xf32> to vector<1x2x32xf32>
    tpu.vector_store %arg15[%112, %c0_53, %c0_54], %115 {strides = array<i32>} : memref<8x2x32xf32, #tpu.memory_space<vmem>>, vector<1x2x32xf32>,
    %c2_i32 = arith.constant 2 : i32
    %c7_i32_55 = arith.constant 7 : i32
    %116 = arith.subi %c7_i32_55, %c2_i32 : i32
    %117 = arith.index_cast %c2_i32 : i32 to index
    %c0_56 = arith.constant 0 : index
    %c0_57 = arith.constant 0 : index
    %118 = vector.load %arg13[%117, %c0_56, %c0_57] : memref<8x2x256xf32, #tpu.memory_space<vmem>>, vector<1x2x256xf32>
    %119 = vector.shape_cast %118 : vector<1x2x256xf32> to vector<2x256xf32>
    %cst_58 = arith.constant dense<0.000000e+00> : vector<2x256xf32>
    %120 = tpu.matmul %105, %32, %cst_58 {dimension_numbers = #tpu.dot_dimension_numbers<[1], [0], [0], [1], [0, 0, 1, 1], [], []>} : vector<2x64xf32>, vector<64x256xf32>, vector<2x256xf32> -> vector<2x256xf32>
    %121 = arith.addf %119, %120 : vector<2x256xf32>
    %122 = vector.extract_strided_slice %121 {offsets = [0, 0], sizes = [2, 64], strides = [1, 1]} : vector<2x256xf32> to vector<2x64xf32>
    %123 = arith.negf %122 : vector<2x64xf32>
    %124 = math.exp %123 : vector<2x64xf32>
    %cst_59 = arith.constant 1.000000e+00 : f32
    %125 = vector.broadcast %cst_59 : f32 to vector<2x64xf32>
    %126 = arith.addf %125, %124 : vector<2x64xf32>
    %127 = arith.divf %125, %126 : vector<2x64xf32>
    %128 = vector.extract_strided_slice %121 {offsets = [0, 64], sizes = [2, 64], strides = [1, 1]} : vector<2x256xf32> to vector<2x64xf32>
    %129 = arith.negf %128 : vector<2x64xf32>
    %130 = math.exp %129 : vector<2x64xf32>
    %cst_60 = arith.constant 1.000000e+00 : f32
    %131 = vector.broadcast %cst_60 : f32 to vector<2x64xf32>
    %132 = arith.addf %131, %130 : vector<2x64xf32>
    %133 = arith.divf %131, %132 : vector<2x64xf32>
    %134 = vector.extract_strided_slice %121 {offsets = [0, 128], sizes = [2, 64], strides = [1, 1]} : vector<2x256xf32> to vector<2x64xf32>
    %135 = math.tanh %134 : vector<2x64xf32>
    %136 = vector.extract_strided_slice %121 {offsets = [0, 192], sizes = [2, 64], strides = [1, 1]} : vector<2x256xf32> to vector<2x64xf32>
    %137 = arith.negf %136 : vector<2x64xf32>
    %138 = math.exp %137 : vector<2x64xf32>
    %cst_61 = arith.constant 1.000000e+00 : f32
    %139 = vector.broadcast %cst_61 : f32 to vector<2x64xf32>
    %140 = arith.addf %139, %138 : vector<2x64xf32>
    %141 = arith.divf %139, %140 : vector<2x64xf32>
    %142 = arith.mulf %133, %103 : vector<2x64xf32>
    %143 = arith.mulf %127, %135 : vector<2x64xf32>
    %144 = arith.addf %142, %143 : vector<2x64xf32>
    %145 = math.tanh %144 : vector<2x64xf32>
    %146 = arith.mulf %141, %145 : vector<2x64xf32>
    %147 = vector.extract_strided_slice %146 {offsets = [0, 0], sizes = [2, 32], strides = [1, 1]} : vector<2x64xf32> to vector<2x32xf32>
    %148 = arith.index_cast %c2_i32 : i32 to index
    %c0_62 = arith.constant 0 : index
    %c0_63 = arith.constant 0 : index
    %149 = vector.load %arg14[%148, %c0_62, %c0_63] : memref<8x2x32xf32, #tpu.memory_space<vmem>>, vector<1x2x32xf32>
    %150 = vector.shape_cast %149 : vector<1x2x32xf32> to vector<2x32xf32>
    %151 = vector.shape_cast %147 : vector<2x32xf32> to vector<1x2x32xf32>
    tpu.vector_store %arg14[%148, %c0_62, %c0_63], %151 {strides = array<i32>} : memref<8x2x32xf32, #tpu.memory_space<vmem>>, vector<1x2x32xf32>,
    %152 = vector.extract_strided_slice %146 {offsets = [0, 32], sizes = [2, 32], strides = [1, 1]} : vector<2x64xf32> to vector<2x32xf32>
    %153 = arith.index_cast %116 : i32 to index
    %c0_64 = arith.constant 0 : index
    %c0_65 = arith.constant 0 : index
    %154 = vector.load %arg15[%153, %c0_64, %c0_65] : memref<8x2x32xf32, #tpu.memory_space<vmem>>, vector<1x2x32xf32>
    %155 = vector.shape_cast %154 : vector<1x2x32xf32> to vector<2x32xf32>
    %156 = vector.shape_cast %152 : vector<2x32xf32> to vector<1x2x32xf32>
    tpu.vector_store %arg15[%153, %c0_64, %c0_65], %156 {strides = array<i32>} : memref<8x2x32xf32, #tpu.memory_space<vmem>>, vector<1x2x32xf32>,
    %c3_i32 = arith.constant 3 : i32
    %c7_i32_66 = arith.constant 7 : i32
    %157 = arith.subi %c7_i32_66, %c3_i32 : i32
    %158 = arith.index_cast %c3_i32 : i32 to index
    %c0_67 = arith.constant 0 : index
    %c0_68 = arith.constant 0 : index
    %159 = vector.load %arg13[%158, %c0_67, %c0_68] : memref<8x2x256xf32, #tpu.memory_space<vmem>>, vector<1x2x256xf32>
    %160 = vector.shape_cast %159 : vector<1x2x256xf32> to vector<2x256xf32>
    %cst_69 = arith.constant dense<0.000000e+00> : vector<2x256xf32>
    %161 = tpu.matmul %146, %32, %cst_69 {dimension_numbers = #tpu.dot_dimension_numbers<[1], [0], [0], [1], [0, 0, 1, 1], [], []>} : vector<2x64xf32>, vector<64x256xf32>, vector<2x256xf32> -> vector<2x256xf32>
    %162 = arith.addf %160, %161 : vector<2x256xf32>
    %163 = vector.extract_strided_slice %162 {offsets = [0, 0], sizes = [2, 64], strides = [1, 1]} : vector<2x256xf32> to vector<2x64xf32>
    %164 = arith.negf %163 : vector<2x64xf32>
    %165 = math.exp %164 : vector<2x64xf32>
    %cst_70 = arith.constant 1.000000e+00 : f32
    %166 = vector.broadcast %cst_70 : f32 to vector<2x64xf32>
    %167 = arith.addf %166, %165 : vector<2x64xf32>
    %168 = arith.divf %166, %167 : vector<2x64xf32>
    %169 = vector.extract_strided_slice %162 {offsets = [0, 64], sizes = [2, 64], strides = [1, 1]} : vector<2x256xf32> to vector<2x64xf32>
    %170 = arith.negf %169 : vector<2x64xf32>
    %171 = math.exp %170 : vector<2x64xf32>
    %cst_71 = arith.constant 1.000000e+00 : f32
    %172 = vector.broadcast %cst_71 : f32 to vector<2x64xf32>
    %173 = arith.addf %172, %171 : vector<2x64xf32>
    %174 = arith.divf %172, %173 : vector<2x64xf32>
    %175 = vector.extract_strided_slice %162 {offsets = [0, 128], sizes = [2, 64], strides = [1, 1]} : vector<2x256xf32> to vector<2x64xf32>
    %176 = math.tanh %175 : vector<2x64xf32>
    %177 = vector.extract_strided_slice %162 {offsets = [0, 192], sizes = [2, 64], strides = [1, 1]} : vector<2x256xf32> to vector<2x64xf32>
    %178 = arith.negf %177 : vector<2x64xf32>
    %179 = math.exp %178 : vector<2x64xf32>
    %cst_72 = arith.constant 1.000000e+00 : f32
    %180 = vector.broadcast %cst_72 : f32 to vector<2x64xf32>
    %181 = arith.addf %180, %179 : vector<2x64xf32>
    %182 = arith.divf %180, %181 : vector<2x64xf32>
    %183 = arith.mulf %174, %144 : vector<2x64xf32>
    %184 = arith.mulf %168, %176 : vector<2x64xf32>
    %185 = arith.addf %183, %184 : vector<2x64xf32>
    %186 = math.tanh %185 : vector<2x64xf32>
    %187 = arith.mulf %182, %186 : vector<2x64xf32>
    %188 = vector.extract_strided_slice %187 {offsets = [0, 0], sizes = [2, 32], strides = [1, 1]} : vector<2x64xf32> to vector<2x32xf32>
    %189 = arith.index_cast %c3_i32 : i32 to index
    %c0_73 = arith.constant 0 : index
    %c0_74 = arith.constant 0 : index
    %190 = vector.load %arg14[%189, %c0_73, %c0_74] : memref<8x2x32xf32, #tpu.memory_space<vmem>>, vector<1x2x32xf32>
    %191 = vector.shape_cast %190 : vector<1x2x32xf32> to vector<2x32xf32>
    %192 = vector.shape_cast %188 : vector<2x32xf32> to vector<1x2x32xf32>
    tpu.vector_store %arg14[%189, %c0_73, %c0_74], %192 {strides = array<i32>} : memref<8x2x32xf32, #tpu.memory_space<vmem>>, vector<1x2x32xf32>,
    %193 = vector.extract_strided_slice %187 {offsets = [0, 32], sizes = [2, 32], strides = [1, 1]} : vector<2x64xf32> to vector<2x32xf32>
    %194 = arith.index_cast %157 : i32 to index
    %c0_75 = arith.constant 0 : index
    %c0_76 = arith.constant 0 : index
    %195 = vector.load %arg15[%194, %c0_75, %c0_76] : memref<8x2x32xf32, #tpu.memory_space<vmem>>, vector<1x2x32xf32>
    %196 = vector.shape_cast %195 : vector<1x2x32xf32> to vector<2x32xf32>
    %197 = vector.shape_cast %193 : vector<2x32xf32> to vector<1x2x32xf32>
    tpu.vector_store %arg15[%194, %c0_75, %c0_76], %197 {strides = array<i32>} : memref<8x2x32xf32, #tpu.memory_space<vmem>>, vector<1x2x32xf32>,
    %c4_i32 = arith.constant 4 : i32
    %c7_i32_77 = arith.constant 7 : i32
    %198 = arith.subi %c7_i32_77, %c4_i32 : i32
    %199 = arith.index_cast %c4_i32 : i32 to index
    %c0_78 = arith.constant 0 : index
    %c0_79 = arith.constant 0 : index
    %200 = vector.load %arg13[%199, %c0_78, %c0_79] : memref<8x2x256xf32, #tpu.memory_space<vmem>>, vector<1x2x256xf32>
    %201 = vector.shape_cast %200 : vector<1x2x256xf32> to vector<2x256xf32>
    %cst_80 = arith.constant dense<0.000000e+00> : vector<2x256xf32>
    %202 = tpu.matmul %187, %32, %cst_80 {dimension_numbers = #tpu.dot_dimension_numbers<[1], [0], [0], [1], [0, 0, 1, 1], [], []>} : vector<2x64xf32>, vector<64x256xf32>, vector<2x256xf32> -> vector<2x256xf32>
    %203 = arith.addf %201, %202 : vector<2x256xf32>
    %204 = vector.extract_strided_slice %203 {offsets = [0, 0], sizes = [2, 64], strides = [1, 1]} : vector<2x256xf32> to vector<2x64xf32>
    %205 = arith.negf %204 : vector<2x64xf32>
    %206 = math.exp %205 : vector<2x64xf32>
    %cst_81 = arith.constant 1.000000e+00 : f32
    %207 = vector.broadcast %cst_81 : f32 to vector<2x64xf32>
    %208 = arith.addf %207, %206 : vector<2x64xf32>
    %209 = arith.divf %207, %208 : vector<2x64xf32>
    %210 = vector.extract_strided_slice %203 {offsets = [0, 64], sizes = [2, 64], strides = [1, 1]} : vector<2x256xf32> to vector<2x64xf32>
    %211 = arith.negf %210 : vector<2x64xf32>
    %212 = math.exp %211 : vector<2x64xf32>
    %cst_82 = arith.constant 1.000000e+00 : f32
    %213 = vector.broadcast %cst_82 : f32 to vector<2x64xf32>
    %214 = arith.addf %213, %212 : vector<2x64xf32>
    %215 = arith.divf %213, %214 : vector<2x64xf32>
    %216 = vector.extract_strided_slice %203 {offsets = [0, 128], sizes = [2, 64], strides = [1, 1]} : vector<2x256xf32> to vector<2x64xf32>
    %217 = math.tanh %216 : vector<2x64xf32>
    %218 = vector.extract_strided_slice %203 {offsets = [0, 192], sizes = [2, 64], strides = [1, 1]} : vector<2x256xf32> to vector<2x64xf32>
    %219 = arith.negf %218 : vector<2x64xf32>
    %220 = math.exp %219 : vector<2x64xf32>
    %cst_83 = arith.constant 1.000000e+00 : f32
    %221 = vector.broadcast %cst_83 : f32 to vector<2x64xf32>
    %222 = arith.addf %221, %220 : vector<2x64xf32>
    %223 = arith.divf %221, %222 : vector<2x64xf32>
    %224 = arith.mulf %215, %185 : vector<2x64xf32>
    %225 = arith.mulf %209, %217 : vector<2x64xf32>
    %226 = arith.addf %224, %225 : vector<2x64xf32>
    %227 = math.tanh %226 : vector<2x64xf32>
    %228 = arith.mulf %223, %227 : vector<2x64xf32>
    %229 = vector.extract_strided_slice %228 {offsets = [0, 0], sizes = [2, 32], strides = [1, 1]} : vector<2x64xf32> to vector<2x32xf32>
    %230 = arith.index_cast %c4_i32 : i32 to index
    %c0_84 = arith.constant 0 : index
    %c0_85 = arith.constant 0 : index
    %231 = vector.load %arg14[%230, %c0_84, %c0_85] : memref<8x2x32xf32, #tpu.memory_space<vmem>>, vector<1x2x32xf32>
    %232 = vector.shape_cast %231 : vector<1x2x32xf32> to vector<2x32xf32>
    %233 = vector.shape_cast %229 : vector<2x32xf32> to vector<1x2x32xf32>
    tpu.vector_store %arg14[%230, %c0_84, %c0_85], %233 {strides = array<i32>} : memref<8x2x32xf32, #tpu.memory_space<vmem>>, vector<1x2x32xf32>,
    %234 = vector.extract_strided_slice %228 {offsets = [0, 32], sizes = [2, 32], strides = [1, 1]} : vector<2x64xf32> to vector<2x32xf32>
    %235 = arith.index_cast %198 : i32 to index
    %c0_86 = arith.constant 0 : index
    %c0_87 = arith.constant 0 : index
    %236 = vector.load %arg15[%235, %c0_86, %c0_87] : memref<8x2x32xf32, #tpu.memory_space<vmem>>, vector<1x2x32xf32>
    %237 = vector.shape_cast %236 : vector<1x2x32xf32> to vector<2x32xf32>
    %238 = vector.shape_cast %234 : vector<2x32xf32> to vector<1x2x32xf32>
    tpu.vector_store %arg15[%235, %c0_86, %c0_87], %238 {strides = array<i32>} : memref<8x2x32xf32, #tpu.memory_space<vmem>>, vector<1x2x32xf32>,
    %c5_i32 = arith.constant 5 : i32
    %c7_i32_88 = arith.constant 7 : i32
    %239 = arith.subi %c7_i32_88, %c5_i32 : i32
    %240 = arith.index_cast %c5_i32 : i32 to index
    %c0_89 = arith.constant 0 : index
    %c0_90 = arith.constant 0 : index
    %241 = vector.load %arg13[%240, %c0_89, %c0_90] : memref<8x2x256xf32, #tpu.memory_space<vmem>>, vector<1x2x256xf32>
    %242 = vector.shape_cast %241 : vector<1x2x256xf32> to vector<2x256xf32>
    %cst_91 = arith.constant dense<0.000000e+00> : vector<2x256xf32>
    %243 = tpu.matmul %228, %32, %cst_91 {dimension_numbers = #tpu.dot_dimension_numbers<[1], [0], [0], [1], [0, 0, 1, 1], [], []>} : vector<2x64xf32>, vector<64x256xf32>, vector<2x256xf32> -> vector<2x256xf32>
    %244 = arith.addf %242, %243 : vector<2x256xf32>
    %245 = vector.extract_strided_slice %244 {offsets = [0, 0], sizes = [2, 64], strides = [1, 1]} : vector<2x256xf32> to vector<2x64xf32>
    %246 = arith.negf %245 : vector<2x64xf32>
    %247 = math.exp %246 : vector<2x64xf32>
    %cst_92 = arith.constant 1.000000e+00 : f32
    %248 = vector.broadcast %cst_92 : f32 to vector<2x64xf32>
    %249 = arith.addf %248, %247 : vector<2x64xf32>
    %250 = arith.divf %248, %249 : vector<2x64xf32>
    %251 = vector.extract_strided_slice %244 {offsets = [0, 64], sizes = [2, 64], strides = [1, 1]} : vector<2x256xf32> to vector<2x64xf32>
    %252 = arith.negf %251 : vector<2x64xf32>
    %253 = math.exp %252 : vector<2x64xf32>
    %cst_93 = arith.constant 1.000000e+00 : f32
    %254 = vector.broadcast %cst_93 : f32 to vector<2x64xf32>
    %255 = arith.addf %254, %253 : vector<2x64xf32>
    %256 = arith.divf %254, %255 : vector<2x64xf32>
    %257 = vector.extract_strided_slice %244 {offsets = [0, 128], sizes = [2, 64], strides = [1, 1]} : vector<2x256xf32> to vector<2x64xf32>
    %258 = math.tanh %257 : vector<2x64xf32>
    %259 = vector.extract_strided_slice %244 {offsets = [0, 192], sizes = [2, 64], strides = [1, 1]} : vector<2x256xf32> to vector<2x64xf32>
    %260 = arith.negf %259 : vector<2x64xf32>
    %261 = math.exp %260 : vector<2x64xf32>
    %cst_94 = arith.constant 1.000000e+00 : f32
    %262 = vector.broadcast %cst_94 : f32 to vector<2x64xf32>
    %263 = arith.addf %262, %261 : vector<2x64xf32>
    %264 = arith.divf %262, %263 : vector<2x64xf32>
    %265 = arith.mulf %256, %226 : vector<2x64xf32>
    %266 = arith.mulf %250, %258 : vector<2x64xf32>
    %267 = arith.addf %265, %266 : vector<2x64xf32>
    %268 = math.tanh %267 : vector<2x64xf32>
    %269 = arith.mulf %264, %268 : vector<2x64xf32>
    %270 = vector.extract_strided_slice %269 {offsets = [0, 0], sizes = [2, 32], strides = [1, 1]} : vector<2x64xf32> to vector<2x32xf32>
    %271 = arith.index_cast %c5_i32 : i32 to index
    %c0_95 = arith.constant 0 : index
    %c0_96 = arith.constant 0 : index
    %272 = vector.load %arg14[%271, %c0_95, %c0_96] : memref<8x2x32xf32, #tpu.memory_space<vmem>>, vector<1x2x32xf32>
    %273 = vector.shape_cast %272 : vector<1x2x32xf32> to vector<2x32xf32>
    %274 = vector.shape_cast %270 : vector<2x32xf32> to vector<1x2x32xf32>
    tpu.vector_store %arg14[%271, %c0_95, %c0_96], %274 {strides = array<i32>} : memref<8x2x32xf32, #tpu.memory_space<vmem>>, vector<1x2x32xf32>,
    %275 = vector.extract_strided_slice %269 {offsets = [0, 32], sizes = [2, 32], strides = [1, 1]} : vector<2x64xf32> to vector<2x32xf32>
    %276 = arith.index_cast %239 : i32 to index
    %c0_97 = arith.constant 0 : index
    %c0_98 = arith.constant 0 : index
    %277 = vector.load %arg15[%276, %c0_97, %c0_98] : memref<8x2x32xf32, #tpu.memory_space<vmem>>, vector<1x2x32xf32>
    %278 = vector.shape_cast %277 : vector<1x2x32xf32> to vector<2x32xf32>
    %279 = vector.shape_cast %275 : vector<2x32xf32> to vector<1x2x32xf32>
    tpu.vector_store %arg15[%276, %c0_97, %c0_98], %279 {strides = array<i32>} : memref<8x2x32xf32, #tpu.memory_space<vmem>>, vector<1x2x32xf32>,
    %c6_i32 = arith.constant 6 : i32
    %c7_i32_99 = arith.constant 7 : i32
    %280 = arith.subi %c7_i32_99, %c6_i32 : i32
    %281 = arith.index_cast %c6_i32 : i32 to index
    %c0_100 = arith.constant 0 : index
    %c0_101 = arith.constant 0 : index
    %282 = vector.load %arg13[%281, %c0_100, %c0_101] : memref<8x2x256xf32, #tpu.memory_space<vmem>>, vector<1x2x256xf32>
    %283 = vector.shape_cast %282 : vector<1x2x256xf32> to vector<2x256xf32>
    %cst_102 = arith.constant dense<0.000000e+00> : vector<2x256xf32>
    %284 = tpu.matmul %269, %32, %cst_102 {dimension_numbers = #tpu.dot_dimension_numbers<[1], [0], [0], [1], [0, 0, 1, 1], [], []>} : vector<2x64xf32>, vector<64x256xf32>, vector<2x256xf32> -> vector<2x256xf32>
    %285 = arith.addf %283, %284 : vector<2x256xf32>
    %286 = vector.extract_strided_slice %285 {offsets = [0, 0], sizes = [2, 64], strides = [1, 1]} : vector<2x256xf32> to vector<2x64xf32>
    %287 = arith.negf %286 : vector<2x64xf32>
    %288 = math.exp %287 : vector<2x64xf32>
    %cst_103 = arith.constant 1.000000e+00 : f32
    %289 = vector.broadcast %cst_103 : f32 to vector<2x64xf32>
    %290 = arith.addf %289, %288 : vector<2x64xf32>
    %291 = arith.divf %289, %290 : vector<2x64xf32>
    %292 = vector.extract_strided_slice %285 {offsets = [0, 64], sizes = [2, 64], strides = [1, 1]} : vector<2x256xf32> to vector<2x64xf32>
    %293 = arith.negf %292 : vector<2x64xf32>
    %294 = math.exp %293 : vector<2x64xf32>
    %cst_104 = arith.constant 1.000000e+00 : f32
    %295 = vector.broadcast %cst_104 : f32 to vector<2x64xf32>
    %296 = arith.addf %295, %294 : vector<2x64xf32>
    %297 = arith.divf %295, %296 : vector<2x64xf32>
    %298 = vector.extract_strided_slice %285 {offsets = [0, 128], sizes = [2, 64], strides = [1, 1]} : vector<2x256xf32> to vector<2x64xf32>
    %299 = math.tanh %298 : vector<2x64xf32>
    %300 = vector.extract_strided_slice %285 {offsets = [0, 192], sizes = [2, 64], strides = [1, 1]} : vector<2x256xf32> to vector<2x64xf32>
    %301 = arith.negf %300 : vector<2x64xf32>
    %302 = math.exp %301 : vector<2x64xf32>
    %cst_105 = arith.constant 1.000000e+00 : f32
    %303 = vector.broadcast %cst_105 : f32 to vector<2x64xf32>
    %304 = arith.addf %303, %302 : vector<2x64xf32>
    %305 = arith.divf %303, %304 : vector<2x64xf32>
    %306 = arith.mulf %297, %267 : vector<2x64xf32>
    %307 = arith.mulf %291, %299 : vector<2x64xf32>
    %308 = arith.addf %306, %307 : vector<2x64xf32>
    %309 = math.tanh %308 : vector<2x64xf32>
    %310 = arith.mulf %305, %309 : vector<2x64xf32>
    %311 = vector.extract_strided_slice %310 {offsets = [0, 0], sizes = [2, 32], strides = [1, 1]} : vector<2x64xf32> to vector<2x32xf32>
    %312 = arith.index_cast %c6_i32 : i32 to index
    %c0_106 = arith.constant 0 : index
    %c0_107 = arith.constant 0 : index
    %313 = vector.load %arg14[%312, %c0_106, %c0_107] : memref<8x2x32xf32, #tpu.memory_space<vmem>>, vector<1x2x32xf32>
    %314 = vector.shape_cast %313 : vector<1x2x32xf32> to vector<2x32xf32>
    %315 = vector.shape_cast %311 : vector<2x32xf32> to vector<1x2x32xf32>
    tpu.vector_store %arg14[%312, %c0_106, %c0_107], %315 {strides = array<i32>} : memref<8x2x32xf32, #tpu.memory_space<vmem>>, vector<1x2x32xf32>,
    %316 = vector.extract_strided_slice %310 {offsets = [0, 32], sizes = [2, 32], strides = [1, 1]} : vector<2x64xf32> to vector<2x32xf32>
    %317 = arith.index_cast %280 : i32 to index
    %c0_108 = arith.constant 0 : index
    %c0_109 = arith.constant 0 : index
    %318 = vector.load %arg15[%317, %c0_108, %c0_109] : memref<8x2x32xf32, #tpu.memory_space<vmem>>, vector<1x2x32xf32>
    %319 = vector.shape_cast %318 : vector<1x2x32xf32> to vector<2x32xf32>
    %320 = vector.shape_cast %316 : vector<2x32xf32> to vector<1x2x32xf32>
    tpu.vector_store %arg15[%317, %c0_108, %c0_109], %320 {strides = array<i32>} : memref<8x2x32xf32, #tpu.memory_space<vmem>>, vector<1x2x32xf32>,
    %c7_i32_110 = arith.constant 7 : i32
    %c7_i32_111 = arith.constant 7 : i32
    %321 = arith.subi %c7_i32_111, %c7_i32_110 : i32
    %322 = arith.index_cast %c7_i32_110 : i32 to index
    %c0_112 = arith.constant 0 : index
    %c0_113 = arith.constant 0 : index
    %323 = vector.load %arg13[%322, %c0_112, %c0_113] : memref<8x2x256xf32, #tpu.memory_space<vmem>>, vector<1x2x256xf32>
    %324 = vector.shape_cast %323 : vector<1x2x256xf32> to vector<2x256xf32>
    %cst_114 = arith.constant dense<0.000000e+00> : vector<2x256xf32>
    %325 = tpu.matmul %310, %32, %cst_114 {dimension_numbers = #tpu.dot_dimension_numbers<[1], [0], [0], [1], [0, 0, 1, 1], [], []>} : vector<2x64xf32>, vector<64x256xf32>, vector<2x256xf32> -> vector<2x256xf32>
    %326 = arith.addf %324, %325 : vector<2x256xf32>
    %327 = vector.extract_strided_slice %326 {offsets = [0, 0], sizes = [2, 64], strides = [1, 1]} : vector<2x256xf32> to vector<2x64xf32>
    %328 = arith.negf %327 : vector<2x64xf32>
    %329 = math.exp %328 : vector<2x64xf32>
    %cst_115 = arith.constant 1.000000e+00 : f32
    %330 = vector.broadcast %cst_115 : f32 to vector<2x64xf32>
    %331 = arith.addf %330, %329 : vector<2x64xf32>
    %332 = arith.divf %330, %331 : vector<2x64xf32>
    %333 = vector.extract_strided_slice %326 {offsets = [0, 64], sizes = [2, 64], strides = [1, 1]} : vector<2x256xf32> to vector<2x64xf32>
    %334 = arith.negf %333 : vector<2x64xf32>
    %335 = math.exp %334 : vector<2x64xf32>
    %cst_116 = arith.constant 1.000000e+00 : f32
    %336 = vector.broadcast %cst_116 : f32 to vector<2x64xf32>
    %337 = arith.addf %336, %335 : vector<2x64xf32>
    %338 = arith.divf %336, %337 : vector<2x64xf32>
    %339 = vector.extract_strided_slice %326 {offsets = [0, 128], sizes = [2, 64], strides = [1, 1]} : vector<2x256xf32> to vector<2x64xf32>
    %340 = math.tanh %339 : vector<2x64xf32>
    %341 = vector.extract_strided_slice %326 {offsets = [0, 192], sizes = [2, 64], strides = [1, 1]} : vector<2x256xf32> to vector<2x64xf32>
    %342 = arith.negf %341 : vector<2x64xf32>
    %343 = math.exp %342 : vector<2x64xf32>
    %cst_117 = arith.constant 1.000000e+00 : f32
    %344 = vector.broadcast %cst_117 : f32 to vector<2x64xf32>
    %345 = arith.addf %344, %343 : vector<2x64xf32>
    %346 = arith.divf %344, %345 : vector<2x64xf32>
    %347 = arith.mulf %338, %308 : vector<2x64xf32>
    %348 = arith.mulf %332, %340 : vector<2x64xf32>
    %349 = arith.addf %347, %348 : vector<2x64xf32>
    %350 = math.tanh %349 : vector<2x64xf32>
    %351 = arith.mulf %346, %350 : vector<2x64xf32>
    %352 = vector.extract_strided_slice %351 {offsets = [0, 0], sizes = [2, 32], strides = [1, 1]} : vector<2x64xf32> to vector<2x32xf32>
    %353 = arith.index_cast %c7_i32_110 : i32 to index
    %c0_118 = arith.constant 0 : index
    %c0_119 = arith.constant 0 : index
    %354 = vector.load %arg14[%353, %c0_118, %c0_119] : memref<8x2x32xf32, #tpu.memory_space<vmem>>, vector<1x2x32xf32>
    %355 = vector.shape_cast %354 : vector<1x2x32xf32> to vector<2x32xf32>
    %356 = vector.shape_cast %352 : vector<2x32xf32> to vector<1x2x32xf32>
    tpu.vector_store %arg14[%353, %c0_118, %c0_119], %356 {strides = array<i32>} : memref<8x2x32xf32, #tpu.memory_space<vmem>>, vector<1x2x32xf32>,
    %357 = vector.extract_strided_slice %351 {offsets = [0, 32], sizes = [2, 32], strides = [1, 1]} : vector<2x64xf32> to vector<2x32xf32>
    %358 = arith.index_cast %321 : i32 to index
    %c0_120 = arith.constant 0 : index
    %c0_121 = arith.constant 0 : index
    %359 = vector.load %arg15[%358, %c0_120, %c0_121] : memref<8x2x32xf32, #tpu.memory_space<vmem>>, vector<1x2x32xf32>
    %360 = vector.shape_cast %359 : vector<1x2x32xf32> to vector<2x32xf32>
    %361 = vector.shape_cast %357 : vector<2x32xf32> to vector<1x2x32xf32>
    tpu.vector_store %arg15[%358, %c0_120, %c0_121], %361 {strides = array<i32>} : memref<8x2x32xf32, #tpu.memory_space<vmem>>, vector<1x2x32xf32>,
    %c8_i32 = arith.constant 8 : i32
    %c0_122 = arith.constant 0 : index
    %c0_123 = arith.constant 0 : index
    %c0_124 = arith.constant 0 : index
    %362 = vector.load %arg14[%c0_122, %c0_123, %c0_124] : memref<8x2x32xf32, #tpu.memory_space<vmem>>, vector<8x2x32xf32>
    %363 = vector.shape_cast %362 : vector<8x2x32xf32> to vector<16x32xf32>
    %c0_125 = arith.constant 0 : index
    %c0_126 = arith.constant 0 : index
    %364 = vector.load %arg8[%c0_125, %c0_126] : memref<32x8xf32, #tpu.memory_space<vmem>>, vector<32x8xf32>
    %cst_127 = arith.constant dense<0.000000e+00> : vector<16x8xf32>
    %365 = tpu.matmul %363, %364, %cst_127 {dimension_numbers = #tpu.dot_dimension_numbers<[1], [0], [0], [1], [0, 0, 1, 1], [], []>} : vector<16x32xf32>, vector<32x8xf32>, vector<16x8xf32> -> vector<16x8xf32>
    %c0_128 = arith.constant 0 : index
    %c0_129 = arith.constant 0 : index
    %c0_130 = arith.constant 0 : index
    %366 = vector.load %arg15[%c0_128, %c0_129, %c0_130] : memref<8x2x32xf32, #tpu.memory_space<vmem>>, vector<8x2x32xf32>
    %367 = vector.shape_cast %366 : vector<8x2x32xf32> to vector<16x32xf32>
    %c0_131 = arith.constant 0 : index
    %c0_132 = arith.constant 0 : index
    %368 = vector.load %arg9[%c0_131, %c0_132] : memref<32x8xf32, #tpu.memory_space<vmem>>, vector<32x8xf32>
    %cst_133 = arith.constant dense<0.000000e+00> : vector<16x8xf32>
    %369 = tpu.matmul %367, %368, %cst_133 {dimension_numbers = #tpu.dot_dimension_numbers<[1], [0], [0], [1], [0, 0, 1, 1], [], []>} : vector<16x32xf32>, vector<32x8xf32>, vector<16x8xf32> -> vector<16x8xf32>
    %370 = arith.addf %365, %369 : vector<16x8xf32>
    %c0_134 = arith.constant 0 : index
    %c0_135 = arith.constant 0 : index
    %371 = vector.load %arg10[%c0_134, %c0_135] : memref<1x8xf32, #tpu.memory_space<vmem>>, vector<1x8xf32>
    %372 = vector.broadcast %371 : vector<1x8xf32> to vector<16x8xf32>
    %373 = arith.addf %370, %372 : vector<16x8xf32>
    %374 = vector.shape_cast %373 : vector<16x8xf32> to vector<8x2x8xf32>
    %c0_136 = arith.constant 0 : index
    %c0_137 = arith.constant 0 : index
    %c0_138 = arith.constant 0 : index
    %375 = vector.load %arg16[%c0_136, %c0_137, %c0_138] : memref<8x2x8xf32, #tpu.memory_space<vmem>>, vector<8x2x8xf32>
    tpu.vector_store %arg16[%c0_136, %c0_137, %c0_138], %374 {strides = array<i32>} : memref<8x2x8xf32, #tpu.memory_space<vmem>>, vector<8x2x8xf32>,
    %c0_139 = arith.constant 0 : index
    %c0_140 = arith.constant 0 : index
    %376 = vector.load %arg11[%c0_139, %c0_140] : memref<8x128xf32, #tpu.memory_space<vmem>>, vector<8x128xf32>
    %377 = tpu.iota {dimensions = array<i32: 1>} : vector<2x128xi32>
    %378 = tpu.iota {dimensions = array<i32: 2>} : vector<2x8x128xi32>
    %379 = tpu.iota {dimensions = array<i32: 1>} : vector<1x128xi32>
    %380 = tpu.iota {dimensions = array<i32: 0>} : vector<8x128xi32>
    %381 = tpu.iota {dimensions = array<i32: 1>} : vector<8x128xi32>
    %382 = arith.cmpi eq, %380, %381 : vector<8x128xi32>
    %383 = arith.extui %382 : vector<8x128xi1> to vector<8x128xi32>
    %384 = arith.sitofp %383 : vector<8x128xi32> to vector<8x128xf32>
    %c8_i32_141 = arith.constant 8 : i32
    %385 = vector.broadcast %c8_i32_141 : i32 to vector<1x128xi32>
    %386 = arith.cmpi slt, %379, %385 : vector<1x128xi32>
    %cst_142 = arith.constant 0.000000e+00 : f32
    %cst_143 = arith.constant -1.000000e+04 : f32
    %387 = vector.broadcast %cst_142 : f32 to vector<1x128xf32>
    %388 = vector.broadcast %cst_143 : f32 to vector<1x128xf32>
    %389 = arith.select %386, %387, %388 : vector<1x128xi1>, vector<1x128xf32>
    %c3_i32_144 = arith.constant 3 : i32
    %390 = vector.broadcast %c3_i32_144 : i32 to vector<2x128xi32>
    %391 = arith.cmpi eq, %377, %390 : vector<2x128xi32>
    %cst_145 = arith.constant 0.000000e+00 : f32
    %cst_146 = arith.constant -1.000000e+04 : f32
    %392 = vector.broadcast %cst_145 : f32 to vector<2x128xf32>
    %393 = vector.broadcast %cst_146 : f32 to vector<2x128xf32>
    %394 = arith.select %391, %392, %393 : vector<2x128xi1>, vector<2x128xf32>
    %c0_i32_147 = arith.constant 0 : i32
    %395 = arith.index_cast %c0_i32_147 : i32 to index
    %c0_148 = arith.constant 0 : index
    %c0_149 = arith.constant 0 : index
    %396 = vector.load %arg16[%395, %c0_148, %c0_149] : memref<8x2x8xf32, #tpu.memory_space<vmem>>, vector<1x2x8xf32>
    %397 = vector.shape_cast %396 : vector<1x2x8xf32> to vector<2x8xf32>
    %398 = vector.shape_cast %394 : vector<2x128xf32> to vector<2x1x128xf32>
    %399 = vector.shape_cast %376 : vector<8x128xf32> to vector<1x8x128xf32>
    %400 = vector.broadcast %398 : vector<2x1x128xf32> to vector<2x8x128xf32>
    %401 = vector.broadcast %399 : vector<1x8x128xf32> to vector<2x8x128xf32>
    %402 = arith.addf %400, %401 : vector<2x8x128xf32>
    %cst_150 = arith.constant dense<0xFF800000> : vector<2x8xf32>
    %403 = vector.multi_reduction <maximumf>, %402, %cst_150 [2] : vector<2x8x128xf32> to vector<2x8xf32>
    %404 = vector.shape_cast %403 : vector<2x8xf32> to vector<2x8x1xf32>
    %405 = vector.broadcast %404 : vector<2x8x1xf32> to vector<2x8x128xf32>
    %406 = arith.cmpf oeq, %402, %405 : vector<2x8x128xf32>
    %c128_i32 = arith.constant 128 : i32
    %407 = vector.broadcast %c128_i32 : i32 to vector<2x8x128xi32>
    %408 = arith.select %406, %378, %407 : vector<2x8x128xi1>, vector<2x8x128xi32>
    %cst_151 = arith.constant dense<2147483647> : vector<2x8xi32>
    %409 = vector.multi_reduction <minsi>, %408, %cst_151 [2] : vector<2x8x128xi32> to vector<2x8xi32>
    %410 = arith.index_cast %c0_i32_147 : i32 to index
    %c0_152 = arith.constant 0 : index
    %c0_153 = arith.constant 0 : index
    %411 = vector.load %arg17[%410, %c0_152, %c0_153] : memref<8x2x8xi32, #tpu.memory_space<vmem>>, vector<1x2x8xi32>
    %412 = vector.shape_cast %411 : vector<1x2x8xi32> to vector<2x8xi32>
    %413 = vector.shape_cast %409 : vector<2x8xi32> to vector<1x2x8xi32>
    tpu.vector_store %arg17[%410, %c0_152, %c0_153], %413 {strides = array<i32>} : memref<8x2x8xi32, #tpu.memory_space<vmem>>, vector<1x2x8xi32>,
    %414 = arith.addf %403, %397 : vector<2x8xf32>
    %cst_154 = arith.constant dense<0.000000e+00> : vector<2x128xf32>
    %415 = tpu.matmul %414, %384, %cst_154 {dimension_numbers = #tpu.dot_dimension_numbers<[1], [0], [0], [1], [0, 0, 1, 1], [], []>} : vector<2x8xf32>, vector<8x128xf32>, vector<2x128xf32> -> vector<2x128xf32>
    %416 = vector.broadcast %389 : vector<1x128xf32> to vector<2x128xf32>
    %417 = arith.addf %415, %416 : vector<2x128xf32>
    %c1_i32_155 = arith.constant 1 : i32
    %418 = arith.index_cast %c1_i32_155 : i32 to index
    %c0_156 = arith.constant 0 : index
    %c0_157 = arith.constant 0 : index
    %419 = vector.load %arg16[%418, %c0_156, %c0_157] : memref<8x2x8xf32, #tpu.memory_space<vmem>>, vector<1x2x8xf32>
    %420 = vector.shape_cast %419 : vector<1x2x8xf32> to vector<2x8xf32>
    %421 = vector.shape_cast %417 : vector<2x128xf32> to vector<2x1x128xf32>
    %422 = vector.shape_cast %376 : vector<8x128xf32> to vector<1x8x128xf32>
    %423 = vector.broadcast %421 : vector<2x1x128xf32> to vector<2x8x128xf32>
    %424 = vector.broadcast %422 : vector<1x8x128xf32> to vector<2x8x128xf32>
    %425 = arith.addf %423, %424 : vector<2x8x128xf32>
    %cst_158 = arith.constant dense<0xFF800000> : vector<2x8xf32>
    %426 = vector.multi_reduction <maximumf>, %425, %cst_158 [2] : vector<2x8x128xf32> to vector<2x8xf32>
    %427 = vector.shape_cast %426 : vector<2x8xf32> to vector<2x8x1xf32>
    %428 = vector.broadcast %427 : vector<2x8x1xf32> to vector<2x8x128xf32>
    %429 = arith.cmpf oeq, %425, %428 : vector<2x8x128xf32>
    %c128_i32_159 = arith.constant 128 : i32
    %430 = vector.broadcast %c128_i32_159 : i32 to vector<2x8x128xi32>
    %431 = arith.select %429, %378, %430 : vector<2x8x128xi1>, vector<2x8x128xi32>
    %cst_160 = arith.constant dense<2147483647> : vector<2x8xi32>
    %432 = vector.multi_reduction <minsi>, %431, %cst_160 [2] : vector<2x8x128xi32> to vector<2x8xi32>
    %433 = arith.index_cast %c1_i32_155 : i32 to index
    %c0_161 = arith.constant 0 : index
    %c0_162 = arith.constant 0 : index
    %434 = vector.load %arg17[%433, %c0_161, %c0_162] : memref<8x2x8xi32, #tpu.memory_space<vmem>>, vector<1x2x8xi32>
    %435 = vector.shape_cast %434 : vector<1x2x8xi32> to vector<2x8xi32>
    %436 = vector.shape_cast %432 : vector<2x8xi32> to vector<1x2x8xi32>
    tpu.vector_store %arg17[%433, %c0_161, %c0_162], %436 {strides = array<i32>} : memref<8x2x8xi32, #tpu.memory_space<vmem>>, vector<1x2x8xi32>,
    %437 = arith.addf %426, %420 : vector<2x8xf32>
    %cst_163 = arith.constant dense<0.000000e+00> : vector<2x128xf32>
    %438 = tpu.matmul %437, %384, %cst_163 {dimension_numbers = #tpu.dot_dimension_numbers<[1], [0], [0], [1], [0, 0, 1, 1], [], []>} : vector<2x8xf32>, vector<8x128xf32>, vector<2x128xf32> -> vector<2x128xf32>
    %439 = vector.broadcast %389 : vector<1x128xf32> to vector<2x128xf32>
    %440 = arith.addf %438, %439 : vector<2x128xf32>
    %c2_i32_164 = arith.constant 2 : i32
    %441 = arith.index_cast %c2_i32_164 : i32 to index
    %c0_165 = arith.constant 0 : index
    %c0_166 = arith.constant 0 : index
    %442 = vector.load %arg16[%441, %c0_165, %c0_166] : memref<8x2x8xf32, #tpu.memory_space<vmem>>, vector<1x2x8xf32>
    %443 = vector.shape_cast %442 : vector<1x2x8xf32> to vector<2x8xf32>
    %444 = vector.shape_cast %440 : vector<2x128xf32> to vector<2x1x128xf32>
    %445 = vector.shape_cast %376 : vector<8x128xf32> to vector<1x8x128xf32>
    %446 = vector.broadcast %444 : vector<2x1x128xf32> to vector<2x8x128xf32>
    %447 = vector.broadcast %445 : vector<1x8x128xf32> to vector<2x8x128xf32>
    %448 = arith.addf %446, %447 : vector<2x8x128xf32>
    %cst_167 = arith.constant dense<0xFF800000> : vector<2x8xf32>
    %449 = vector.multi_reduction <maximumf>, %448, %cst_167 [2] : vector<2x8x128xf32> to vector<2x8xf32>
    %450 = vector.shape_cast %449 : vector<2x8xf32> to vector<2x8x1xf32>
    %451 = vector.broadcast %450 : vector<2x8x1xf32> to vector<2x8x128xf32>
    %452 = arith.cmpf oeq, %448, %451 : vector<2x8x128xf32>
    %c128_i32_168 = arith.constant 128 : i32
    %453 = vector.broadcast %c128_i32_168 : i32 to vector<2x8x128xi32>
    %454 = arith.select %452, %378, %453 : vector<2x8x128xi1>, vector<2x8x128xi32>
    %cst_169 = arith.constant dense<2147483647> : vector<2x8xi32>
    %455 = vector.multi_reduction <minsi>, %454, %cst_169 [2] : vector<2x8x128xi32> to vector<2x8xi32>
    %456 = arith.index_cast %c2_i32_164 : i32 to index
    %c0_170 = arith.constant 0 : index
    %c0_171 = arith.constant 0 : index
    %457 = vector.load %arg17[%456, %c0_170, %c0_171] : memref<8x2x8xi32, #tpu.memory_space<vmem>>, vector<1x2x8xi32>
    %458 = vector.shape_cast %457 : vector<1x2x8xi32> to vector<2x8xi32>
    %459 = vector.shape_cast %455 : vector<2x8xi32> to vector<1x2x8xi32>
    tpu.vector_store %arg17[%456, %c0_170, %c0_171], %459 {strides = array<i32>} : memref<8x2x8xi32, #tpu.memory_space<vmem>>, vector<1x2x8xi32>,
    %460 = arith.addf %449, %443 : vector<2x8xf32>
    %cst_172 = arith.constant dense<0.000000e+00> : vector<2x128xf32>
    %461 = tpu.matmul %460, %384, %cst_172 {dimension_numbers = #tpu.dot_dimension_numbers<[1], [0], [0], [1], [0, 0, 1, 1], [], []>} : vector<2x8xf32>, vector<8x128xf32>, vector<2x128xf32> -> vector<2x128xf32>
    %462 = vector.broadcast %389 : vector<1x128xf32> to vector<2x128xf32>
    %463 = arith.addf %461, %462 : vector<2x128xf32>
    %c3_i32_173 = arith.constant 3 : i32
    %464 = arith.index_cast %c3_i32_173 : i32 to index
    %c0_174 = arith.constant 0 : index
    %c0_175 = arith.constant 0 : index
    %465 = vector.load %arg16[%464, %c0_174, %c0_175] : memref<8x2x8xf32, #tpu.memory_space<vmem>>, vector<1x2x8xf32>
    %466 = vector.shape_cast %465 : vector<1x2x8xf32> to vector<2x8xf32>
    %467 = vector.shape_cast %463 : vector<2x128xf32> to vector<2x1x128xf32>
    %468 = vector.shape_cast %376 : vector<8x128xf32> to vector<1x8x128xf32>
    %469 = vector.broadcast %467 : vector<2x1x128xf32> to vector<2x8x128xf32>
    %470 = vector.broadcast %468 : vector<1x8x128xf32> to vector<2x8x128xf32>
    %471 = arith.addf %469, %470 : vector<2x8x128xf32>
    %cst_176 = arith.constant dense<0xFF800000> : vector<2x8xf32>
    %472 = vector.multi_reduction <maximumf>, %471, %cst_176 [2] : vector<2x8x128xf32> to vector<2x8xf32>
    %473 = vector.shape_cast %472 : vector<2x8xf32> to vector<2x8x1xf32>
    %474 = vector.broadcast %473 : vector<2x8x1xf32> to vector<2x8x128xf32>
    %475 = arith.cmpf oeq, %471, %474 : vector<2x8x128xf32>
    %c128_i32_177 = arith.constant 128 : i32
    %476 = vector.broadcast %c128_i32_177 : i32 to vector<2x8x128xi32>
    %477 = arith.select %475, %378, %476 : vector<2x8x128xi1>, vector<2x8x128xi32>
    %cst_178 = arith.constant dense<2147483647> : vector<2x8xi32>
    %478 = vector.multi_reduction <minsi>, %477, %cst_178 [2] : vector<2x8x128xi32> to vector<2x8xi32>
    %479 = arith.index_cast %c3_i32_173 : i32 to index
    %c0_179 = arith.constant 0 : index
    %c0_180 = arith.constant 0 : index
    %480 = vector.load %arg17[%479, %c0_179, %c0_180] : memref<8x2x8xi32, #tpu.memory_space<vmem>>, vector<1x2x8xi32>
    %481 = vector.shape_cast %480 : vector<1x2x8xi32> to vector<2x8xi32>
    %482 = vector.shape_cast %478 : vector<2x8xi32> to vector<1x2x8xi32>
    tpu.vector_store %arg17[%479, %c0_179, %c0_180], %482 {strides = array<i32>} : memref<8x2x8xi32, #tpu.memory_space<vmem>>, vector<1x2x8xi32>,
    %483 = arith.addf %472, %466 : vector<2x8xf32>
    %cst_181 = arith.constant dense<0.000000e+00> : vector<2x128xf32>
    %484 = tpu.matmul %483, %384, %cst_181 {dimension_numbers = #tpu.dot_dimension_numbers<[1], [0], [0], [1], [0, 0, 1, 1], [], []>} : vector<2x8xf32>, vector<8x128xf32>, vector<2x128xf32> -> vector<2x128xf32>
    %485 = vector.broadcast %389 : vector<1x128xf32> to vector<2x128xf32>
    %486 = arith.addf %484, %485 : vector<2x128xf32>
    %c4_i32_182 = arith.constant 4 : i32
    %487 = arith.index_cast %c4_i32_182 : i32 to index
    %c0_183 = arith.constant 0 : index
    %c0_184 = arith.constant 0 : index
    %488 = vector.load %arg16[%487, %c0_183, %c0_184] : memref<8x2x8xf32, #tpu.memory_space<vmem>>, vector<1x2x8xf32>
    %489 = vector.shape_cast %488 : vector<1x2x8xf32> to vector<2x8xf32>
    %490 = vector.shape_cast %486 : vector<2x128xf32> to vector<2x1x128xf32>
    %491 = vector.shape_cast %376 : vector<8x128xf32> to vector<1x8x128xf32>
    %492 = vector.broadcast %490 : vector<2x1x128xf32> to vector<2x8x128xf32>
    %493 = vector.broadcast %491 : vector<1x8x128xf32> to vector<2x8x128xf32>
    %494 = arith.addf %492, %493 : vector<2x8x128xf32>
    %cst_185 = arith.constant dense<0xFF800000> : vector<2x8xf32>
    %495 = vector.multi_reduction <maximumf>, %494, %cst_185 [2] : vector<2x8x128xf32> to vector<2x8xf32>
    %496 = vector.shape_cast %495 : vector<2x8xf32> to vector<2x8x1xf32>
    %497 = vector.broadcast %496 : vector<2x8x1xf32> to vector<2x8x128xf32>
    %498 = arith.cmpf oeq, %494, %497 : vector<2x8x128xf32>
    %c128_i32_186 = arith.constant 128 : i32
    %499 = vector.broadcast %c128_i32_186 : i32 to vector<2x8x128xi32>
    %500 = arith.select %498, %378, %499 : vector<2x8x128xi1>, vector<2x8x128xi32>
    %cst_187 = arith.constant dense<2147483647> : vector<2x8xi32>
    %501 = vector.multi_reduction <minsi>, %500, %cst_187 [2] : vector<2x8x128xi32> to vector<2x8xi32>
    %502 = arith.index_cast %c4_i32_182 : i32 to index
    %c0_188 = arith.constant 0 : index
    %c0_189 = arith.constant 0 : index
    %503 = vector.load %arg17[%502, %c0_188, %c0_189] : memref<8x2x8xi32, #tpu.memory_space<vmem>>, vector<1x2x8xi32>
    %504 = vector.shape_cast %503 : vector<1x2x8xi32> to vector<2x8xi32>
    %505 = vector.shape_cast %501 : vector<2x8xi32> to vector<1x2x8xi32>
    tpu.vector_store %arg17[%502, %c0_188, %c0_189], %505 {strides = array<i32>} : memref<8x2x8xi32, #tpu.memory_space<vmem>>, vector<1x2x8xi32>,
    %506 = arith.addf %495, %489 : vector<2x8xf32>
    %cst_190 = arith.constant dense<0.000000e+00> : vector<2x128xf32>
    %507 = tpu.matmul %506, %384, %cst_190 {dimension_numbers = #tpu.dot_dimension_numbers<[1], [0], [0], [1], [0, 0, 1, 1], [], []>} : vector<2x8xf32>, vector<8x128xf32>, vector<2x128xf32> -> vector<2x128xf32>
    %508 = vector.broadcast %389 : vector<1x128xf32> to vector<2x128xf32>
    %509 = arith.addf %507, %508 : vector<2x128xf32>
    %c5_i32_191 = arith.constant 5 : i32
    %510 = arith.index_cast %c5_i32_191 : i32 to index
    %c0_192 = arith.constant 0 : index
    %c0_193 = arith.constant 0 : index
    %511 = vector.load %arg16[%510, %c0_192, %c0_193] : memref<8x2x8xf32, #tpu.memory_space<vmem>>, vector<1x2x8xf32>
    %512 = vector.shape_cast %511 : vector<1x2x8xf32> to vector<2x8xf32>
    %513 = vector.shape_cast %509 : vector<2x128xf32> to vector<2x1x128xf32>
    %514 = vector.shape_cast %376 : vector<8x128xf32> to vector<1x8x128xf32>
    %515 = vector.broadcast %513 : vector<2x1x128xf32> to vector<2x8x128xf32>
    %516 = vector.broadcast %514 : vector<1x8x128xf32> to vector<2x8x128xf32>
    %517 = arith.addf %515, %516 : vector<2x8x128xf32>
    %cst_194 = arith.constant dense<0xFF800000> : vector<2x8xf32>
    %518 = vector.multi_reduction <maximumf>, %517, %cst_194 [2] : vector<2x8x128xf32> to vector<2x8xf32>
    %519 = vector.shape_cast %518 : vector<2x8xf32> to vector<2x8x1xf32>
    %520 = vector.broadcast %519 : vector<2x8x1xf32> to vector<2x8x128xf32>
    %521 = arith.cmpf oeq, %517, %520 : vector<2x8x128xf32>
    %c128_i32_195 = arith.constant 128 : i32
    %522 = vector.broadcast %c128_i32_195 : i32 to vector<2x8x128xi32>
    %523 = arith.select %521, %378, %522 : vector<2x8x128xi1>, vector<2x8x128xi32>
    %cst_196 = arith.constant dense<2147483647> : vector<2x8xi32>
    %524 = vector.multi_reduction <minsi>, %523, %cst_196 [2] : vector<2x8x128xi32> to vector<2x8xi32>
    %525 = arith.index_cast %c5_i32_191 : i32 to index
    %c0_197 = arith.constant 0 : index
    %c0_198 = arith.constant 0 : index
    %526 = vector.load %arg17[%525, %c0_197, %c0_198] : memref<8x2x8xi32, #tpu.memory_space<vmem>>, vector<1x2x8xi32>
    %527 = vector.shape_cast %526 : vector<1x2x8xi32> to vector<2x8xi32>
    %528 = vector.shape_cast %524 : vector<2x8xi32> to vector<1x2x8xi32>
    tpu.vector_store %arg17[%525, %c0_197, %c0_198], %528 {strides = array<i32>} : memref<8x2x8xi32, #tpu.memory_space<vmem>>, vector<1x2x8xi32>,
    %529 = arith.addf %518, %512 : vector<2x8xf32>
    %cst_199 = arith.constant dense<0.000000e+00> : vector<2x128xf32>
    %530 = tpu.matmul %529, %384, %cst_199 {dimension_numbers = #tpu.dot_dimension_numbers<[1], [0], [0], [1], [0, 0, 1, 1], [], []>} : vector<2x8xf32>, vector<8x128xf32>, vector<2x128xf32> -> vector<2x128xf32>
    %531 = vector.broadcast %389 : vector<1x128xf32> to vector<2x128xf32>
    %532 = arith.addf %530, %531 : vector<2x128xf32>
    %c6_i32_200 = arith.constant 6 : i32
    %533 = arith.index_cast %c6_i32_200 : i32 to index
    %c0_201 = arith.constant 0 : index
    %c0_202 = arith.constant 0 : index
    %534 = vector.load %arg16[%533, %c0_201, %c0_202] : memref<8x2x8xf32, #tpu.memory_space<vmem>>, vector<1x2x8xf32>
    %535 = vector.shape_cast %534 : vector<1x2x8xf32> to vector<2x8xf32>
    %536 = vector.shape_cast %532 : vector<2x128xf32> to vector<2x1x128xf32>
    %537 = vector.shape_cast %376 : vector<8x128xf32> to vector<1x8x128xf32>
    %538 = vector.broadcast %536 : vector<2x1x128xf32> to vector<2x8x128xf32>
    %539 = vector.broadcast %537 : vector<1x8x128xf32> to vector<2x8x128xf32>
    %540 = arith.addf %538, %539 : vector<2x8x128xf32>
    %cst_203 = arith.constant dense<0xFF800000> : vector<2x8xf32>
    %541 = vector.multi_reduction <maximumf>, %540, %cst_203 [2] : vector<2x8x128xf32> to vector<2x8xf32>
    %542 = vector.shape_cast %541 : vector<2x8xf32> to vector<2x8x1xf32>
    %543 = vector.broadcast %542 : vector<2x8x1xf32> to vector<2x8x128xf32>
    %544 = arith.cmpf oeq, %540, %543 : vector<2x8x128xf32>
    %c128_i32_204 = arith.constant 128 : i32
    %545 = vector.broadcast %c128_i32_204 : i32 to vector<2x8x128xi32>
    %546 = arith.select %544, %378, %545 : vector<2x8x128xi1>, vector<2x8x128xi32>
    %cst_205 = arith.constant dense<2147483647> : vector<2x8xi32>
    %547 = vector.multi_reduction <minsi>, %546, %cst_205 [2] : vector<2x8x128xi32> to vector<2x8xi32>
    %548 = arith.index_cast %c6_i32_200 : i32 to index
    %c0_206 = arith.constant 0 : index
    %c0_207 = arith.constant 0 : index
    %549 = vector.load %arg17[%548, %c0_206, %c0_207] : memref<8x2x8xi32, #tpu.memory_space<vmem>>, vector<1x2x8xi32>
    %550 = vector.shape_cast %549 : vector<1x2x8xi32> to vector<2x8xi32>
    %551 = vector.shape_cast %547 : vector<2x8xi32> to vector<1x2x8xi32>
    tpu.vector_store %arg17[%548, %c0_206, %c0_207], %551 {strides = array<i32>} : memref<8x2x8xi32, #tpu.memory_space<vmem>>, vector<1x2x8xi32>,
    %552 = arith.addf %541, %535 : vector<2x8xf32>
    %cst_208 = arith.constant dense<0.000000e+00> : vector<2x128xf32>
    %553 = tpu.matmul %552, %384, %cst_208 {dimension_numbers = #tpu.dot_dimension_numbers<[1], [0], [0], [1], [0, 0, 1, 1], [], []>} : vector<2x8xf32>, vector<8x128xf32>, vector<2x128xf32> -> vector<2x128xf32>
    %554 = vector.broadcast %389 : vector<1x128xf32> to vector<2x128xf32>
    %555 = arith.addf %553, %554 : vector<2x128xf32>
    %c7_i32_209 = arith.constant 7 : i32
    %556 = arith.index_cast %c7_i32_209 : i32 to index
    %c0_210 = arith.constant 0 : index
    %c0_211 = arith.constant 0 : index
    %557 = vector.load %arg16[%556, %c0_210, %c0_211] : memref<8x2x8xf32, #tpu.memory_space<vmem>>, vector<1x2x8xf32>
    %558 = vector.shape_cast %557 : vector<1x2x8xf32> to vector<2x8xf32>
    %559 = vector.shape_cast %555 : vector<2x128xf32> to vector<2x1x128xf32>
    %560 = vector.shape_cast %376 : vector<8x128xf32> to vector<1x8x128xf32>
    %561 = vector.broadcast %559 : vector<2x1x128xf32> to vector<2x8x128xf32>
    %562 = vector.broadcast %560 : vector<1x8x128xf32> to vector<2x8x128xf32>
    %563 = arith.addf %561, %562 : vector<2x8x128xf32>
    %cst_212 = arith.constant dense<0xFF800000> : vector<2x8xf32>
    %564 = vector.multi_reduction <maximumf>, %563, %cst_212 [2] : vector<2x8x128xf32> to vector<2x8xf32>
    %565 = vector.shape_cast %564 : vector<2x8xf32> to vector<2x8x1xf32>
    %566 = vector.broadcast %565 : vector<2x8x1xf32> to vector<2x8x128xf32>
    %567 = arith.cmpf oeq, %563, %566 : vector<2x8x128xf32>
    %c128_i32_213 = arith.constant 128 : i32
    %568 = vector.broadcast %c128_i32_213 : i32 to vector<2x8x128xi32>
    %569 = arith.select %567, %378, %568 : vector<2x8x128xi1>, vector<2x8x128xi32>
    %cst_214 = arith.constant dense<2147483647> : vector<2x8xi32>
    %570 = vector.multi_reduction <minsi>, %569, %cst_214 [2] : vector<2x8x128xi32> to vector<2x8xi32>
    %571 = arith.index_cast %c7_i32_209 : i32 to index
    %c0_215 = arith.constant 0 : index
    %c0_216 = arith.constant 0 : index
    %572 = vector.load %arg17[%571, %c0_215, %c0_216] : memref<8x2x8xi32, #tpu.memory_space<vmem>>, vector<1x2x8xi32>
    %573 = vector.shape_cast %572 : vector<1x2x8xi32> to vector<2x8xi32>
    %574 = vector.shape_cast %570 : vector<2x8xi32> to vector<1x2x8xi32>
    tpu.vector_store %arg17[%571, %c0_215, %c0_216], %574 {strides = array<i32>} : memref<8x2x8xi32, #tpu.memory_space<vmem>>, vector<1x2x8xi32>,
    %575 = arith.addf %564, %558 : vector<2x8xf32>
    %cst_217 = arith.constant dense<0.000000e+00> : vector<2x128xf32>
    %576 = tpu.matmul %575, %384, %cst_217 {dimension_numbers = #tpu.dot_dimension_numbers<[1], [0], [0], [1], [0, 0, 1, 1], [], []>} : vector<2x8xf32>, vector<8x128xf32>, vector<2x128xf32> -> vector<2x128xf32>
    %577 = vector.broadcast %389 : vector<1x128xf32> to vector<2x128xf32>
    %578 = arith.addf %576, %577 : vector<2x128xf32>
    %c8_i32_218 = arith.constant 8 : i32
    %579 = vector.extract_strided_slice %376 {offsets = [4, 0], sizes = [1, 128], strides = [1, 1]} : vector<8x128xf32> to vector<1x128xf32>
    %580 = vector.broadcast %579 : vector<1x128xf32> to vector<2x128xf32>
    %581 = arith.addf %578, %580 : vector<2x128xf32>
    %cst_219 = arith.constant dense<0xFF800000> : vector<2xf32>
    %582 = vector.multi_reduction <maximumf>, %581, %cst_219 [1] : vector<2x128xf32> to vector<2xf32>
    %583 = vector.shape_cast %582 : vector<2xf32> to vector<2x1xf32>
    %584 = vector.broadcast %583 : vector<2x1xf32> to vector<2x128xf32>
    %585 = arith.cmpf oeq, %581, %584 : vector<2x128xf32>
    %c128_i32_220 = arith.constant 128 : i32
    %586 = vector.broadcast %c128_i32_220 : i32 to vector<2x128xi32>
    %587 = arith.select %585, %377, %586 : vector<2x128xi1>, vector<2x128xi32>
    %cst_221 = arith.constant dense<2147483647> : vector<2xi32>
    %588 = vector.multi_reduction <minsi>, %587, %cst_221 [1] : vector<2x128xi32> to vector<2xi32>
    %589 = vector.shape_cast %588 : vector<2xi32> to vector<2x1xi32>
    %590 = arith.sitofp %589 : vector<2x1xi32> to vector<2x1xf32>
    %c7 = arith.constant 7 : index
    %c0_222 = arith.constant 0 : index
    %c0_223 = arith.constant 0 : index
    %591 = vector.load %arg12[%c7, %c0_222, %c0_223] : memref<8x2x1xf32, #tpu.memory_space<vmem>>, vector<1x2x1xf32>
    %592 = vector.shape_cast %591 : vector<1x2x1xf32> to vector<2x1xf32>
    %593 = vector.shape_cast %590 : vector<2x1xf32> to vector<1x2x1xf32>
    tpu.vector_store %arg12[%c7, %c0_222, %c0_223], %593 {strides = array<i32>} : memref<8x2x1xf32, #tpu.memory_space<vmem>>, vector<1x2x1xf32>,
    %594 = tpu.iota {dimensions = array<i32: 1>} : vector<2x8xi32>
    %c0_i32_224 = arith.constant 0 : i32
    %c7_i32_225 = arith.constant 7 : i32
    %595 = arith.subi %c7_i32_225, %c0_i32_224 : i32
    %596 = arith.index_cast %595 : i32 to index
    %c0_226 = arith.constant 0 : index
    %c0_227 = arith.constant 0 : index
    %597 = vector.load %arg17[%596, %c0_226, %c0_227] : memref<8x2x8xi32, #tpu.memory_space<vmem>>, vector<1x2x8xi32>
    %598 = vector.shape_cast %597 : vector<1x2x8xi32> to vector<2x8xi32>
    %599 = vector.broadcast %589 : vector<2x1xi32> to vector<2x8xi32>
    %600 = arith.cmpi eq, %594, %599 : vector<2x8xi32>
    %c0_i32_228 = arith.constant 0 : i32
    %601 = vector.broadcast %c0_i32_228 : i32 to vector<2x8xi32>
    %602 = arith.select %600, %598, %601 : vector<2x8xi1>, vector<2x8xi32>
    %cst_229 = arith.constant dense<0> : vector<2xi32>
    %603 = vector.multi_reduction <add>, %602, %cst_229 [1] : vector<2x8xi32> to vector<2xi32>
    %604 = vector.shape_cast %603 : vector<2xi32> to vector<2x1xi32>
    %605 = arith.sitofp %604 : vector<2x1xi32> to vector<2x1xf32>
    %c1_i32_230 = arith.constant 1 : i32
    %606 = arith.subi %595, %c1_i32_230 : i32
    %607 = arith.index_cast %606 : i32 to index
    %c0_231 = arith.constant 0 : index
    %c0_232 = arith.constant 0 : index
    %608 = vector.load %arg12[%607, %c0_231, %c0_232] : memref<8x2x1xf32, #tpu.memory_space<vmem>>, vector<1x2x1xf32>
    %609 = vector.shape_cast %608 : vector<1x2x1xf32> to vector<2x1xf32>
    %610 = vector.shape_cast %605 : vector<2x1xf32> to vector<1x2x1xf32>
    tpu.vector_store %arg12[%607, %c0_231, %c0_232], %610 {strides = array<i32>} : memref<8x2x1xf32, #tpu.memory_space<vmem>>, vector<1x2x1xf32>,
    %c1_i32_233 = arith.constant 1 : i32
    %c7_i32_234 = arith.constant 7 : i32
    %611 = arith.subi %c7_i32_234, %c1_i32_233 : i32
    %612 = arith.index_cast %611 : i32 to index
    %c0_235 = arith.constant 0 : index
    %c0_236 = arith.constant 0 : index
    %613 = vector.load %arg17[%612, %c0_235, %c0_236] : memref<8x2x8xi32, #tpu.memory_space<vmem>>, vector<1x2x8xi32>
    %614 = vector.shape_cast %613 : vector<1x2x8xi32> to vector<2x8xi32>
    %615 = vector.broadcast %604 : vector<2x1xi32> to vector<2x8xi32>
    %616 = arith.cmpi eq, %594, %615 : vector<2x8xi32>
    %c0_i32_237 = arith.constant 0 : i32
    %617 = vector.broadcast %c0_i32_237 : i32 to vector<2x8xi32>
    %618 = arith.select %616, %614, %617 : vector<2x8xi1>, vector<2x8xi32>
    %cst_238 = arith.constant dense<0> : vector<2xi32>
    %619 = vector.multi_reduction <add>, %618, %cst_238 [1] : vector<2x8xi32> to vector<2xi32>
    %620 = vector.shape_cast %619 : vector<2xi32> to vector<2x1xi32>
    %621 = arith.sitofp %620 : vector<2x1xi32> to vector<2x1xf32>
    %c1_i32_239 = arith.constant 1 : i32
    %622 = arith.subi %611, %c1_i32_239 : i32
    %623 = arith.index_cast %622 : i32 to index
    %c0_240 = arith.constant 0 : index
    %c0_241 = arith.constant 0 : index
    %624 = vector.load %arg12[%623, %c0_240, %c0_241] : memref<8x2x1xf32, #tpu.memory_space<vmem>>, vector<1x2x1xf32>
    %625 = vector.shape_cast %624 : vector<1x2x1xf32> to vector<2x1xf32>
    %626 = vector.shape_cast %621 : vector<2x1xf32> to vector<1x2x1xf32>
    tpu.vector_store %arg12[%623, %c0_240, %c0_241], %626 {strides = array<i32>} : memref<8x2x1xf32, #tpu.memory_space<vmem>>, vector<1x2x1xf32>,
    %c2_i32_242 = arith.constant 2 : i32
    %c7_i32_243 = arith.constant 7 : i32
    %627 = arith.subi %c7_i32_243, %c2_i32_242 : i32
    %628 = arith.index_cast %627 : i32 to index
    %c0_244 = arith.constant 0 : index
    %c0_245 = arith.constant 0 : index
    %629 = vector.load %arg17[%628, %c0_244, %c0_245] : memref<8x2x8xi32, #tpu.memory_space<vmem>>, vector<1x2x8xi32>
    %630 = vector.shape_cast %629 : vector<1x2x8xi32> to vector<2x8xi32>
    %631 = vector.broadcast %620 : vector<2x1xi32> to vector<2x8xi32>
    %632 = arith.cmpi eq, %594, %631 : vector<2x8xi32>
    %c0_i32_246 = arith.constant 0 : i32
    %633 = vector.broadcast %c0_i32_246 : i32 to vector<2x8xi32>
    %634 = arith.select %632, %630, %633 : vector<2x8xi1>, vector<2x8xi32>
    %cst_247 = arith.constant dense<0> : vector<2xi32>
    %635 = vector.multi_reduction <add>, %634, %cst_247 [1] : vector<2x8xi32> to vector<2xi32>
    %636 = vector.shape_cast %635 : vector<2xi32> to vector<2x1xi32>
    %637 = arith.sitofp %636 : vector<2x1xi32> to vector<2x1xf32>
    %c1_i32_248 = arith.constant 1 : i32
    %638 = arith.subi %627, %c1_i32_248 : i32
    %639 = arith.index_cast %638 : i32 to index
    %c0_249 = arith.constant 0 : index
    %c0_250 = arith.constant 0 : index
    %640 = vector.load %arg12[%639, %c0_249, %c0_250] : memref<8x2x1xf32, #tpu.memory_space<vmem>>, vector<1x2x1xf32>
    %641 = vector.shape_cast %640 : vector<1x2x1xf32> to vector<2x1xf32>
    %642 = vector.shape_cast %637 : vector<2x1xf32> to vector<1x2x1xf32>
    tpu.vector_store %arg12[%639, %c0_249, %c0_250], %642 {strides = array<i32>} : memref<8x2x1xf32, #tpu.memory_space<vmem>>, vector<1x2x1xf32>,
    %c3_i32_251 = arith.constant 3 : i32
    %c7_i32_252 = arith.constant 7 : i32
    %643 = arith.subi %c7_i32_252, %c3_i32_251 : i32
    %644 = arith.index_cast %643 : i32 to index
    %c0_253 = arith.constant 0 : index
    %c0_254 = arith.constant 0 : index
    %645 = vector.load %arg17[%644, %c0_253, %c0_254] : memref<8x2x8xi32, #tpu.memory_space<vmem>>, vector<1x2x8xi32>
    %646 = vector.shape_cast %645 : vector<1x2x8xi32> to vector<2x8xi32>
    %647 = vector.broadcast %636 : vector<2x1xi32> to vector<2x8xi32>
    %648 = arith.cmpi eq, %594, %647 : vector<2x8xi32>
    %c0_i32_255 = arith.constant 0 : i32
    %649 = vector.broadcast %c0_i32_255 : i32 to vector<2x8xi32>
    %650 = arith.select %648, %646, %649 : vector<2x8xi1>, vector<2x8xi32>
    %cst_256 = arith.constant dense<0> : vector<2xi32>
    %651 = vector.multi_reduction <add>, %650, %cst_256 [1] : vector<2x8xi32> to vector<2xi32>
    %652 = vector.shape_cast %651 : vector<2xi32> to vector<2x1xi32>
    %653 = arith.sitofp %652 : vector<2x1xi32> to vector<2x1xf32>
    %c1_i32_257 = arith.constant 1 : i32
    %654 = arith.subi %643, %c1_i32_257 : i32
    %655 = arith.index_cast %654 : i32 to index
    %c0_258 = arith.constant 0 : index
    %c0_259 = arith.constant 0 : index
    %656 = vector.load %arg12[%655, %c0_258, %c0_259] : memref<8x2x1xf32, #tpu.memory_space<vmem>>, vector<1x2x1xf32>
    %657 = vector.shape_cast %656 : vector<1x2x1xf32> to vector<2x1xf32>
    %658 = vector.shape_cast %653 : vector<2x1xf32> to vector<1x2x1xf32>
    tpu.vector_store %arg12[%655, %c0_258, %c0_259], %658 {strides = array<i32>} : memref<8x2x1xf32, #tpu.memory_space<vmem>>, vector<1x2x1xf32>,
    %c4_i32_260 = arith.constant 4 : i32
    %c7_i32_261 = arith.constant 7 : i32
    %659 = arith.subi %c7_i32_261, %c4_i32_260 : i32
    %660 = arith.index_cast %659 : i32 to index
    %c0_262 = arith.constant 0 : index
    %c0_263 = arith.constant 0 : index
    %661 = vector.load %arg17[%660, %c0_262, %c0_263] : memref<8x2x8xi32, #tpu.memory_space<vmem>>, vector<1x2x8xi32>
    %662 = vector.shape_cast %661 : vector<1x2x8xi32> to vector<2x8xi32>
    %663 = vector.broadcast %652 : vector<2x1xi32> to vector<2x8xi32>
    %664 = arith.cmpi eq, %594, %663 : vector<2x8xi32>
    %c0_i32_264 = arith.constant 0 : i32
    %665 = vector.broadcast %c0_i32_264 : i32 to vector<2x8xi32>
    %666 = arith.select %664, %662, %665 : vector<2x8xi1>, vector<2x8xi32>
    %cst_265 = arith.constant dense<0> : vector<2xi32>
    %667 = vector.multi_reduction <add>, %666, %cst_265 [1] : vector<2x8xi32> to vector<2xi32>
    %668 = vector.shape_cast %667 : vector<2xi32> to vector<2x1xi32>
    %669 = arith.sitofp %668 : vector<2x1xi32> to vector<2x1xf32>
    %c1_i32_266 = arith.constant 1 : i32
    %670 = arith.subi %659, %c1_i32_266 : i32
    %671 = arith.index_cast %670 : i32 to index
    %c0_267 = arith.constant 0 : index
    %c0_268 = arith.constant 0 : index
    %672 = vector.load %arg12[%671, %c0_267, %c0_268] : memref<8x2x1xf32, #tpu.memory_space<vmem>>, vector<1x2x1xf32>
    %673 = vector.shape_cast %672 : vector<1x2x1xf32> to vector<2x1xf32>
    %674 = vector.shape_cast %669 : vector<2x1xf32> to vector<1x2x1xf32>
    tpu.vector_store %arg12[%671, %c0_267, %c0_268], %674 {strides = array<i32>} : memref<8x2x1xf32, #tpu.memory_space<vmem>>, vector<1x2x1xf32>,
    %c5_i32_269 = arith.constant 5 : i32
    %c7_i32_270 = arith.constant 7 : i32
    %675 = arith.subi %c7_i32_270, %c5_i32_269 : i32
    %676 = arith.index_cast %675 : i32 to index
    %c0_271 = arith.constant 0 : index
    %c0_272 = arith.constant 0 : index
    %677 = vector.load %arg17[%676, %c0_271, %c0_272] : memref<8x2x8xi32, #tpu.memory_space<vmem>>, vector<1x2x8xi32>
    %678 = vector.shape_cast %677 : vector<1x2x8xi32> to vector<2x8xi32>
    %679 = vector.broadcast %668 : vector<2x1xi32> to vector<2x8xi32>
    %680 = arith.cmpi eq, %594, %679 : vector<2x8xi32>
    %c0_i32_273 = arith.constant 0 : i32
    %681 = vector.broadcast %c0_i32_273 : i32 to vector<2x8xi32>
    %682 = arith.select %680, %678, %681 : vector<2x8xi1>, vector<2x8xi32>
    %cst_274 = arith.constant dense<0> : vector<2xi32>
    %683 = vector.multi_reduction <add>, %682, %cst_274 [1] : vector<2x8xi32> to vector<2xi32>
    %684 = vector.shape_cast %683 : vector<2xi32> to vector<2x1xi32>
    %685 = arith.sitofp %684 : vector<2x1xi32> to vector<2x1xf32>
    %c1_i32_275 = arith.constant 1 : i32
    %686 = arith.subi %675, %c1_i32_275 : i32
    %687 = arith.index_cast %686 : i32 to index
    %c0_276 = arith.constant 0 : index
    %c0_277 = arith.constant 0 : index
    %688 = vector.load %arg12[%687, %c0_276, %c0_277] : memref<8x2x1xf32, #tpu.memory_space<vmem>>, vector<1x2x1xf32>
    %689 = vector.shape_cast %688 : vector<1x2x1xf32> to vector<2x1xf32>
    %690 = vector.shape_cast %685 : vector<2x1xf32> to vector<1x2x1xf32>
    tpu.vector_store %arg12[%687, %c0_276, %c0_277], %690 {strides = array<i32>} : memref<8x2x1xf32, #tpu.memory_space<vmem>>, vector<1x2x1xf32>,
    %c6_i32_278 = arith.constant 6 : i32
    %c7_i32_279 = arith.constant 7 : i32
    %691 = arith.subi %c7_i32_279, %c6_i32_278 : i32
    %692 = arith.index_cast %691 : i32 to index
    %c0_280 = arith.constant 0 : index
    %c0_281 = arith.constant 0 : index
    %693 = vector.load %arg17[%692, %c0_280, %c0_281] : memref<8x2x8xi32, #tpu.memory_space<vmem>>, vector<1x2x8xi32>
    %694 = vector.shape_cast %693 : vector<1x2x8xi32> to vector<2x8xi32>
    %695 = vector.broadcast %684 : vector<2x1xi32> to vector<2x8xi32>
    %696 = arith.cmpi eq, %594, %695 : vector<2x8xi32>
    %c0_i32_282 = arith.constant 0 : i32
    %697 = vector.broadcast %c0_i32_282 : i32 to vector<2x8xi32>
    %698 = arith.select %696, %694, %697 : vector<2x8xi1>, vector<2x8xi32>
    %cst_283 = arith.constant dense<0> : vector<2xi32>
    %699 = vector.multi_reduction <add>, %698, %cst_283 [1] : vector<2x8xi32> to vector<2xi32>
    %700 = vector.shape_cast %699 : vector<2xi32> to vector<2x1xi32>
    %701 = arith.sitofp %700 : vector<2x1xi32> to vector<2x1xf32>
    %c1_i32_284 = arith.constant 1 : i32
    %702 = arith.subi %691, %c1_i32_284 : i32
    %703 = arith.index_cast %702 : i32 to index
    %c0_285 = arith.constant 0 : index
    %c0_286 = arith.constant 0 : index
    %704 = vector.load %arg12[%703, %c0_285, %c0_286] : memref<8x2x1xf32, #tpu.memory_space<vmem>>, vector<1x2x1xf32>
    %705 = vector.shape_cast %704 : vector<1x2x1xf32> to vector<2x1xf32>
    %706 = vector.shape_cast %701 : vector<2x1xf32> to vector<1x2x1xf32>
    tpu.vector_store %arg12[%703, %c0_285, %c0_286], %706 {strides = array<i32>} : memref<8x2x1xf32, #tpu.memory_space<vmem>>, vector<1x2x1xf32>,
    %c7_i32_287 = arith.constant 7 : i32
    return
  }
  func.func @transform_0(%arg0: i32) -> (i32, i32, i32) {
    %c0_i32 = arith.constant 0 : i32
    %c0_i32_0 = arith.constant 0 : i32
    %c0_i32_1 = arith.constant 0 : i32
    return %c0_i32, %arg0, %c0_i32_0 : i32, i32, i32
  }
  func.func @transform_1(%arg0: i32) -> (i32, i32, i32) {
    %c0_i32 = arith.constant 0 : i32
    %c0_i32_0 = arith.constant 0 : i32
    %c0_i32_1 = arith.constant 0 : i32
    return %c0_i32, %arg0, %c0_i32_0 : i32, i32, i32
  }
  func.func @transform_2(%arg0: i32) -> (i32, i32) {
    %c0_i32 = arith.constant 0 : i32
    %c0_i32_0 = arith.constant 0 : i32
    %c0_i32_1 = arith.constant 0 : i32
    return %c0_i32, %c0_i32_0 : i32, i32
  }
  func.func @transform_3(%arg0: i32) -> (i32, i32) {
    %c0_i32 = arith.constant 0 : i32
    %c0_i32_0 = arith.constant 0 : i32
    %c0_i32_1 = arith.constant 0 : i32
    return %c0_i32, %c0_i32_0 : i32, i32
  }
  func.func @transform_4(%arg0: i32) -> (i32, i32) {
    %c0_i32 = arith.constant 0 : i32
    %c0_i32_0 = arith.constant 0 : i32
    %c0_i32_1 = arith.constant 0 : i32
    return %c0_i32, %c0_i32_0 : i32, i32
  }
  func.func @transform_5(%arg0: i32) -> (i32, i32) {
    %c0_i32 = arith.constant 0 : i32
    %c0_i32_0 = arith.constant 0 : i32
    %c0_i32_1 = arith.constant 0 : i32
    return %c0_i32, %c0_i32_0 : i32, i32
  }
  func.func @transform_6(%arg0: i32) -> (i32, i32) {
    %c0_i32 = arith.constant 0 : i32
    %c0_i32_0 = arith.constant 0 : i32
    %c0_i32_1 = arith.constant 0 : i32
    return %c0_i32, %c0_i32_0 : i32, i32
  }
  func.func @transform_7(%arg0: i32) -> (i32, i32) {
    %c0_i32 = arith.constant 0 : i32
    %c0_i32_0 = arith.constant 0 : i32
    %c0_i32_1 = arith.constant 0 : i32
    return %c0_i32, %c0_i32_0 : i32, i32
  }
  func.func @transform_8(%arg0: i32) -> (i32, i32) {
    %c0_i32 = arith.constant 0 : i32
    %c0_i32_0 = arith.constant 0 : i32
    %c0_i32_1 = arith.constant 0 : i32
    return %c0_i32, %c0_i32_0 : i32, i32
  }
  func.func @transform_9(%arg0: i32) -> (i32, i32) {
    %c0_i32 = arith.constant 0 : i32
    %c0_i32_0 = arith.constant 0 : i32
    %c0_i32_1 = arith.constant 0 : i32
    return %c0_i32, %c0_i32_0 : i32, i32
  }
  func.func @transform_10(%arg0: i32) -> (i32, i32) {
    %c0_i32 = arith.constant 0 : i32
    %c0_i32_0 = arith.constant 0 : i32
    %c0_i32_1 = arith.constant 0 : i32
    return %c0_i32, %c0_i32_0 : i32, i32
  }
  func.func @transform_11(%arg0: i32) -> (i32, i32, i32) {
    %c0_i32 = arith.constant 0 : i32
    %c0_i32_0 = arith.constant 0 : i32
    %c0_i32_1 = arith.constant 0 : i32
    return %c0_i32, %arg0, %c0_i32_0 : i32, i32, i32
  }
}

</mosaic_0001>

<llo_original>
// kernel: bilstm_crf_forward.1
$region0: #{bilstm_crf_forward.1}
  #allocation0 [shape = 'u32[]', space=smem, size = 0x4, offset = 0x4, fixed_abs, tag = 'smem constant byte address 0x4 - core index']
  #allocation1 [shape = 'u32[144,128]{1,0:T(1,128)}', space=vmem, size = 0x12000, scoped, tag = 'internal scratch']
  #allocation2 [shape = 'f32[8,2,256]{2,1,0:T(2,128)}', space=vmem, size = 0x4000, scoped, tag = 'scratch operand']
  #allocation3 [shape = 'f32[8,2,32]{2,1,0:T(2,128)}', space=vmem, size = 0x2000, scoped, tag = 'scratch operand']
  #allocation4 [shape = 'f32[8,2,32]{2,1,0:T(2,128)}', space=vmem, size = 0x2000, scoped, tag = 'scratch operand']
  #allocation5 [shape = 'f32[8,2,8]{2,1,0:T(2,128)}', space=vmem, size = 0x2000, scoped, tag = 'scratch operand']
  #allocation6 [shape = 's32[8,2,8]{2,1,0:T(2,128)}', space=vmem, size = 0x2000, scoped, tag = 'scratch operand']
  %s0 = inlined_call_operand.vmem [shape: f32[8,2,32], index: 0, kind: input, shape index: {}]
  %s1 = inlined_call_operand.vmem [shape: f32[8,2,32], index: 1, kind: input, shape index: {}]
  %s2 = inlined_call_operand.vmem [shape: f32[32,128], index: 2, kind: input, shape index: {}]
  %s3 = inlined_call_operand.vmem [shape: f32[32,128], index: 3, kind: input, shape index: {}]
  %s4 = inlined_call_operand.vmem [shape: f32[1,128], index: 4, kind: input, shape index: {}]
  %s5 = inlined_call_operand.vmem [shape: f32[1,128], index: 5, kind: input, shape index: {}]
  %s6 = inlined_call_operand.vmem [shape: f32[64,256], index: 6, kind: input, shape index: {}]
  %s7 = inlined_call_operand.vmem [shape: f32[32,8], index: 7, kind: input, shape index: {}]
  %s8 = inlined_call_operand.vmem [shape: f32[32,8], index: 8, kind: input, shape index: {}]
  %s9 = inlined_call_operand.vmem [shape: f32[1,8], index: 9, kind: input, shape index: {}]
  %s10 = inlined_call_operand.vmem [shape: f32[8,128], index: 10, kind: input, shape index: {}]
  %s11 = inlined_call_operand.vmem [shape: f32[8,2,1], index: 11, kind: output, shape index: {}]
  %s12 = sld [smem:[#allocation0]]
  $region54: #{bilstm_crf_forward.1} parent=0
    _
  %s14 = ssub.s32 1, %s12
  %s15 = scalar_select 0, %s14, %s12
  // Predicated region
  $region2: #{bilstm_crf_forward.1} parent=0 // pred_check
    _
  $region3: #{bilstm_crf_forward.1} parent=0 // pred_check_branch
    %17 = sbr.rel (0) target = $region5
  $region4: #{bilstm_crf_forward.1} parent=0 // pred_region
    _
  $region5: #{bilstm_crf_forward.1} parent=0 // pred_fallthru
    _
  // Predicated region
  $region6: #{bilstm_crf_forward.1} parent=0 // pred_check
    _
  $region7: #{bilstm_crf_forward.1} parent=0 // pred_check_branch
    %19 = sbr.rel (0) target = $region9
  $region8: #{bilstm_crf_forward.1} parent=0 // pred_region
    _
  $region9: #{bilstm_crf_forward.1} parent=0 // pred_fallthru
    _
  // Predicated region
  $region10: #{bilstm_crf_forward.1} parent=0 // pred_check
    _
  $region11: #{bilstm_crf_forward.1} parent=0 // pred_check_branch
    %21 = sbr.rel (0) target = $region13
  $region12: #{bilstm_crf_forward.1} parent=0 // pred_region
    _
  $region13: #{bilstm_crf_forward.1} parent=0 // pred_fallthru
    _
  // Predicated region
  $region14: #{bilstm_crf_forward.1} parent=0 // pred_check
    _
  $region15: #{bilstm_crf_forward.1} parent=0 // pred_check_branch
    %23 = sbr.rel (0) target = $region17
  $region16: #{bilstm_crf_forward.1} parent=0 // pred_region
    _
  $region17: #{bilstm_crf_forward.1} parent=0 // pred_fallthru
    _
  // Predicated region
  $region18: #{bilstm_crf_forward.1} parent=0 // pred_check
    _
  $region19: #{bilstm_crf_forward.1} parent=0 // pred_check_branch
    %25 = sbr.rel (0) target = $region21
  $region20: #{bilstm_crf_forward.1} parent=0 // pred_region
    _
  $region21: #{bilstm_crf_forward.1} parent=0 // pred_fallthru
    _
  // Predicated region
  $region22: #{bilstm_crf_forward.1} parent=0 // pred_check
    _
  $region23: #{bilstm_crf_forward.1} parent=0 // pred_check_branch
    %27 = sbr.rel (0) target = $region25
  $region24: #{bilstm_crf_forward.1} parent=0 // pred_region
    _
  $region25: #{bilstm_crf_forward.1} parent=0 // pred_fallthru
    _
  // Predicated region
  $region26: #{bilstm_crf_forward.1} parent=0 // pred_check
    _
  $region27: #{bilstm_crf_forward.1} parent=0 // pred_check_branch
    %29 = sbr.rel (0) target = $region29
  $region28: #{bilstm_crf_forward.1} parent=0 // pred_region
    _
  $region29: #{bilstm_crf_forward.1} parent=0 // pred_fallthru
    _
  // Predicated region
  $region30: #{bilstm_crf_forward.1} parent=0 // pred_check
    _
  $region31: #{bilstm_crf_forward.1} parent=0 // pred_check_branch
    %31 = sbr.rel (0) target = $region33
  $region32: #{bilstm_crf_forward.1} parent=0 // pred_region
    _
  $region33: #{bilstm_crf_forward.1} parent=0 // pred_fallthru
    _
  // Predicated region
  $region34: #{bilstm_crf_forward.1} parent=0 // pred_check
    _
  $region35: #{bilstm_crf_forward.1} parent=0 // pred_check_branch
    %33 = sbr.rel (0) target = $region37
  $region36: #{bilstm_crf_forward.1} parent=0 // pred_region
    _
  $region37: #{bilstm_crf_forward.1} parent=0 // pred_fallthru
    _
  // Predicated region
  $region38: #{bilstm_crf_forward.1} parent=0 // pred_check
    _
  $region39: #{bilstm_crf_forward.1} parent=0 // pred_check_branch
    %35 = sbr.rel (0) target = $region41
  $region40: #{bilstm_crf_forward.1} parent=0 // pred_region
    _
  $region41: #{bilstm_crf_forward.1} parent=0 // pred_fallthru
    _
  // Predicated region
  $region42: #{bilstm_crf_forward.1} parent=0 // pred_check
    _
  $region43: #{bilstm_crf_forward.1} parent=0 // pred_check_branch
    %37 = sbr.rel (0) target = $region45
  $region44: #{bilstm_crf_forward.1} parent=0 // pred_region
    _
  $region45: #{bilstm_crf_forward.1} parent=0 // pred_fallthru
    _
  %v38 = vld [vmem:[%s0] sm:$0x3]
  %v39 = vld [vmem:[%s0 + $0x2] sm:$0x3]
  %v40 = vld [vmem:[%s0 + $0x4] sm:$0x3]
  %v41 = vld [vmem:[%s0 + $0x6] sm:$0x3]
  %v42 = vld [vmem:[%s0 + $0x8] sm:$0x3]
  %v43 = vld [vmem:[%s0 + $0xa] sm:$0x3]
  %v44 = vld [vmem:[%s0 + $0xc] sm:$0x3]
  %v45 = vld [vmem:[%s0 + $0xe] sm:$0x3]
  %v46 = vld [vmem:[%s2] sm:$0xff]
  %v47 = vld [vmem:[%s2 + $0x8] sm:$0xff]
  %v48 = vld [vmem:[%s2 + $0x10] sm:$0xff]
  %v49 = vld [vmem:[%s2 + $0x18] sm:$0xff]
  %v50 = vld [vmem:[%s4] sm:$0x1]
  %v52 = vlaneseq
  %v53 = vshrl.u32 %v52, 7
  %v54 = vsub.s32 0, %v53
  %v55 = vrot.slane %v50, %v54
  %v65 = vcombine.low %v38, %v39
  %v66 = vcombine.low %v40, %v41
  %v68 = vunpack.c.l.s4 1983009808
  %v69 = vunpack.c.0.s8 %v68
  %v70 = vlaneseq
  %v71 = vshrl.u32 %v70, 7
  %v72 = vsub.s32 %v69, %v71
  %v73 = vrot.slane %v65, %v72
  %v75 = vunpack.c.l.s4 1983009808
  %v76 = vunpack.c.0.s8 %v75
  %v77 = vlaneseq
  %v78 = vshrl.u32 %v77, 7
  %v79 = vsub.s32 %v76, %v78
  %v80 = vrot.slane %v66, %v79
  %v81 = vcombine.low %v73, %v80
  %v82 = vcombine.low %v42, %v43
  %v83 = vcombine.low %v44, %v45
  %v85 = vunpack.c.l.s4 1983009808
  %v86 = vunpack.c.0.s8 %v85
  %v87 = vlaneseq
  %v88 = vshrl.u32 %v87, 7
  %v89 = vsub.s32 %v86, %v88
  %v90 = vrot.slane %v82, %v89
  %v92 = vunpack.c.l.s4 1983009808
  %v93 = vunpack.c.0.s8 %v92
  %v94 = vlaneseq
  %v95 = vshrl.u32 %v94, 7
  %v96 = vsub.s32 %v93, %v95
  %v97 = vrot.slane %v83, %v96
  %v98 = vcombine.low %v90, %v97
  %vm99 = vcmask 261120
  %v100 = vsel %vm99, %v81, 0
  %v102 = vsel %vm99, %v98, 0
  %104 = vmatprep.subr.mxu0 0.0
  %105 = vmatpush1.msra.mxu0 0.0
  %106 = vmatprep.subr.mxu0 0.0
  %107 = vmatpush1.msra.mxu0 0.0
  %108 = vmatprep.subr.mxu0 0.0
  %109 = vmatpush1.msra.mxu0 0.0
  %110 = vmatprep.subr.mxu0 0.0
  %111 = vmatpush1.msra.mxu0 0.0
  %112 = vmatprep.subr.mxu0 0.0
  %113 = vmatpush1.msra.mxu0 0.0
  %114 = vmatprep.subr.mxu0 0.0
  %115 = vmatpush1.msra.mxu0 0.0
  %116 = vmatprep.subr.mxu0 0.0
  %117 = vmatpush1.msra.mxu0 0.0
  %118 = vmatprep.subr.mxu0 0.0
  %119 = vmatpush1.msra.mxu0 0.0
  %120 = vmatprep.subr.mxu0 0.0
  %121 = vmatpush1.msra.mxu0 0.0
  %122 = vmatprep.subr.mxu0 0.0
  %123 = vmatpush1.msra.mxu0 0.0
  %124 = vmatprep.subr.mxu0 0.0
  %125 = vmatpush1.msra.mxu0 0.0
  %126 = vmatprep.subr.mxu0 0.0
  %127 = vmatpush1.msra.mxu0 0.0
  %128 = vmatprep.subr.mxu0 0.0
  %129 = vmatpush1.msra.mxu0 %v49
  %130 = vmatprep.subr.mxu0 0.0
  %131 = vmatpush1.msra.mxu0 %v48
  %132 = vmatprep.subr.mxu0 0.0
  %133 = vmatpush1.msra.mxu0 %v47
  %134 = vmatprep.subr.mxu0 0.0
  %135 = vmatpush1.msra.mxu0 %v46
  %136 = vmatprep.subr.mxu0 0.0
  %137 = vmatpush2.msra.mxu0 0.0
  %138 = vmatprep.subr.mxu0 0.0
  %139 = vmatpush2.msra.mxu0 0.0
  %140 = vmatprep.subr.mxu0 0.0
  %141 = vmatpush2.msra.mxu0 0.0
  %142 = vmatprep.subr.mxu0 0.0
  %143 = vmatpush2.msra.mxu0 0.0
  %144 = vmatprep.subr.mxu0 0.0
  %145 = vmatpush2.msra.mxu0 0.0
  %146 = vmatprep.subr.mxu0 0.0
  %147 = vmatpush2.msra.mxu0 0.0
  %148 = vmatprep.subr.mxu0 0.0
  %149 = vmatpush2.msra.mxu0 0.0
  %150 = vmatprep.subr.mxu0 0.0
  %151 = vmatpush2.msra.mxu0 0.0
  %152 = vmatprep.subr.mxu0 0.0
  %153 = vmatpush2.msra.mxu0 0.0
  %154 = vmatprep.subr.mxu0 0.0
  %155 = vmatpush2.msra.mxu0 0.0
  %156 = vmatprep.subr.mxu0 0.0
  %157 = vmatpush2.msra.mxu0 0.0
  %158 = vmatprep.subr.mxu0 0.0
  %159 = vmatpush2.msra.mxu0 0.0
  %160 = vmatprep.subr.mxu0 0.0
  %161 = vmatpush2.msra.mxu0 0.0
  %162 = vmatprep.subr.mxu0 0.0
  %163 = vmatpush2.msra.mxu0 0.0
  %164 = vmatprep.subr.mxu0 0.0
  %165 = vmatpush2.msra.mxu0 0.0
  %166 = vmatprep.subr.mxu0 0.0
  %167 = vmatpush2.msra.mxu0 0.0
  %168 = vmatprep.mubr.f32.mxu0 0.0
  %169 = vmatmul.mubr.f32.gmra.mxu0 %v100
  %v170 = vpop.f32.mrf.mxu0
  %v171 = vadd.f32 %v55, %v170
  %v172 = vpop.f32.mrf.mxu0
  %173 = vmatprep.mubr.f32.mxu0 0.0
  %174 = vmatmul.mubr.f32.gmra.mxu0 %v102
  %v175 = vpop.f32.mrf.mxu0
  %v176 = vadd.f32 %v55, %v175
  %v177 = vpop.f32.mrf.mxu0
  %178 = vdwg.mxu0
  %v181 = vcombine.high %v171, %v171
  %v183 = vunpack.c.l.s4 1983009808
  %v184 = vunpack.c.0.s8 %v183
  %v185 = vlaneseq
  %v186 = vshrl.u32 %v185, 7
  %v187 = vsub.s32 %v184, %v186
  %v188 = vrot.slane %v171, %v187
  %v190 = vunpack.c.l.s4 1983009808
  %v191 = vunpack.c.0.s8 %v190
  %v192 = vlaneseq
  %v193 = vshrl.u32 %v192, 7
  %v194 = vsub.s32 %v191, %v193
  %v195 = vrot.slane %v181, %v194
  %v196 = vcombine.high %v188, %v188
  %v197 = vcombine.high %v195, %v195
  %v198 = vcombine.high %v176, %v176
  %v200 = vunpack.c.l.s4 1983009808
  %v201 = vunpack.c.0.s8 %v200
  %v202 = vlaneseq
  %v203 = vshrl.u32 %v202, 7
  %v204 = vsub.s32 %v201, %v203
  %v205 = vrot.slane %v176, %v204
  %v207 = vunpack.c.l.s4 1983009808
  %v208 = vunpack.c.0.s8 %v207
  %v209 = vlaneseq
  %v210 = vshrl.u32 %v209, 7
  %v211 = vsub.s32 %v208, %v210
  %v212 = vrot.slane %v198, %v211
  %v213 = vcombine.high %v205, %v205
  %v214 = vcombine.high %v212, %v212
  %v223 = vld [vmem:[%s1] sm:$0x3]
  %v224 = vld [vmem:[%s1 + $0x2] sm:$0x3]
  %v225 = vld [vmem:[%s1 + $0x4] sm:$0x3]
  %v226 = vld [vmem:[%s1 + $0x6] sm:$0x3]
  %v227 = vld [vmem:[%s1 + $0x8] sm:$0x3]
  %v228 = vld [vmem:[%s1 + $0xa] sm:$0x3]
  %v229 = vld [vmem:[%s1 + $0xc] sm:$0x3]
  %v230 = vld [vmem:[%s1 + $0xe] sm:$0x3]
  %v231 = vld [vmem:[%s3] sm:$0xff]
  %v232 = vld [vmem:[%s3 + $0x8] sm:$0xff]
  %v233 = vld [vmem:[%s3 + $0x10] sm:$0xff]
  %v234 = vld [vmem:[%s3 + $0x18] sm:$0xff]
  %v235 = vld [vmem:[%s5] sm:$0x1]
  %v237 = vlaneseq
  %v238 = vshrl.u32 %v237, 7
  %v239 = vsub.s32 0, %v238
  %v240 = vrot.slane %v235, %v239
  %v250 = vcombine.low %v223, %v224
  %v251 = vcombine.low %v225, %v226
  %v253 = vunpack.c.l.s4 1983009808
  %v254 = vunpack.c.0.s8 %v253
  %v255 = vlaneseq
  %v256 = vshrl.u32 %v255, 7
  %v257 = vsub.s32 %v254, %v256
  %v258 = vrot.slane %v250, %v257
  %v260 = vunpack.c.l.s4 1983009808
  %v261 = vunpack.c.0.s8 %v260
  %v262 = vlaneseq
  %v263 = vshrl.u32 %v262, 7
  %v264 = vsub.s32 %v261, %v263
  %v265 = vrot.slane %v251, %v264
  %v266 = vcombine.low %v258, %v265
  %v267 = vcombine.low %v227, %v228
  %v268 = vcombine.low %v229, %v230
  %v270 = vunpack.c.l.s4 1983009808
  %v271 = vunpack.c.0.s8 %v270
  %v272 = vlaneseq
  %v273 = vshrl.u32 %v272, 7
  %v274 = vsub.s32 %v271, %v273
  %v275 = vrot.slane %v267, %v274
  %v277 = vunpack.c.l.s4 1983009808
  %v278 = vunpack.c.0.s8 %v277
  %v279 = vlaneseq
  %v280 = vshrl.u32 %v279, 7
  %v281 = vsub.s32 %v278, %v280
  %v282 = vrot.slane %v268, %v281
  %v283 = vcombine.low %v275, %v282
  %v284 = vsel %vm99, %v266, 0
  %v286 = vsel %vm99, %v283, 0
  %288 = vmatprep.subr.mxu0 0.0
  %289 = vmatpush1.msra.mxu0 0.0
  %290 = vmatprep.subr.mxu0 0.0
  %291 = vmatpush1.msra.mxu0 0.0
  %292 = vmatprep.subr.mxu0 0.0
  %293 = vmatpush1.msra.mxu0 0.0
  %294 = vmatprep.subr.mxu0 0.0
  %295 = vmatpush1.msra.mxu0 0.0
  %296 = vmatprep.subr.mxu0 0.0
  %297 = vmatpush1.msra.mxu0 0.0
  %298 = vmatprep.subr.mxu0 0.0
  %299 = vmatpush1.msra.mxu0 0.0
  %300 = vmatprep.subr.mxu0 0.0
  %301 = vmatpush1.msra.mxu0 0.0
  %302 = vmatprep.subr.mxu0 0.0
  %303 = vmatpush1.msra.mxu0 0.0
  %304 = vmatprep.subr.mxu0 0.0
  %305 = vmatpush1.msra.mxu0 0.0
  %306 = vmatprep.subr.mxu0 0.0
  %307 = vmatpush1.msra.mxu0 0.0
  %308 = vmatprep.subr.mxu0 0.0
  %309 = vmatpush1.msra.mxu0 0.0
  %310 = vmatprep.subr.mxu0 0.0
  %311 = vmatpush1.msra.mxu0 0.0
  %312 = vmatprep.subr.mxu0 0.0
  %313 = vmatpush1.msra.mxu0 %v234
  %314 = vmatprep.subr.mxu0 0.0
  %315 = vmatpush1.msra.mxu0 %v233
  %316 = vmatprep.subr.mxu0 0.0
  %317 = vmatpush1.msra.mxu0 %v232
  %318 = vmatprep.subr.mxu0 0.0
  %319 = vmatpush1.msra.mxu0 %v231
  %320 = vmatprep.subr.mxu0 0.0
  %321 = vmatpush2.msra.mxu0 0.0
  %322 = vmatprep.subr.mxu0 0.0
  %323 = vmatpush2.msra.mxu0 0.0
  %324 = vmatprep.subr.mxu0 0.0
  %325 = vmatpush2.msra.mxu0 0.0
  %326 = vmatprep.subr.mxu0 0.0
  %327 = vmatpush2.msra.mxu0 0.0
  %328 = vmatprep.subr.mxu0 0.0
  %329 = vmatpush2.msra.mxu0 0.0
  %330 = vmatprep.subr.mxu0 0.0
  %331 = vmatpush2.msra.mxu0 0.0
  %332 = vmatprep.subr.mxu0 0.0
  %333 = vmatpush2.msra.mxu0 0.0
  %334 = vmatprep.subr.mxu0 0.0
  %335 = vmatpush2.msra.mxu0 0.0
  %336 = vmatprep.subr.mxu0 0.0
  %337 = vmatpush2.msra.mxu0 0.0
  %338 = vmatprep.subr.mxu0 0.0
  %339 = vmatpush2.msra.mxu0 0.0
  %340 = vmatprep.subr.mxu0 0.0
  %341 = vmatpush2.msra.mxu0 0.0
  %342 = vmatprep.subr.mxu0 0.0
  %343 = vmatpush2.msra.mxu0 0.0
  %344 = vmatprep.subr.mxu0 0.0
  %345 = vmatpush2.msra.mxu0 0.0
  %346 = vmatprep.subr.mxu0 0.0
  %347 = vmatpush2.msra.mxu0 0.0
  %348 = vmatprep.subr.mxu0 0.0
  %349 = vmatpush2.msra.mxu0 0.0
  %350 = vmatprep.subr.mxu0 0.0
  %351 = vmatpush2.msra.mxu0 0.0
  %352 = vmatprep.mubr.f32.mxu0 0.0
  %353 = vmatmul.mubr.f32.gmra.mxu0 %v284
  %v354 = vpop.f32.mrf.mxu0
  %v355 = vadd.f32 %v240, %v354
  %v356 = vpop.f32.mrf.mxu0
  %357 = vmatprep.mubr.f32.mxu0 0.0
  %358 = vmatmul.mubr.f32.gmra.mxu0 %v286
  %v359 = vpop.f32.mrf.mxu0
  %v360 = vadd.f32 %v240, %v359
  %v361 = vpop.f32.mrf.mxu0
  %362 = vdwg.mxu0
  %v365 = vcombine.high %v355, %v355
  %v367 = vunpack.c.l.s4 1983009808
  %v368 = vunpack.c.0.s8 %v367
  %v369 = vlaneseq
  %v370 = vshrl.u32 %v369, 7
  %v371 = vsub.s32 %v368, %v370
  %v372 = vrot.slane %v355, %v371
  %v374 = vunpack.c.l.s4 1983009808
  %v375 = vunpack.c.0.s8 %v374
  %v376 = vlaneseq
  %v377 = vshrl.u32 %v376, 7
  %v378 = vsub.s32 %v375, %v377
  %v379 = vrot.slane %v365, %v378
  %v380 = vcombine.high %v372, %v372
  %v381 = vcombine.high %v379, %v379
  %v382 = vcombine.high %v360, %v360
  %v384 = vunpack.c.l.s4 1983009808
  %v385 = vunpack.c.0.s8 %v384
  %v386 = vlaneseq
  %v387 = vshrl.u32 %v386, 7
  %v388 = vsub.s32 %v385, %v387
  %v389 = vrot.slane %v360, %v388
  %v391 = vunpack.c.l.s4 1983009808
  %v392 = vunpack.c.0.s8 %v391
  %v393 = vlaneseq
  %v394 = vshrl.u32 %v393, 7
  %v395 = vsub.s32 %v392, %v394
  %v396 = vrot.slane %v382, %v395
  %v397 = vcombine.high %v389, %v389
  %v398 = vcombine.high %v396, %v396
  %vm407 = vcmask 254976
  %408 = vst.msk [vmem:[#allocation2] sm:$0x3] %vm407, %v188
  %409 = vst.msk [vmem:[#allocation2 + $0x4] sm:$0x3] %vm407, %v196
  %410 = vst.msk [vmem:[#allocation2 + $0x8] sm:$0x3] %vm407, %v195
  %411 = vst.msk [vmem:[#allocation2 + $0xc] sm:$0x3] %vm407, %v197
  %412 = vst.msk [vmem:[#allocation2 + $0x10] sm:$0x3] %vm407, %v205
  %413 = vst.msk [vmem:[#allocation2 + $0x14] sm:$0x3] %vm407, %v213
  %414 = vst.msk [vmem:[#allocation2 + $0x18] sm:$0x3] %vm407, %v212
  %415 = vst.msk [vmem:[#allocation2 + $0x1c] sm:$0x3] %vm407, %v214
  %416 = vrot.lane.b32.xlu0 %v372, 32
  %v417 = vpop.permute.xlu0 %416
  %418 = vrot.lane.b32.xlu0 %v380, 32
  %v419 = vpop.permute.xlu0 %418
  %420 = vrot.lane.b32.xlu0 %v379, 32
  %v421 = vpop.permute.xlu0 %420
  %422 = vrot.lane.b32.xlu0 %v381, 32
  %v423 = vpop.permute.xlu0 %422
  %424 = vrot.lane.b32.xlu0 %v389, 32
  %v425 = vpop.permute.xlu0 %424
  %426 = vrot.lane.b32.xlu0 %v397, 32
  %v427 = vpop.permute.xlu0 %426
  %428 = vrot.lane.b32.xlu0 %v396, 32
  %v429 = vpop.permute.xlu0 %428
  %430 = vrot.lane.b32.xlu0 %v398, 32
  %v431 = vpop.permute.xlu0 %430
  %vm440 = vcmask 517376
  %441 = vst.msk [vmem:[#allocation2] sm:$0x3] %vm440, %v417
  %442 = vst.msk [vmem:[#allocation2 + $0x4] sm:$0x3] %vm440, %v419
  %443 = vst.msk [vmem:[#allocation2 + $0x8] sm:$0x3] %vm440, %v421
  %444 = vst.msk [vmem:[#allocation2 + $0xc] sm:$0x3] %vm440, %v423
  %445 = vst.msk [vmem:[#allocation2 + $0x10] sm:$0x3] %vm440, %v425
  %446 = vst.msk [vmem:[#allocation2 + $0x14] sm:$0x3] %vm440, %v427
  %447 = vst.msk [vmem:[#allocation2 + $0x18] sm:$0x3] %vm440, %v429
  %448 = vst.msk [vmem:[#allocation2 + $0x1c] sm:$0x3] %vm440, %v431
  %449 = vrot.lane.b32.xlu0 %v188, 32
  %v450 = vpop.permute.xlu0 %449
  %451 = vrot.lane.b32.xlu0 %v196, 32
  %v452 = vpop.permute.xlu0 %451
  %453 = vrot.lane.b32.xlu0 %v195, 32
  %v454 = vpop.permute.xlu0 %453
  %455 = vrot.lane.b32.xlu0 %v197, 32
  %v456 = vpop.permute.xlu0 %455
  %457 = vrot.lane.b32.xlu0 %v205, 32
  %v458 = vpop.permute.xlu0 %457
  %459 = vrot.lane.b32.xlu0 %v213, 32
  %v460 = vpop.permute.xlu0 %459
  %461 = vrot.lane.b32.xlu0 %v212, 32
  %v462 = vpop.permute.xlu0 %461
  %463 = vrot.lane.b32.xlu0 %v214, 32
  %v464 = vpop.permute.xlu0 %463
  %vm473 = vcmask 779776
  %474 = vst.msk [vmem:[#allocation2] sm:$0x3] %vm473, %v450
  %475 = vst.msk [vmem:[#allocation2 + $0x4] sm:$0x3] %vm473, %v452
  %476 = vst.msk [vmem:[#allocation2 + $0x8] sm:$0x3] %vm473, %v454
  %477 = vst.msk [vmem:[#allocation2 + $0xc] sm:$0x3] %vm473, %v456
  %478 = vst.msk [vmem:[#allocation2 + $0x10] sm:$0x3] %vm473, %v458
  %479 = vst.msk [vmem:[#allocation2 + $0x14] sm:$0x3] %vm473, %v460
  %480 = vst.msk [vmem:[#allocation2 + $0x18] sm:$0x3] %vm473, %v462
  %481 = vst.msk [vmem:[#allocation2 + $0x1c] sm:$0x3] %vm473, %v464
  %482 = vrot.lane.b32.xlu0 %v372, 64
  %v483 = vpop.permute.xlu0 %482
  %484 = vrot.lane.b32.xlu0 %v380, 64
  %v485 = vpop.permute.xlu0 %484
  %486 = vrot.lane.b32.xlu0 %v379, 64
  %v487 = vpop.permute.xlu0 %486
  %488 = vrot.lane.b32.xlu0 %v381, 64
  %v489 = vpop.permute.xlu0 %488
  %490 = vrot.lane.b32.xlu0 %v389, 64
  %v491 = vpop.permute.xlu0 %490
  %492 = vrot.lane.b32.xlu0 %v397, 64
  %v493 = vpop.permute.xlu0 %492
  %494 = vrot.lane.b32.xlu0 %v396, 64
  %v495 = vpop.permute.xlu0 %494
  %496 = vrot.lane.b32.xlu0 %v398, 64
  %v497 = vpop.permute.xlu0 %496
  %vm506 = vcmask 1042176
  %507 = vst.msk [vmem:[#allocation2] sm:$0x3] %vm506, %v483
  %508 = vst.msk [vmem:[#allocation2 + $0x4] sm:$0x3] %vm506, %v485
  %509 = vst.msk [vmem:[#allocation2 + $0x8] sm:$0x3] %vm506, %v487
  %510 = vst.msk [vmem:[#allocation2 + $0xc] sm:$0x3] %vm506, %v489
  %511 = vst.msk [vmem:[#allocation2 + $0x10] sm:$0x3] %vm506, %v491
  %512 = vst.msk [vmem:[#allocation2 + $0x14] sm:$0x3] %vm506, %v493
  %513 = vst.msk [vmem:[#allocation2 + $0x18] sm:$0x3] %vm506, %v495
  %514 = vst.msk [vmem:[#allocation2 + $0x1c] sm:$0x3] %vm506, %v497
  %515 = vrot.lane.b32.xlu0 %v188, 64
  %v516 = vpop.permute.xlu0 %515
  %517 = vrot.lane.b32.xlu0 %v196, 64
  %v518 = vpop.permute.xlu0 %517
  %519 = vrot.lane.b32.xlu0 %v195, 64
  %v520 = vpop.permute.xlu0 %519
  %521 = vrot.lane.b32.xlu0 %v197, 64
  %v522 = vpop.permute.xlu0 %521
  %523 = vrot.lane.b32.xlu0 %v205, 64
  %v524 = vpop.permute.xlu0 %523
  %525 = vrot.lane.b32.xlu0 %v213, 64
  %v526 = vpop.permute.xlu0 %525
  %527 = vrot.lane.b32.xlu0 %v212, 64
  %v528 = vpop.permute.xlu0 %527
  %529 = vrot.lane.b32.xlu0 %v214, 64
  %v530 = vpop.permute.xlu0 %529
  %539 = vst.msk [vmem:[#allocation2 + $0x2] sm:$0x3] %vm407, %v516
  %540 = vst.msk [vmem:[#allocation2 + $0x6] sm:$0x3] %vm407, %v518
  %541 = vst.msk [vmem:[#allocation2 + $0xa] sm:$0x3] %vm407, %v520
  %542 = vst.msk [vmem:[#allocation2 + $0xe] sm:$0x3] %vm407, %v522
  %543 = vst.msk [vmem:[#allocation2 + $0x12] sm:$0x3] %vm407, %v524
  %544 = vst.msk [vmem:[#allocation2 + $0x16] sm:$0x3] %vm407, %v526
  %545 = vst.msk [vmem:[#allocation2 + $0x1a] sm:$0x3] %vm407, %v528
  %546 = vst.msk [vmem:[#allocation2 + $0x1e] sm:$0x3] %vm407, %v530
  %547 = vrot.lane.b32.xlu0 %v372, 96
  %v548 = vpop.permute.xlu0 %547
  %549 = vrot.lane.b32.xlu0 %v380, 96
  %v550 = vpop.permute.xlu0 %549
  %551 = vrot.lane.b32.xlu0 %v379, 96
  %v552 = vpop.permute.xlu0 %551
  %553 = vrot.lane.b32.xlu0 %v381, 96
  %v554 = vpop.permute.xlu0 %553
  %555 = vrot.lane.b32.xlu0 %v389, 96
  %v556 = vpop.permute.xlu0 %555
  %557 = vrot.lane.b32.xlu0 %v397, 96
  %v558 = vpop.permute.xlu0 %557
  %559 = vrot.lane.b32.xlu0 %v396, 96
  %v560 = vpop.permute.xlu0 %559
  %561 = vrot.lane.b32.xlu0 %v398, 96
  %v562 = vpop.permute.xlu0 %561
  %571 = vst.msk [vmem:[#allocation2 + $0x2] sm:$0x3] %vm440, %v548
  %572 = vst.msk [vmem:[#allocation2 + $0x6] sm:$0x3] %vm440, %v550
  %573 = vst.msk [vmem:[#allocation2 + $0xa] sm:$0x3] %vm440, %v552
  %574 = vst.msk [vmem:[#allocation2 + $0xe] sm:$0x3] %vm440, %v554
  %575 = vst.msk [vmem:[#allocation2 + $0x12] sm:$0x3] %vm440, %v556
  %576 = vst.msk [vmem:[#allocation2 + $0x16] sm:$0x3] %vm440, %v558
  %577 = vst.msk [vmem:[#allocation2 + $0x1a] sm:$0x3] %vm440, %v560
  %578 = vst.msk [vmem:[#allocation2 + $0x1e] sm:$0x3] %vm440, %v562
  %579 = vrot.lane.b32.xlu0 %v188, 96
  %v580 = vpop.permute.xlu0 %579
  %581 = vrot.lane.b32.xlu0 %v196, 96
  %v582 = vpop.permute.xlu0 %581
  %583 = vrot.lane.b32.xlu0 %v195, 96
  %v584 = vpop.permute.xlu0 %583
  %585 = vrot.lane.b32.xlu0 %v197, 96
  %v586 = vpop.permute.xlu0 %585
  %587 = vrot.lane.b32.xlu0 %v205, 96
  %v588 = vpop.permute.xlu0 %587
  %589 = vrot.lane.b32.xlu0 %v213, 96
  %v590 = vpop.permute.xlu0 %589
  %591 = vrot.lane.b32.xlu0 %v212, 96
  %v592 = vpop.permute.xlu0 %591
  %593 = vrot.lane.b32.xlu0 %v214, 96
  %v594 = vpop.permute.xlu0 %593
  %603 = vst.msk [vmem:[#allocation2 + $0x2] sm:$0x3] %vm473, %v580
  %604 = vst.msk [vmem:[#allocation2 + $0x6] sm:$0x3] %vm473, %v582
  %605 = vst.msk [vmem:[#allocation2 + $0xa] sm:$0x3] %vm473, %v584
  %606 = vst.msk [vmem:[#allocation2 + $0xe] sm:$0x3] %vm473, %v586
  %607 = vst.msk [vmem:[#allocation2 + $0x12] sm:$0x3] %vm473, %v588
  %608 = vst.msk [vmem:[#allocation2 + $0x16] sm:$0x3] %vm473, %v590
  %609 = vst.msk [vmem:[#allocation2 + $0x1a] sm:$0x3] %vm473, %v592
  %610 = vst.msk [vmem:[#allocation2 + $0x1e] sm:$0x3] %vm473, %v594
  %611 = vst.msk [vmem:[#allocation2 + $0x2] sm:$0x3] %vm506, %v372
  %612 = vst.msk [vmem:[#allocation2 + $0x6] sm:$0x3] %vm506, %v380
  %613 = vst.msk [vmem:[#allocation2 + $0xa] sm:$0x3] %vm506, %v379
  %614 = vst.msk [vmem:[#allocation2 + $0xe] sm:$0x3] %vm506, %v381
  %615 = vst.msk [vmem:[#allocation2 + $0x12] sm:$0x3] %vm506, %v389
  %616 = vst.msk [vmem:[#allocation2 + $0x16] sm:$0x3] %vm506, %v397
  %617 = vst.msk [vmem:[#allocation2 + $0x1a] sm:$0x3] %vm506, %v396
  %618 = vst.msk [vmem:[#allocation2 + $0x1e] sm:$0x3] %vm506, %v398
  %v619 = vld [vmem:[%s6] sm:$0xff]
  %v620 = vld [vmem:[%s6 + $0x8] sm:$0xff]
  %v621 = vld [vmem:[%s6 + $0x10] sm:$0xff]
  %v622 = vld [vmem:[%s6 + $0x18] sm:$0xff]
  %v623 = vld [vmem:[%s6 + $0x20] sm:$0xff]
  %v624 = vld [vmem:[%s6 + $0x28] sm:$0xff]
  %v625 = vld [vmem:[%s6 + $0x30] sm:$0xff]
  %v626 = vld [vmem:[%s6 + $0x38] sm:$0xff]
  %v627 = vld [vmem:[%s6 + $0x40] sm:$0xff]
  %v628 = vld [vmem:[%s6 + $0x48] sm:$0xff]
  %v629 = vld [vmem:[%s6 + $0x50] sm:$0xff]
  %v630 = vld [vmem:[%s6 + $0x58] sm:$0xff]
  %v631 = vld [vmem:[%s6 + $0x60] sm:$0xff]
  %v632 = vld [vmem:[%s6 + $0x68] sm:$0xff]
  %v633 = vld [vmem:[%s6 + $0x70] sm:$0xff]
  %v634 = vld [vmem:[%s6 + $0x78] sm:$0xff]
  %v635 = vld [vmem:[#allocation2] sm:$0xf]
  %vm636 = vcmask 523264
  %v638 = vsel %vm636, 0.0, 0
  %640 = vmatprep.subr.mxu0 0.0
  %641 = vmatpush1.msra.mxu0 0.0
  %642 = vmatprep.subr.mxu0 0.0
  %643 = vmatpush1.msra.mxu0 0.0
  %644 = vmatprep.subr.mxu0 0.0
  %645 = vmatpush1.msra.mxu0 0.0
  %646 = vmatprep.subr.mxu0 0.0
  %647 = vmatpush1.msra.mxu0 0.0
  %648 = vmatprep.subr.mxu0 0.0
  %649 = vmatpush1.msra.mxu0 0.0
  %650 = vmatprep.subr.mxu0 0.0
  %651 = vmatpush1.msra.mxu0 0.0
  %652 = vmatprep.subr.mxu0 0.0
  %653 = vmatpush1.msra.mxu0 0.0
  %654 = vmatprep.subr.mxu0 0.0
  %655 = vmatpush1.msra.mxu0 0.0
  %656 = vmatprep.subr.mxu0 %v634
  %657 = vmatpush1.msra.mxu0 %v633
  %658 = vmatprep.subr.mxu0 %v632
  %659 = vmatpush1.msra.mxu0 %v631
  %660 = vmatprep.subr.mxu0 %v630
  %661 = vmatpush1.msra.mxu0 %v629
  %662 = vmatprep.subr.mxu0 %v628
  %663 = vmatpush1.msra.mxu0 %v627
  %664 = vmatprep.subr.mxu0 %v626
  %665 = vmatpush1.msra.mxu0 %v625
  %666 = vmatprep.subr.mxu0 %v624
  %667 = vmatpush1.msra.mxu0 %v623
  %668 = vmatprep.subr.mxu0 %v622
  %669 = vmatpush1.msra.mxu0 %v621
  %670 = vmatprep.subr.mxu0 %v620
  %671 = vmatpush1.msra.mxu0 %v619
  %672 = vmatprep.subr.mxu0 0.0
  %673 = vmatpush2.msra.mxu0 0.0
  %674 = vmatprep.subr.mxu0 0.0
  %675 = vmatpush2.msra.mxu0 0.0
  %676 = vmatprep.subr.mxu0 0.0
  %677 = vmatpush2.msra.mxu0 0.0
  %678 = vmatprep.subr.mxu0 0.0
  %679 = vmatpush2.msra.mxu0 0.0
  %680 = vmatprep.subr.mxu0 0.0
  %681 = vmatpush2.msra.mxu0 0.0
  %682 = vmatprep.subr.mxu0 0.0
  %683 = vmatpush2.msra.mxu0 0.0
  %684 = vmatprep.subr.mxu0 0.0
  %685 = vmatpush2.msra.mxu0 0.0
  %686 = vmatprep.subr.mxu0 0.0
  %687 = vmatpush2.msra.mxu0 0.0
  %688 = vmatprep.subr.mxu0 0.0
  %689 = vmatpush2.msra.mxu0 0.0
  %690 = vmatprep.subr.mxu0 0.0
  %691 = vmatpush2.msra.mxu0 0.0
  %692 = vmatprep.subr.mxu0 0.0
  %693 = vmatpush2.msra.mxu0 0.0
  %694 = vmatprep.subr.mxu0 0.0
  %695 = vmatpush2.msra.mxu0 0.0
  %696 = vmatprep.subr.mxu0 0.0
  %697 = vmatpush2.msra.mxu0 0.0
  %698 = vmatprep.subr.mxu0 0.0
  %699 = vmatpush2.msra.mxu0 0.0
  %700 = vmatprep.subr.mxu0 0.0
  %701 = vmatpush2.msra.mxu0 0.0
  %702 = vmatprep.subr.mxu0 0.0
  %703 = vmatpush2.msra.mxu0 0.0
  %704 = vmatprep.mubr.f32.mxu0 0.0
  %705 = vmatmul.mubr.f32.gmra.mxu0 %v638
  %v706 = vpop.f32.mrf.mxu0
  %v707 = vadd.f32 0.0, %v706
  %v708 = vpop.f32.mrf.mxu0
  %v709 = vadd.f32 0.0, %v708
  %710 = vdwg.mxu0
  %v713 = vcombine.low %v707, %v709
  %v715 = vunpack.c.l.s4 1983009808
  %v716 = vunpack.c.0.s8 %v715
  %v717 = vlaneseq
  %v718 = vshrl.u32 %v717, 7
  %v719 = vsub.s32 %v716, %v718
  %v720 = vrot.slane %v713, %v719
  %v722 = vadd.f32 %v635, %v720
  %v723 = vxor.u32 %v722, 2147483648
  %v724 = vmul.f32 %v723, 1.442695
  %v725 = vpow.pop %v724
  %v726 = vadd.f32 %v725, 1.0
  %v727 = vrcp.pop %v726
  %v728 = vmul.f32 1.0, %v727
  %v730 = vrot.slane %v722, 2
  %v732 = vtanh.pop %v730
  %733 = vrot.lane.b32.xlu0 %v722, 64
  %v734 = vpop.permute.xlu0 %733
  %v735 = vrot.slane %v734, 2
  %v737 = vxor.u32 %v735, 2147483648
  %v738 = vmul.f32 %v737, 1.442695
  %v739 = vpow.pop %v738
  %v740 = vadd.f32 %v739, 1.0
  %v741 = vrcp.pop %v740
  %v742 = vmul.f32 1.0, %v741
  %v743 = vmul.f32 %v728, 0.0
  %v744 = vmul.f32 %v728, %v732
  %746 = vrot.lane.b32.xlu0 %v744, 64
  %v747 = vpop.permute.xlu0 %746
  %v749 = vadd.f32 %v743, %v747
  %v750 = vtanh.pop %v749
  %752 = vrot.lane.b32.xlu0 %v750, 64
  %v753 = vpop.permute.xlu0 %752
  %v755 = vmul.f32 %v742, %v753
  %756 = vst.msk [vmem:[#allocation3] sm:$0x3] %vm407, %v755
  %v759 = vunpack.c.l.s4 1983009808
  %v760 = vunpack.c.0.s8 %v759
  %v761 = vlaneseq
  %v762 = vshrl.u32 %v761, 7
  %v763 = vsub.s32 %v760, %v762
  %v764 = vrot.slane %v755, %v763
  %765 = vrot.lane.b32.xlu0 %v764, 96
  %v766 = vpop.permute.xlu0 %765
  %s768 = scalar_lea.vmem [#allocation4], 14
  %769 = vst.msk [vmem:[%s768] sm:$0x3] %vm407, %v766
  %s770 = scalar_lea.vmem [#allocation2], 4
  %v771 = vld [vmem:[%s770] sm:$0xf]
  %v772 = vsel %vm636, %v755, 0
  %774 = vmatprep.subr.mxu0 0.0
  %775 = vmatpush1.msra.mxu0 0.0
  %776 = vmatprep.subr.mxu0 0.0
  %777 = vmatpush1.msra.mxu0 0.0
  %778 = vmatprep.subr.mxu0 0.0
  %779 = vmatpush1.msra.mxu0 0.0
  %780 = vmatprep.subr.mxu0 0.0
  %781 = vmatpush1.msra.mxu0 0.0
  %782 = vmatprep.subr.mxu0 0.0
  %783 = vmatpush1.msra.mxu0 0.0
  %784 = vmatprep.subr.mxu0 0.0
  %785 = vmatpush1.msra.mxu0 0.0
  %786 = vmatprep.subr.mxu0 0.0
  %787 = vmatpush1.msra.mxu0 0.0
  %788 = vmatprep.subr.mxu0 0.0
  %789 = vmatpush1.msra.mxu0 0.0
  %790 = vmatprep.subr.mxu0 %v634
  %791 = vmatpush1.msra.mxu0 %v633
  %792 = vmatprep.subr.mxu0 %v632
  %793 = vmatpush1.msra.mxu0 %v631
  %794 = vmatprep.subr.mxu0 %v630
  %795 = vmatpush1.msra.mxu0 %v629
  %796 = vmatprep.subr.mxu0 %v628
  %797 = vmatpush1.msra.mxu0 %v627
  %798 = vmatprep.subr.mxu0 %v626
  %799 = vmatpush1.msra.mxu0 %v625
  %800 = vmatprep.subr.mxu0 %v624
  %801 = vmatpush1.msra.mxu0 %v623
  %802 = vmatprep.subr.mxu0 %v622
  %803 = vmatpush1.msra.mxu0 %v621
  %804 = vmatprep.subr.mxu0 %v620
  %805 = vmatpush1.msra.mxu0 %v619
  %806 = vmatprep.subr.mxu0 0.0
  %807 = vmatpush2.msra.mxu0 0.0
  %808 = vmatprep.subr.mxu0 0.0
  %809 = vmatpush2.msra.mxu0 0.0
  %810 = vmatprep.subr.mxu0 0.0
  %811 = vmatpush2.msra.mxu0 0.0
  %812 = vmatprep.subr.mxu0 0.0
  %813 = vmatpush2.msra.mxu0 0.0
  %814 = vmatprep.subr.mxu0 0.0
  %815 = vmatpush2.msra.mxu0 0.0
  %816 = vmatprep.subr.mxu0 0.0
  %817 = vmatpush2.msra.mxu0 0.0
  %818 = vmatprep.subr.mxu0 0.0
  %819 = vmatpush2.msra.mxu0 0.0
  %820 = vmatprep.subr.mxu0 0.0
  %821 = vmatpush2.msra.mxu0 0.0
  %822 = vmatprep.subr.mxu0 0.0
  %823 = vmatpush2.msra.mxu0 0.0
  %824 = vmatprep.subr.mxu0 0.0
  %825 = vmatpush2.msra.mxu0 0.0
  %826 = vmatprep.subr.mxu0 0.0
  %827 = vmatpush2.msra.mxu0 0.0
  %828 = vmatprep.subr.mxu0 0.0
  %829 = vmatpush2.msra.mxu0 0.0
  %830 = vmatprep.subr.mxu0 0.0
  %831 = vmatpush2.msra.mxu0 0.0
  %832 = vmatprep.subr.mxu0 0.0
  %833 = vmatpush2.msra.mxu0 0.0
  %834 = vmatprep.subr.mxu0 0.0
  %835 = vmatpush2.msra.mxu0 0.0
  %836 = vmatprep.subr.mxu0 0.0
  %837 = vmatpush2.msra.mxu0 0.0
  %838 = vmatprep.mubr.f32.mxu0 0.0
  %839 = vmatmul.mubr.f32.gmra.mxu0 %v772
  %v840 = vpop.f32.mrf.mxu0
  %v841 = vadd.f32 0.0, %v840
  %v842 = vpop.f32.mrf.mxu0
  %v843 = vadd.f32 0.0, %v842
  %844 = vdwg.mxu0
  %v847 = vcombine.low %v841, %v843
  %v849 = vunpack.c.l.s4 1983009808
  %v850 = vunpack.c.0.s8 %v849
  %v851 = vlaneseq
  %v852 = vshrl.u32 %v851, 7
  %v853 = vsub.s32 %v850, %v852
  %v854 = vrot.slane %v847, %v853
  %v856 = vadd.f32 %v771, %v854
  %v857 = vxor.u32 %v856, 2147483648
  %v858 = vmul.f32 %v857, 1.442695
  %v859 = vpow.pop %v858
  %v860 = vadd.f32 %v859, 1.0
  %v861 = vrcp.pop %v860
  %v862 = vmul.f32 1.0, %v861
  %v864 = vrot.slane %v856, 2
  %v866 = vtanh.pop %v864
  %867 = vrot.lane.b32.xlu0 %v856, 64
  %v868 = vpop.permute.xlu0 %867
  %v869 = vrot.slane %v868, 2
  %v871 = vxor.u32 %v869, 2147483648
  %v872 = vmul.f32 %v871, 1.442695
  %v873 = vpow.pop %v872
  %v874 = vadd.f32 %v873, 1.0
  %v875 = vrcp.pop %v874
  %v876 = vmul.f32 1.0, %v875
  %v877 = vmul.f32 %v862, %v749
  %v878 = vmul.f32 %v862, %v866
  %880 = vrot.lane.b32.xlu0 %v878, 64
  %v881 = vpop.permute.xlu0 %880
  %v883 = vadd.f32 %v877, %v881
  %v884 = vtanh.pop %v883
  %886 = vrot.lane.b32.xlu0 %v884, 64
  %v887 = vpop.permute.xlu0 %886
  %v889 = vmul.f32 %v876, %v887
  %s890 = scalar_lea.vmem [#allocation3], 2
  %891 = vst.msk [vmem:[%s890] sm:$0x3] %vm407, %v889
  %v894 = vunpack.c.l.s4 1983009808
  %v895 = vunpack.c.0.s8 %v894
  %v896 = vlaneseq
  %v897 = vshrl.u32 %v896, 7
  %v898 = vsub.s32 %v895, %v897
  %v899 = vrot.slane %v889, %v898
  %900 = vrot.lane.b32.xlu0 %v899, 96
  %v901 = vpop.permute.xlu0 %900
  %s903 = scalar_lea.vmem [#allocation4], 12
  %904 = vst.msk [vmem:[%s903] sm:$0x3] %vm407, %v901
  %s905 = scalar_lea.vmem [#allocation2], 8
  %v906 = vld [vmem:[%s905] sm:$0xf]
  %v907 = vsel %vm636, %v889, 0
  %909 = vmatprep.subr.mxu0 0.0
  %910 = vmatpush1.msra.mxu0 0.0
  %911 = vmatprep.subr.mxu0 0.0
  %912 = vmatpush1.msra.mxu0 0.0
  %913 = vmatprep.subr.mxu0 0.0
  %914 = vmatpush1.msra.mxu0 0.0
  %915 = vmatprep.subr.mxu0 0.0
  %916 = vmatpush1.msra.mxu0 0.0
  %917 = vmatprep.subr.mxu0 0.0
  %918 = vmatpush1.msra.mxu0 0.0
  %919 = vmatprep.subr.mxu0 0.0
  %920 = vmatpush1.msra.mxu0 0.0
  %921 = vmatprep.subr.mxu0 0.0
  %922 = vmatpush1.msra.mxu0 0.0
  %923 = vmatprep.subr.mxu0 0.0
  %924 = vmatpush1.msra.mxu0 0.0
  %925 = vmatprep.subr.mxu0 %v634
  %926 = vmatpush1.msra.mxu0 %v633
  %927 = vmatprep.subr.mxu0 %v632
  %928 = vmatpush1.msra.mxu0 %v631
  %929 = vmatprep.subr.mxu0 %v630
  %930 = vmatpush1.msra.mxu0 %v629
  %931 = vmatprep.subr.mxu0 %v628
  %932 = vmatpush1.msra.mxu0 %v627
  %933 = vmatprep.subr.mxu0 %v626
  %934 = vmatpush1.msra.mxu0 %v625
  %935 = vmatprep.subr.mxu0 %v624
  %936 = vmatpush1.msra.mxu0 %v623
  %937 = vmatprep.subr.mxu0 %v622
  %938 = vmatpush1.msra.mxu0 %v621
  %939 = vmatprep.subr.mxu0 %v620
  %940 = vmatpush1.msra.mxu0 %v619
  %941 = vmatprep.subr.mxu0 0.0
  %942 = vmatpush2.msra.mxu0 0.0
  %943 = vmatprep.subr.mxu0 0.0
  %944 = vmatpush2.msra.mxu0 0.0
  %945 = vmatprep.subr.mxu0 0.0
  %946 = vmatpush2.msra.mxu0 0.0
  %947 = vmatprep.subr.mxu0 0.0
  %948 = vmatpush2.msra.mxu0 0.0
  %949 = vmatprep.subr.mxu0 0.0
  %950 = vmatpush2.msra.mxu0 0.0
  %951 = vmatprep.subr.mxu0 0.0
  %952 = vmatpush2.msra.mxu0 0.0
  %953 = vmatprep.subr.mxu0 0.0
  %954 = vmatpush2.msra.mxu0 0.0
  %955 = vmatprep.subr.mxu0 0.0
  %956 = vmatpush2.msra.mxu0 0.0
  %957 = vmatprep.subr.mxu0 0.0
  %958 = vmatpush2.msra.mxu0 0.0
  %959 = vmatprep.subr.mxu0 0.0
  %960 = vmatpush2.msra.mxu0 0.0
  %961 = vmatprep.subr.mxu0 0.0
  %962 = vmatpush2.msra.mxu0 0.0
  %963 = vmatprep.subr.mxu0 0.0
  %964 = vmatpush2.msra.mxu0 0.0
  %965 = vmatprep.subr.mxu0 0.0
  %966 = vmatpush2.msra.mxu0 0.0
  %967 = vmatprep.subr.mxu0 0.0
  %968 = vmatpush2.msra.mxu0 0.0
  %969 = vmatprep.subr.mxu0 0.0
  %970 = vmatpush2.msra.mxu0 0.0
  %971 = vmatprep.subr.mxu0 0.0
  %972 = vmatpush2.msra.mxu0 0.0
  %973 = vmatprep.mubr.f32.mxu0 0.0
  %974 = vmatmul.mubr.f32.gmra.mxu0 %v907
  %v975 = vpop.f32.mrf.mxu0
  %v976 = vadd.f32 0.0, %v975
  %v977 = vpop.f32.mrf.mxu0
  %v978 = vadd.f32 0.0, %v977
  %979 = vdwg.mxu0
  %v982 = vcombine.low %v976, %v978
  %v984 = vunpack.c.l.s4 1983009808
  %v985 = vunpack.c.0.s8 %v984
  %v986 = vlaneseq
  %v987 = vshrl.u32 %v986, 7
  %v988 = vsub.s32 %v985, %v987
  %v989 = vrot.slane %v982, %v988
  %v991 = vadd.f32 %v906, %v989
  %v992 = vxor.u32 %v991, 2147483648
  %v993 = vmul.f32 %v992, 1.442695
  %v994 = vpow.pop %v993
  %v995 = vadd.f32 %v994, 1.0
  %v996 = vrcp.pop %v995
  %v997 = vmul.f32 1.0, %v996
  %v999 = vrot.slane %v991, 2
  %v1001 = vtanh.pop %v999
  %1002 = vrot.lane.b32.xlu0 %v991, 64
  %v1003 = vpop.permute.xlu0 %1002
  %v1004 = vrot.slane %v1003, 2
  %v1006 = vxor.u32 %v1004, 2147483648
  %v1007 = vmul.f32 %v1006, 1.442695
  %v1008 = vpow.pop %v1007
  %v1009 = vadd.f32 %v1008, 1.0
  %v1010 = vrcp.pop %v1009
  %v1011 = vmul.f32 1.0, %v1010
  %v1012 = vmul.f32 %v997, %v883
  %v1013 = vmul.f32 %v997, %v1001
  %1015 = vrot.lane.b32.xlu0 %v1013, 64
  %v1016 = vpop.permute.xlu0 %1015
  %v1018 = vadd.f32 %v1012, %v1016
  %v1019 = vtanh.pop %v1018
  %1021 = vrot.lane.b32.xlu0 %v1019, 64
  %v1022 = vpop.permute.xlu0 %1021
  %v1024 = vmul.f32 %v1011, %v1022
  %s1025 = scalar_lea.vmem [#allocation3], 4
  %1026 = vst.msk [vmem:[%s1025] sm:$0x3] %vm407, %v1024
  %v1029 = vunpack.c.l.s4 1983009808
  %v1030 = vunpack.c.0.s8 %v1029
  %v1031 = vlaneseq
  %v1032 = vshrl.u32 %v1031, 7
  %v1033 = vsub.s32 %v1030, %v1032
  %v1034 = vrot.slane %v1024, %v1033
  %1035 = vrot.lane.b32.xlu0 %v1034, 96
  %v1036 = vpop.permute.xlu0 %1035
  %s1038 = scalar_lea.vmem [#allocation4], 10
  %1039 = vst.msk [vmem:[%s1038] sm:$0x3] %vm407, %v1036
  %s1040 = scalar_lea.vmem [#allocation2], 12
  %v1041 = vld [vmem:[%s1040] sm:$0xf]
  %v1042 = vsel %vm636, %v1024, 0
  %1044 = vmatprep.subr.mxu0 0.0
  %1045 = vmatpush1.msra.mxu0 0.0
  %1046 = vmatprep.subr.mxu0 0.0
  %1047 = vmatpush1.msra.mxu0 0.0
  %1048 = vmatprep.subr.mxu0 0.0
  %1049 = vmatpush1.msra.mxu0 0.0
  %1050 = vmatprep.subr.mxu0 0.0
  %1051 = vmatpush1.msra.mxu0 0.0
  %1052 = vmatprep.subr.mxu0 0.0
  %1053 = vmatpush1.msra.mxu0 0.0
  %1054 = vmatprep.subr.mxu0 0.0
  %1055 = vmatpush1.msra.mxu0 0.0
  %1056 = vmatprep.subr.mxu0 0.0
  %1057 = vmatpush1.msra.mxu0 0.0
  %1058 = vmatprep.subr.mxu0 0.0
  %1059 = vmatpush1.msra.mxu0 0.0
  %1060 = vmatprep.subr.mxu0 %v634
  %1061 = vmatpush1.msra.mxu0 %v633
  %1062 = vmatprep.subr.mxu0 %v632
  %1063 = vmatpush1.msra.mxu0 %v631
  %1064 = vmatprep.subr.mxu0 %v630
  %1065 = vmatpush1.msra.mxu0 %v629
  %1066 = vmatprep.subr.mxu0 %v628
  %1067 = vmatpush1.msra.mxu0 %v627
  %1068 = vmatprep.subr.mxu0 %v626
  %1069 = vmatpush1.msra.mxu0 %v625
  %1070 = vmatprep.subr.mxu0 %v624
  %1071 = vmatpush1.msra.mxu0 %v623
  %1072 = vmatprep.subr.mxu0 %v622
  %1073 = vmatpush1.msra.mxu0 %v621
  %1074 = vmatprep.subr.mxu0 %v620
  %1075 = vmatpush1.msra.mxu0 %v619
  %1076 = vmatprep.subr.mxu0 0.0
  %1077 = vmatpush2.msra.mxu0 0.0
  %1078 = vmatprep.subr.mxu0 0.0
  %1079 = vmatpush2.msra.mxu0 0.0
  %1080 = vmatprep.subr.mxu0 0.0
  %1081 = vmatpush2.msra.mxu0 0.0
  %1082 = vmatprep.subr.mxu0 0.0
  %1083 = vmatpush2.msra.mxu0 0.0
  %1084 = vmatprep.subr.mxu0 0.0
  %1085 = vmatpush2.msra.mxu0 0.0
  %1086 = vmatprep.subr.mxu0 0.0
  %1087 = vmatpush2.msra.mxu0 0.0
  %1088 = vmatprep.subr.mxu0 0.0
  %1089 = vmatpush2.msra.mxu0 0.0
  %1090 = vmatprep.subr.mxu0 0.0
  %1091 = vmatpush2.msra.mxu0 0.0
  %1092 = vmatprep.subr.mxu0 0.0
  %1093 = vmatpush2.msra.mxu0 0.0
  %1094 = vmatprep.subr.mxu0 0.0
  %1095 = vmatpush2.msra.mxu0 0.0
  %1096 = vmatprep.subr.mxu0 0.0
  %1097 = vmatpush2.msra.mxu0 0.0
  %1098 = vmatprep.subr.mxu0 0.0
  %1099 = vmatpush2.msra.mxu0 0.0
  %1100 = vmatprep.subr.mxu0 0.0
  %1101 = vmatpush2.msra.mxu0 0.0
  %1102 = vmatprep.subr.mxu0 0.0
  %1103 = vmatpush2.msra.mxu0 0.0
  %1104 = vmatprep.subr.mxu0 0.0
  %1105 = vmatpush2.msra.mxu0 0.0
  %1106 = vmatprep.subr.mxu0 0.0
  %1107 = vmatpush2.msra.mxu0 0.0
  %1108 = vmatprep.mubr.f32.mxu0 0.0
  %1109 = vmatmul.mubr.f32.gmra.mxu0 %v1042
  %v1110 = vpop.f32.mrf.mxu0
  %v1111 = vadd.f32 0.0, %v1110
  %v1112 = vpop.f32.mrf.mxu0
  %v1113 = vadd.f32 0.0, %v1112
  %1114 = vdwg.mxu0
  %v1117 = vcombine.low %v1111, %v1113
  %v1119 = vunpack.c.l.s4 1983009808
  %v1120 = vunpack.c.0.s8 %v1119
  %v1121 = vlaneseq
  %v1122 = vshrl.u32 %v1121, 7
  %v1123 = vsub.s32 %v1120, %v1122
  %v1124 = vrot.slane %v1117, %v1123
  %v1126 = vadd.f32 %v1041, %v1124
  %v1127 = vxor.u32 %v1126, 2147483648
  %v1128 = vmul.f32 %v1127, 1.442695
  %v1129 = vpow.pop %v1128
  %v1130 = vadd.f32 %v1129, 1.0
  %v1131 = vrcp.pop %v1130
  %v1132 = vmul.f32 1.0, %v1131
  %v1134 = vrot.slane %v1126, 2
  %v1136 = vtanh.pop %v1134
  %1137 = vrot.lane.b32.xlu0 %v1126, 64
  %v1138 = vpop.permute.xlu0 %1137
  %v1139 = vrot.slane %v1138, 2
  %v1141 = vxor.u32 %v1139, 2147483648
  %v1142 = vmul.f32 %v1141, 1.442695
  %v1143 = vpow.pop %v1142
  %v1144 = vadd.f32 %v1143, 1.0
  %v1145 = vrcp.pop %v1144
  %v1146 = vmul.f32 1.0, %v1145
  %v1147 = vmul.f32 %v1132, %v1018
  %v1148 = vmul.f32 %v1132, %v1136
  %1150 = vrot.lane.b32.xlu0 %v1148, 64
  %v1151 = vpop.permute.xlu0 %1150
  %v1153 = vadd.f32 %v1147, %v1151
  %v1154 = vtanh.pop %v1153
  %1156 = vrot.lane.b32.xlu0 %v1154, 64
  %v1157 = vpop.permute.xlu0 %1156
  %v1159 = vmul.f32 %v1146, %v1157
  %s1160 = scalar_lea.vmem [#allocation3], 6
  %1161 = vst.msk [vmem:[%s1160] sm:$0x3] %vm407, %v1159
  %v1164 = vunpack.c.l.s4 1983009808
  %v1165 = vunpack.c.0.s8 %v1164
  %v1166 = vlaneseq
  %v1167 = vshrl.u32 %v1166, 7
  %v1168 = vsub.s32 %v1165, %v1167
  %v1169 = vrot.slane %v1159, %v1168
  %1170 = vrot.lane.b32.xlu0 %v1169, 96
  %v1171 = vpop.permute.xlu0 %1170
  %s1173 = scalar_lea.vmem [#allocation4], 8
  %1174 = vst.msk [vmem:[%s1173] sm:$0x3] %vm407, %v1171
  %s1175 = scalar_lea.vmem [#allocation2], 16
  %v1176 = vld [vmem:[%s1175] sm:$0xf]
  %v1177 = vsel %vm636, %v1159, 0
  %1179 = vmatprep.subr.mxu0 0.0
  %1180 = vmatpush1.msra.mxu0 0.0
  %1181 = vmatprep.subr.mxu0 0.0
  %1182 = vmatpush1.msra.mxu0 0.0
  %1183 = vmatprep.subr.mxu0 0.0
  %1184 = vmatpush1.msra.mxu0 0.0
  %1185 = vmatprep.subr.mxu0 0.0
  %1186 = vmatpush1.msra.mxu0 0.0
  %1187 = vmatprep.subr.mxu0 0.0
  %1188 = vmatpush1.msra.mxu0 0.0
  %1189 = vmatprep.subr.mxu0 0.0
  %1190 = vmatpush1.msra.mxu0 0.0
  %1191 = vmatprep.subr.mxu0 0.0
  %1192 = vmatpush1.msra.mxu0 0.0
  %1193 = vmatprep.subr.mxu0 0.0
  %1194 = vmatpush1.msra.mxu0 0.0
  %1195 = vmatprep.subr.mxu0 %v634
  %1196 = vmatpush1.msra.mxu0 %v633
  %1197 = vmatprep.subr.mxu0 %v632
  %1198 = vmatpush1.msra.mxu0 %v631
  %1199 = vmatprep.subr.mxu0 %v630
  %1200 = vmatpush1.msra.mxu0 %v629
  %1201 = vmatprep.subr.mxu0 %v628
  %1202 = vmatpush1.msra.mxu0 %v627
  %1203 = vmatprep.subr.mxu0 %v626
  %1204 = vmatpush1.msra.mxu0 %v625
  %1205 = vmatprep.subr.mxu0 %v624
  %1206 = vmatpush1.msra.mxu0 %v623
  %1207 = vmatprep.subr.mxu0 %v622
  %1208 = vmatpush1.msra.mxu0 %v621
  %1209 = vmatprep.subr.mxu0 %v620
  %1210 = vmatpush1.msra.mxu0 %v619
  %1211 = vmatprep.subr.mxu0 0.0
  %1212 = vmatpush2.msra.mxu0 0.0
  %1213 = vmatprep.subr.mxu0 0.0
  %1214 = vmatpush2.msra.mxu0 0.0
  %1215 = vmatprep.subr.mxu0 0.0
  %1216 = vmatpush2.msra.mxu0 0.0
  %1217 = vmatprep.subr.mxu0 0.0
  %1218 = vmatpush2.msra.mxu0 0.0
  %1219 = vmatprep.subr.mxu0 0.0
  %1220 = vmatpush2.msra.mxu0 0.0
  %1221 = vmatprep.subr.mxu0 0.0
  %1222 = vmatpush2.msra.mxu0 0.0
  %1223 = vmatprep.subr.mxu0 0.0
  %1224 = vmatpush2.msra.mxu0 0.0
  %1225 = vmatprep.subr.mxu0 0.0
  %1226 = vmatpush2.msra.mxu0 0.0
  %1227 = vmatprep.subr.mxu0 0.0
  %1228 = vmatpush2.msra.mxu0 0.0
  %1229 = vmatprep.subr.mxu0 0.0
  %1230 = vmatpush2.msra.mxu0 0.0
  %1231 = vmatprep.subr.mxu0 0.0
  %1232 = vmatpush2.msra.mxu0 0.0
  %1233 = vmatprep.subr.mxu0 0.0
  %1234 = vmatpush2.msra.mxu0 0.0
  %1235 = vmatprep.subr.mxu0 0.0
  %1236 = vmatpush2.msra.mxu0 0.0
  %1237 = vmatprep.subr.mxu0 0.0
  %1238 = vmatpush2.msra.mxu0 0.0
  %1239 = vmatprep.subr.mxu0 0.0
  %1240 = vmatpush2.msra.mxu0 0.0
  %1241 = vmatprep.subr.mxu0 0.0
  %1242 = vmatpush2.msra.mxu0 0.0
  %1243 = vmatprep.mubr.f32.mxu0 0.0
  %1244 = vmatmul.mubr.f32.gmra.mxu0 %v1177
  %v1245 = vpop.f32.mrf.mxu0
  %v1246 = vadd.f32 0.0, %v1245
  %v1247 = vpop.f32.mrf.mxu0
  %v1248 = vadd.f32 0.0, %v1247
  %1249 = vdwg.mxu0
  %v1252 = vcombine.low %v1246, %v1248
  %v1254 = vunpack.c.l.s4 1983009808
  %v1255 = vunpack.c.0.s8 %v1254
  %v1256 = vlaneseq
  %v1257 = vshrl.u32 %v1256, 7
  %v1258 = vsub.s32 %v1255, %v1257
  %v1259 = vrot.slane %v1252, %v1258
  %v1261 = vadd.f32 %v1176, %v1259
  %v1262 = vxor.u32 %v1261, 2147483648
  %v1263 = vmul.f32 %v1262, 1.442695
  %v1264 = vpow.pop %v1263
  %v1265 = vadd.f32 %v1264, 1.0
  %v1266 = vrcp.pop %v1265
  %v1267 = vmul.f32 1.0, %v1266
  %v1269 = vrot.slane %v1261, 2
  %v1271 = vtanh.pop %v1269
  %1272 = vrot.lane.b32.xlu0 %v1261, 64
  %v1273 = vpop.permute.xlu0 %1272
  %v1274 = vrot.slane %v1273, 2
  %v1276 = vxor.u32 %v1274, 2147483648
  %v1277 = vmul.f32 %v1276, 1.442695
  %v1278 = vpow.pop %v1277
  %v1279 = vadd.f32 %v1278, 1.0
  %v1280 = vrcp.pop %v1279
  %v1281 = vmul.f32 1.0, %v1280
  %v1282 = vmul.f32 %v1267, %v1153
  %v1283 = vmul.f32 %v1267, %v1271
  %1285 = vrot.lane.b32.xlu0 %v1283, 64
  %v1286 = vpop.permute.xlu0 %1285
  %v1288 = vadd.f32 %v1282, %v1286
  %v1289 = vtanh.pop %v1288
  %1291 = vrot.lane.b32.xlu0 %v1289, 64
  %v1292 = vpop.permute.xlu0 %1291
  %v1294 = vmul.f32 %v1281, %v1292
  %s1295 = scalar_lea.vmem [#allocation3], 8
  %1296 = vst.msk [vmem:[%s1295] sm:$0x3] %vm407, %v1294
  %v1299 = vunpack.c.l.s4 1983009808
  %v1300 = vunpack.c.0.s8 %v1299
  %v1301 = vlaneseq
  %v1302 = vshrl.u32 %v1301, 7
  %v1303 = vsub.s32 %v1300, %v1302
  %v1304 = vrot.slane %v1294, %v1303
  %1305 = vrot.lane.b32.xlu0 %v1304, 96
  %v1306 = vpop.permute.xlu0 %1305
  %s1308 = scalar_lea.vmem [#allocation4], 6
  %1309 = vst.msk [vmem:[%s1308] sm:$0x3] %vm407, %v1306
  %s1310 = scalar_lea.vmem [#allocation2], 20
  %v1311 = vld [vmem:[%s1310] sm:$0xf]
  %v1312 = vsel %vm636, %v1294, 0
  %1314 = vmatprep.subr.mxu0 0.0
  %1315 = vmatpush1.msra.mxu0 0.0
  %1316 = vmatprep.subr.mxu0 0.0
  %1317 = vmatpush1.msra.mxu0 0.0
  %1318 = vmatprep.subr.mxu0 0.0
  %1319 = vmatpush1.msra.mxu0 0.0
  %1320 = vmatprep.subr.mxu0 0.0
  %1321 = vmatpush1.msra.mxu0 0.0
  %1322 = vmatprep.subr.mxu0 0.0
  %1323 = vmatpush1.msra.mxu0 0.0
  %1324 = vmatprep.subr.mxu0 0.0
  %1325 = vmatpush1.msra.mxu0 0.0
  %1326 = vmatprep.subr.mxu0 0.0
  %1327 = vmatpush1.msra.mxu0 0.0
  %1328 = vmatprep.subr.mxu0 0.0
  %1329 = vmatpush1.msra.mxu0 0.0
  %1330 = vmatprep.subr.mxu0 %v634
  %1331 = vmatpush1.msra.mxu0 %v633
  %1332 = vmatprep.subr.mxu0 %v632
  %1333 = vmatpush1.msra.mxu0 %v631
  %1334 = vmatprep.subr.mxu0 %v630
  %1335 = vmatpush1.msra.mxu0 %v629
  %1336 = vmatprep.subr.mxu0 %v628
  %1337 = vmatpush1.msra.mxu0 %v627
  %1338 = vmatprep.subr.mxu0 %v626
  %1339 = vmatpush1.msra.mxu0 %v625
  %1340 = vmatprep.subr.mxu0 %v624
  %1341 = vmatpush1.msra.mxu0 %v623
  %1342 = vmatprep.subr.mxu0 %v622
  %1343 = vmatpush1.msra.mxu0 %v621
  %1344 = vmatprep.subr.mxu0 %v620
  %1345 = vmatpush1.msra.mxu0 %v619
  %1346 = vmatprep.subr.mxu0 0.0
  %1347 = vmatpush2.msra.mxu0 0.0
  %1348 = vmatprep.subr.mxu0 0.0
  %1349 = vmatpush2.msra.mxu0 0.0
  %1350 = vmatprep.subr.mxu0 0.0
  %1351 = vmatpush2.msra.mxu0 0.0
  %1352 = vmatprep.subr.mxu0 0.0
  %1353 = vmatpush2.msra.mxu0 0.0
  %1354 = vmatprep.subr.mxu0 0.0
  %1355 = vmatpush2.msra.mxu0 0.0
  %1356 = vmatprep.subr.mxu0 0.0
  %1357 = vmatpush2.msra.mxu0 0.0
  %1358 = vmatprep.subr.mxu0 0.0
  %1359 = vmatpush2.msra.mxu0 0.0
  %1360 = vmatprep.subr.mxu0 0.0
  %1361 = vmatpush2.msra.mxu0 0.0
  %1362 = vmatprep.subr.mxu0 0.0
  %1363 = vmatpush2.msra.mxu0 0.0
  %1364 = vmatprep.subr.mxu0 0.0
  %1365 = vmatpush2.msra.mxu0 0.0
  %1366 = vmatprep.subr.mxu0 0.0
  %1367 = vmatpush2.msra.mxu0 0.0
  %1368 = vmatprep.subr.mxu0 0.0
  %1369 = vmatpush2.msra.mxu0 0.0
  %1370 = vmatprep.subr.mxu0 0.0
  %1371 = vmatpush2.msra.mxu0 0.0
  %1372 = vmatprep.subr.mxu0 0.0
  %1373 = vmatpush2.msra.mxu0 0.0
  %1374 = vmatprep.subr.mxu0 0.0
  %1375 = vmatpush2.msra.mxu0 0.0
  %1376 = vmatprep.subr.mxu0 0.0
  %1377 = vmatpush2.msra.mxu0 0.0
  %1378 = vmatprep.mubr.f32.mxu0 0.0
  %1379 = vmatmul.mubr.f32.gmra.mxu0 %v1312
  %v1380 = vpop.f32.mrf.mxu0
  %v1381 = vadd.f32 0.0, %v1380
  %v1382 = vpop.f32.mrf.mxu0
  %v1383 = vadd.f32 0.0, %v1382
  %1384 = vdwg.mxu0
  %v1387 = vcombine.low %v1381, %v1383
  %v1389 = vunpack.c.l.s4 1983009808
  %v1390 = vunpack.c.0.s8 %v1389
  %v1391 = vlaneseq
  %v1392 = vshrl.u32 %v1391, 7
  %v1393 = vsub.s32 %v1390, %v1392
  %v1394 = vrot.slane %v1387, %v1393
  %v1396 = vadd.f32 %v1311, %v1394
  %v1397 = vxor.u32 %v1396, 2147483648
  %v1398 = vmul.f32 %v1397, 1.442695
  %v1399 = vpow.pop %v1398
  %v1400 = vadd.f32 %v1399, 1.0
  %v1401 = vrcp.pop %v1400
  %v1402 = vmul.f32 1.0, %v1401
  %v1404 = vrot.slane %v1396, 2
  %v1406 = vtanh.pop %v1404
  %1407 = vrot.lane.b32.xlu0 %v1396, 64
  %v1408 = vpop.permute.xlu0 %1407
  %v1409 = vrot.slane %v1408, 2
  %v1411 = vxor.u32 %v1409, 2147483648
  %v1412 = vmul.f32 %v1411, 1.442695
  %v1413 = vpow.pop %v1412
  %v1414 = vadd.f32 %v1413, 1.0
  %v1415 = vrcp.pop %v1414
  %v1416 = vmul.f32 1.0, %v1415
  %v1417 = vmul.f32 %v1402, %v1288
  %v1418 = vmul.f32 %v1402, %v1406
  %1420 = vrot.lane.b32.xlu0 %v1418, 64
  %v1421 = vpop.permute.xlu0 %1420
  %v1423 = vadd.f32 %v1417, %v1421
  %v1424 = vtanh.pop %v1423
  %1426 = vrot.lane.b32.xlu0 %v1424, 64
  %v1427 = vpop.permute.xlu0 %1426
  %v1429 = vmul.f32 %v1416, %v1427
  %s1430 = scalar_lea.vmem [#allocation3], 10
  %1431 = vst.msk [vmem:[%s1430] sm:$0x3] %vm407, %v1429
  %v1434 = vunpack.c.l.s4 1983009808
  %v1435 = vunpack.c.0.s8 %v1434
  %v1436 = vlaneseq
  %v1437 = vshrl.u32 %v1436, 7
  %v1438 = vsub.s32 %v1435, %v1437
  %v1439 = vrot.slane %v1429, %v1438
  %1440 = vrot.lane.b32.xlu0 %v1439, 96
  %v1441 = vpop.permute.xlu0 %1440
  %s1443 = scalar_lea.vmem [#allocation4], 4
  %1444 = vst.msk [vmem:[%s1443] sm:$0x3] %vm407, %v1441
  %s1445 = scalar_lea.vmem [#allocation2], 24
  %v1446 = vld [vmem:[%s1445] sm:$0xf]
  %v1447 = vsel %vm636, %v1429, 0
  %1449 = vmatprep.subr.mxu0 0.0
  %1450 = vmatpush1.msra.mxu0 0.0
  %1451 = vmatprep.subr.mxu0 0.0
  %1452 = vmatpush1.msra.mxu0 0.0
  %1453 = vmatprep.subr.mxu0 0.0
  %1454 = vmatpush1.msra.mxu0 0.0
  %1455 = vmatprep.subr.mxu0 0.0
  %1456 = vmatpush1.msra.mxu0 0.0
  %1457 = vmatprep.subr.mxu0 0.0
  %1458 = vmatpush1.msra.mxu0 0.0
  %1459 = vmatprep.subr.mxu0 0.0
  %1460 = vmatpush1.msra.mxu0 0.0
  %1461 = vmatprep.subr.mxu0 0.0
  %1462 = vmatpush1.msra.mxu0 0.0
  %1463 = vmatprep.subr.mxu0 0.0
  %1464 = vmatpush1.msra.mxu0 0.0
  %1465 = vmatprep.subr.mxu0 %v634
  %1466 = vmatpush1.msra.mxu0 %v633
  %1467 = vmatprep.subr.mxu0 %v632
  %1468 = vmatpush1.msra.mxu0 %v631
  %1469 = vmatprep.subr.mxu0 %v630
  %1470 = vmatpush1.msra.mxu0 %v629
  %1471 = vmatprep.subr.mxu0 %v628
  %1472 = vmatpush1.msra.mxu0 %v627
  %1473 = vmatprep.subr.mxu0 %v626
  %1474 = vmatpush1.msra.mxu0 %v625
  %1475 = vmatprep.subr.mxu0 %v624
  %1476 = vmatpush1.msra.mxu0 %v623
  %1477 = vmatprep.subr.mxu0 %v622
  %1478 = vmatpush1.msra.mxu0 %v621
  %1479 = vmatprep.subr.mxu0 %v620
  %1480 = vmatpush1.msra.mxu0 %v619
  %1481 = vmatprep.subr.mxu0 0.0
  %1482 = vmatpush2.msra.mxu0 0.0
  %1483 = vmatprep.subr.mxu0 0.0
  %1484 = vmatpush2.msra.mxu0 0.0
  %1485 = vmatprep.subr.mxu0 0.0
  %1486 = vmatpush2.msra.mxu0 0.0
  %1487 = vmatprep.subr.mxu0 0.0
  %1488 = vmatpush2.msra.mxu0 0.0
  %1489 = vmatprep.subr.mxu0 0.0
  %1490 = vmatpush2.msra.mxu0 0.0
  %1491 = vmatprep.subr.mxu0 0.0
  %1492 = vmatpush2.msra.mxu0 0.0
  %1493 = vmatprep.subr.mxu0 0.0
  %1494 = vmatpush2.msra.mxu0 0.0
  %1495 = vmatprep.subr.mxu0 0.0
  %1496 = vmatpush2.msra.mxu0 0.0
  %1497 = vmatprep.subr.mxu0 0.0
  %1498 = vmatpush2.msra.mxu0 0.0
  %1499 = vmatprep.subr.mxu0 0.0
  %1500 = vmatpush2.msra.mxu0 0.0
  %1501 = vmatprep.subr.mxu0 0.0
  %1502 = vmatpush2.msra.mxu0 0.0
  %1503 = vmatprep.subr.mxu0 0.0
  %1504 = vmatpush2.msra.mxu0 0.0
  %1505 = vmatprep.subr.mxu0 0.0
  %1506 = vmatpush2.msra.mxu0 0.0
  %1507 = vmatprep.subr.mxu0 0.0
  %1508 = vmatpush2.msra.mxu0 0.0
  %1509 = vmatprep.subr.mxu0 0.0
  %1510 = vmatpush2.msra.mxu0 0.0
  %1511 = vmatprep.subr.mxu0 0.0
  %1512 = vmatpush2.msra.mxu0 0.0
  %1513 = vmatprep.mubr.f32.mxu0 0.0
  %1514 = vmatmul.mubr.f32.gmra.mxu0 %v1447
  %v1515 = vpop.f32.mrf.mxu0
  %v1516 = vadd.f32 0.0, %v1515
  %v1517 = vpop.f32.mrf.mxu0
  %v1518 = vadd.f32 0.0, %v1517
  %1519 = vdwg.mxu0
  %v1522 = vcombine.low %v1516, %v1518
  %v1524 = vunpack.c.l.s4 1983009808
  %v1525 = vunpack.c.0.s8 %v1524
  %v1526 = vlaneseq
  %v1527 = vshrl.u32 %v1526, 7
  %v1528 = vsub.s32 %v1525, %v1527
  %v1529 = vrot.slane %v1522, %v1528
  %v1531 = vadd.f32 %v1446, %v1529
  %v1532 = vxor.u32 %v1531, 2147483648
  %v1533 = vmul.f32 %v1532, 1.442695
  %v1534 = vpow.pop %v1533
  %v1535 = vadd.f32 %v1534, 1.0
  %v1536 = vrcp.pop %v1535
  %v1537 = vmul.f32 1.0, %v1536
  %v1539 = vrot.slane %v1531, 2
  %v1541 = vtanh.pop %v1539
  %1542 = vrot.lane.b32.xlu0 %v1531, 64
  %v1543 = vpop.permute.xlu0 %1542
  %v1544 = vrot.slane %v1543, 2
  %v1546 = vxor.u32 %v1544, 2147483648
  %v1547 = vmul.f32 %v1546, 1.442695
  %v1548 = vpow.pop %v1547
  %v1549 = vadd.f32 %v1548, 1.0
  %v1550 = vrcp.pop %v1549
  %v1551 = vmul.f32 1.0, %v1550
  %v1552 = vmul.f32 %v1537, %v1423
  %v1553 = vmul.f32 %v1537, %v1541
  %1555 = vrot.lane.b32.xlu0 %v1553, 64
  %v1556 = vpop.permute.xlu0 %1555
  %v1558 = vadd.f32 %v1552, %v1556
  %v1559 = vtanh.pop %v1558
  %1561 = vrot.lane.b32.xlu0 %v1559, 64
  %v1562 = vpop.permute.xlu0 %1561
  %v1564 = vmul.f32 %v1551, %v1562
  %s1565 = scalar_lea.vmem [#allocation3], 12
  %1566 = vst.msk [vmem:[%s1565] sm:$0x3] %vm407, %v1564
  %v1569 = vunpack.c.l.s4 1983009808
  %v1570 = vunpack.c.0.s8 %v1569
  %v1571 = vlaneseq
  %v1572 = vshrl.u32 %v1571, 7
  %v1573 = vsub.s32 %v1570, %v1572
  %v1574 = vrot.slane %v1564, %v1573
  %1575 = vrot.lane.b32.xlu0 %v1574, 96
  %v1576 = vpop.permute.xlu0 %1575
  %s1578 = scalar_lea.vmem [#allocation4], 2
  %1579 = vst.msk [vmem:[%s1578] sm:$0x3] %vm407, %v1576
  %s1580 = scalar_lea.vmem [#allocation2], 28
  %v1581 = vld [vmem:[%s1580] sm:$0xf]
  %v1582 = vsel %vm636, %v1564, 0
  %1584 = vmatprep.subr.mxu0 0.0
  %1585 = vmatpush1.msra.mxu0 0.0
  %1586 = vmatprep.subr.mxu0 0.0
  %1587 = vmatpush1.msra.mxu0 0.0
  %1588 = vmatprep.subr.mxu0 0.0
  %1589 = vmatpush1.msra.mxu0 0.0
  %1590 = vmatprep.subr.mxu0 0.0
  %1591 = vmatpush1.msra.mxu0 0.0
  %1592 = vmatprep.subr.mxu0 0.0
  %1593 = vmatpush1.msra.mxu0 0.0
  %1594 = vmatprep.subr.mxu0 0.0
  %1595 = vmatpush1.msra.mxu0 0.0
  %1596 = vmatprep.subr.mxu0 0.0
  %1597 = vmatpush1.msra.mxu0 0.0
  %1598 = vmatprep.subr.mxu0 0.0
  %1599 = vmatpush1.msra.mxu0 0.0
  %1600 = vmatprep.subr.mxu0 %v634
  %1601 = vmatpush1.msra.mxu0 %v633
  %1602 = vmatprep.subr.mxu0 %v632
  %1603 = vmatpush1.msra.mxu0 %v631
  %1604 = vmatprep.subr.mxu0 %v630
  %1605 = vmatpush1.msra.mxu0 %v629
  %1606 = vmatprep.subr.mxu0 %v628
  %1607 = vmatpush1.msra.mxu0 %v627
  %1608 = vmatprep.subr.mxu0 %v626
  %1609 = vmatpush1.msra.mxu0 %v625
  %1610 = vmatprep.subr.mxu0 %v624
  %1611 = vmatpush1.msra.mxu0 %v623
  %1612 = vmatprep.subr.mxu0 %v622
  %1613 = vmatpush1.msra.mxu0 %v621
  %1614 = vmatprep.subr.mxu0 %v620
  %1615 = vmatpush1.msra.mxu0 %v619
  %1616 = vmatprep.subr.mxu0 0.0
  %1617 = vmatpush2.msra.mxu0 0.0
  %1618 = vmatprep.subr.mxu0 0.0
  %1619 = vmatpush2.msra.mxu0 0.0
  %1620 = vmatprep.subr.mxu0 0.0
  %1621 = vmatpush2.msra.mxu0 0.0
  %1622 = vmatprep.subr.mxu0 0.0
  %1623 = vmatpush2.msra.mxu0 0.0
  %1624 = vmatprep.subr.mxu0 0.0
  %1625 = vmatpush2.msra.mxu0 0.0
  %1626 = vmatprep.subr.mxu0 0.0
  %1627 = vmatpush2.msra.mxu0 0.0
  %1628 = vmatprep.subr.mxu0 0.0
  %1629 = vmatpush2.msra.mxu0 0.0
  %1630 = vmatprep.subr.mxu0 0.0
  %1631 = vmatpush2.msra.mxu0 0.0
  %1632 = vmatprep.subr.mxu0 0.0
  %1633 = vmatpush2.msra.mxu0 0.0
  %1634 = vmatprep.subr.mxu0 0.0
  %1635 = vmatpush2.msra.mxu0 0.0
  %1636 = vmatprep.subr.mxu0 0.0
  %1637 = vmatpush2.msra.mxu0 0.0
  %1638 = vmatprep.subr.mxu0 0.0
  %1639 = vmatpush2.msra.mxu0 0.0
  %1640 = vmatprep.subr.mxu0 0.0
  %1641 = vmatpush2.msra.mxu0 0.0
  %1642 = vmatprep.subr.mxu0 0.0
  %1643 = vmatpush2.msra.mxu0 0.0
  %1644 = vmatprep.subr.mxu0 0.0
  %1645 = vmatpush2.msra.mxu0 0.0
  %1646 = vmatprep.subr.mxu0 0.0
  %1647 = vmatpush2.msra.mxu0 0.0
  %1648 = vmatprep.mubr.f32.mxu0 0.0
  %1649 = vmatmul.mubr.f32.gmra.mxu0 %v1582
  %v1650 = vpop.f32.mrf.mxu0
  %v1651 = vadd.f32 0.0, %v1650
  %v1652 = vpop.f32.mrf.mxu0
  %v1653 = vadd.f32 0.0, %v1652
  %1654 = vdwg.mxu0
  %v1657 = vcombine.low %v1651, %v1653
  %v1659 = vunpack.c.l.s4 1983009808
  %v1660 = vunpack.c.0.s8 %v1659
  %v1661 = vlaneseq
  %v1662 = vshrl.u32 %v1661, 7
  %v1663 = vsub.s32 %v1660, %v1662
  %v1664 = vrot.slane %v1657, %v1663
  %v1666 = vadd.f32 %v1581, %v1664
  %v1667 = vxor.u32 %v1666, 2147483648
  %v1668 = vmul.f32 %v1667, 1.442695
  %v1669 = vpow.pop %v1668
  %v1670 = vadd.f32 %v1669, 1.0
  %v1671 = vrcp.pop %v1670
  %v1672 = vmul.f32 1.0, %v1671
  %v1674 = vrot.slane %v1666, 2
  %v1676 = vtanh.pop %v1674
  %1677 = vrot.lane.b32.xlu0 %v1666, 64
  %v1678 = vpop.permute.xlu0 %1677
  %v1679 = vrot.slane %v1678, 2
  %v1681 = vxor.u32 %v1679, 2147483648
  %v1682 = vmul.f32 %v1681, 1.442695
  %v1683 = vpow.pop %v1682
  %v1684 = vadd.f32 %v1683, 1.0
  %v1685 = vrcp.pop %v1684
  %v1686 = vmul.f32 1.0, %v1685
  %v1687 = vmul.f32 %v1672, %v1558
  %v1688 = vmul.f32 %v1672, %v1676
  %1690 = vrot.lane.b32.xlu0 %v1688, 64
  %v1691 = vpop.permute.xlu0 %1690
  %v1693 = vadd.f32 %v1687, %v1691
  %v1694 = vtanh.pop %v1693
  %1696 = vrot.lane.b32.xlu0 %v1694, 64
  %v1697 = vpop.permute.xlu0 %1696
  %v1699 = vmul.f32 %v1686, %v1697
  %s1700 = scalar_lea.vmem [#allocation3], 14
  %1701 = vst.msk [vmem:[%s1700] sm:$0x3] %vm407, %v1699
  %v1704 = vunpack.c.l.s4 1983009808
  %v1705 = vunpack.c.0.s8 %v1704
  %v1706 = vlaneseq
  %v1707 = vshrl.u32 %v1706, 7
  %v1708 = vsub.s32 %v1705, %v1707
  %v1709 = vrot.slane %v1699, %v1708
  %1710 = vrot.lane.b32.xlu0 %v1709, 96
  %v1711 = vpop.permute.xlu0 %1710
  %1713 = vst.msk [vmem:[#allocation4] sm:$0x3] %vm407, %v1711
  %v1714 = vld [vmem:[#allocation3] sm:$0x3]
  %v1715 = vld [vmem:[#allocation3 + $0x2] sm:$0x3]
  %v1716 = vld [vmem:[#allocation3 + $0x4] sm:$0x3]
  %v1717 = vld [vmem:[#allocation3 + $0x6] sm:$0x3]
  %v1718 = vld [vmem:[#allocation3 + $0x8] sm:$0x3]
  %v1719 = vld [vmem:[#allocation3 + $0xa] sm:$0x3]
  %v1720 = vld [vmem:[#allocation3 + $0xc] sm:$0x3]
  %v1721 = vld [vmem:[#allocation3 + $0xe] sm:$0x3]
  %v1722 = vld [vmem:[%s7] sm:$0xff]
  %v1723 = vld [vmem:[%s7 + $0x8] sm:$0xff]
  %v1724 = vld [vmem:[%s7 + $0x10] sm:$0xff]
  %v1725 = vld [vmem:[%s7 + $0x18] sm:$0xff]
  %v1726 = vld [vmem:[#allocation4] sm:$0x3]
  %v1727 = vld [vmem:[#allocation4 + $0x2] sm:$0x3]
  %v1728 = vld [vmem:[#allocation4 + $0x4] sm:$0x3]
  %v1729 = vld [vmem:[#allocation4 + $0x6] sm:$0x3]
  %v1730 = vld [vmem:[#allocation4 + $0x8] sm:$0x3]
  %v1731 = vld [vmem:[#allocation4 + $0xa] sm:$0x3]
  %v1732 = vld [vmem:[#allocation4 + $0xc] sm:$0x3]
  %v1733 = vld [vmem:[#allocation4 + $0xe] sm:$0x3]
  %v1734 = vld [vmem:[%s8] sm:$0xff]
  %v1735 = vld [vmem:[%s8 + $0x8] sm:$0xff]
  %v1736 = vld [vmem:[%s8 + $0x10] sm:$0xff]
  %v1737 = vld [vmem:[%s8 + $0x18] sm:$0xff]
  %v1746 = vcombine.low %v1726, %v1727
  %v1747 = vcombine.low %v1728, %v1729
  %v1749 = vunpack.c.l.s4 1983009808
  %v1750 = vunpack.c.0.s8 %v1749
  %v1751 = vlaneseq
  %v1752 = vshrl.u32 %v1751, 7
  %v1753 = vsub.s32 %v1750, %v1752
  %v1754 = vrot.slane %v1746, %v1753
  %v1756 = vunpack.c.l.s4 1983009808
  %v1757 = vunpack.c.0.s8 %v1756
  %v1758 = vlaneseq
  %v1759 = vshrl.u32 %v1758, 7
  %v1760 = vsub.s32 %v1757, %v1759
  %v1761 = vrot.slane %v1747, %v1760
  %v1762 = vcombine.low %v1754, %v1761
  %v1763 = vcombine.low %v1730, %v1731
  %v1764 = vcombine.low %v1732, %v1733
  %v1766 = vunpack.c.l.s4 1983009808
  %v1767 = vunpack.c.0.s8 %v1766
  %v1768 = vlaneseq
  %v1769 = vshrl.u32 %v1768, 7
  %v1770 = vsub.s32 %v1767, %v1769
  %v1771 = vrot.slane %v1763, %v1770
  %v1773 = vunpack.c.l.s4 1983009808
  %v1774 = vunpack.c.0.s8 %v1773
  %v1775 = vlaneseq
  %v1776 = vshrl.u32 %v1775, 7
  %v1777 = vsub.s32 %v1774, %v1776
  %v1778 = vrot.slane %v1764, %v1777
  %v1779 = vcombine.low %v1771, %v1778
  %v1780 = vsel %vm99, %v1762, 0
  %v1782 = vsel %vm99, %v1779, 0
  %1784 = vmatprep.subr.mxu0 0.0
  %1785 = vmatpush1.msra.mxu0 0.0
  %1786 = vmatprep.subr.mxu0 0.0
  %1787 = vmatpush1.msra.mxu0 0.0
  %1788 = vmatprep.subr.mxu0 0.0
  %1789 = vmatpush1.msra.mxu0 0.0
  %1790 = vmatprep.subr.mxu0 0.0
  %1791 = vmatpush1.msra.mxu0 0.0
  %1792 = vmatprep.subr.mxu0 0.0
  %1793 = vmatpush1.msra.mxu0 0.0
  %1794 = vmatprep.subr.mxu0 0.0
  %1795 = vmatpush1.msra.mxu0 0.0
  %1796 = vmatprep.subr.mxu0 0.0
  %1797 = vmatpush1.msra.mxu0 0.0
  %1798 = vmatprep.subr.mxu0 0.0
  %1799 = vmatpush1.msra.mxu0 0.0
  %1800 = vmatprep.subr.mxu0 0.0
  %1801 = vmatpush1.msra.mxu0 0.0
  %1802 = vmatprep.subr.mxu0 0.0
  %1803 = vmatpush1.msra.mxu0 0.0
  %1804 = vmatprep.subr.mxu0 0.0
  %1805 = vmatpush1.msra.mxu0 0.0
  %1806 = vmatprep.subr.mxu0 0.0
  %1807 = vmatpush1.msra.mxu0 0.0
  %1808 = vmatprep.subr.mxu0 0.0
  %1809 = vmatpush1.msra.mxu0 %v1737
  %1810 = vmatprep.subr.mxu0 0.0
  %1811 = vmatpush1.msra.mxu0 %v1736
  %1812 = vmatprep.subr.mxu0 0.0
  %1813 = vmatpush1.msra.mxu0 %v1735
  %1814 = vmatprep.subr.mxu0 0.0
  %1815 = vmatpush1.msra.mxu0 %v1734
  %1816 = vmatprep.subr.mxu0 0.0
  %1817 = vmatpush2.msra.mxu0 0.0
  %1818 = vmatprep.subr.mxu0 0.0
  %1819 = vmatpush2.msra.mxu0 0.0
  %1820 = vmatprep.subr.mxu0 0.0
  %1821 = vmatpush2.msra.mxu0 0.0
  %1822 = vmatprep.subr.mxu0 0.0
  %1823 = vmatpush2.msra.mxu0 0.0
  %1824 = vmatprep.subr.mxu0 0.0
  %1825 = vmatpush2.msra.mxu0 0.0
  %1826 = vmatprep.subr.mxu0 0.0
  %1827 = vmatpush2.msra.mxu0 0.0
  %1828 = vmatprep.subr.mxu0 0.0
  %1829 = vmatpush2.msra.mxu0 0.0
  %1830 = vmatprep.subr.mxu0 0.0
  %1831 = vmatpush2.msra.mxu0 0.0
  %1832 = vmatprep.subr.mxu0 0.0
  %1833 = vmatpush2.msra.mxu0 0.0
  %1834 = vmatprep.subr.mxu0 0.0
  %1835 = vmatpush2.msra.mxu0 0.0
  %1836 = vmatprep.subr.mxu0 0.0
  %1837 = vmatpush2.msra.mxu0 0.0
  %1838 = vmatprep.subr.mxu0 0.0
  %1839 = vmatpush2.msra.mxu0 0.0
  %1840 = vmatprep.subr.mxu0 0.0
  %1841 = vmatpush2.msra.mxu0 0.0
  %1842 = vmatprep.subr.mxu0 0.0
  %1843 = vmatpush2.msra.mxu0 0.0
  %1844 = vmatprep.subr.mxu0 0.0
  %1845 = vmatpush2.msra.mxu0 0.0
  %1846 = vmatprep.subr.mxu0 0.0
  %1847 = vmatpush2.msra.mxu0 0.0
  %1848 = vmatprep.mubr.f32.mxu0 0.0
  %1849 = vmatmul.mubr.f32.gmra.mxu0 %v1780
  %v1850 = vpop.f32.mrf.mxu0
  %v1851 = vadd.f32 0.0, %v1850
  %v1852 = vpop.f32.mrf.mxu0
  %1853 = vmatprep.mubr.f32.mxu0 0.0
  %1854 = vmatmul.mubr.f32.gmra.mxu0 %v1782
  %v1855 = vpop.f32.mrf.mxu0
  %v1856 = vadd.f32 0.0, %v1855
  %v1857 = vpop.f32.mrf.mxu0
  %1858 = vdwg.mxu0
  %v1867 = vcombine.low %v1714, %v1715
  %v1868 = vcombine.low %v1716, %v1717
  %v1870 = vunpack.c.l.s4 1983009808
  %v1871 = vunpack.c.0.s8 %v1870
  %v1872 = vlaneseq
  %v1873 = vshrl.u32 %v1872, 7
  %v1874 = vsub.s32 %v1871, %v1873
  %v1875 = vrot.slane %v1867, %v1874
  %v1877 = vunpack.c.l.s4 1983009808
  %v1878 = vunpack.c.0.s8 %v1877
  %v1879 = vlaneseq
  %v1880 = vshrl.u32 %v1879, 7
  %v1881 = vsub.s32 %v1878, %v1880
  %v1882 = vrot.slane %v1868, %v1881
  %v1883 = vcombine.low %v1875, %v1882
  %v1884 = vcombine.low %v1718, %v1719
  %v1885 = vcombine.low %v1720, %v1721
  %v1887 = vunpack.c.l.s4 1983009808
  %v1888 = vunpack.c.0.s8 %v1887
  %v1889 = vlaneseq
  %v1890 = vshrl.u32 %v1889, 7
  %v1891 = vsub.s32 %v1888, %v1890
  %v1892 = vrot.slane %v1884, %v1891
  %v1894 = vunpack.c.l.s4 1983009808
  %v1895 = vunpack.c.0.s8 %v1894
  %v1896 = vlaneseq
  %v1897 = vshrl.u32 %v1896, 7
  %v1898 = vsub.s32 %v1895, %v1897
  %v1899 = vrot.slane %v1885, %v1898
  %v1900 = vcombine.low %v1892, %v1899
  %v1901 = vsel %vm99, %v1883, 0
  %v1903 = vsel %vm99, %v1900, 0
  %1905 = vmatprep.subr.mxu0 0.0
  %1906 = vmatpush1.msra.mxu0 0.0
  %1907 = vmatprep.subr.mxu0 0.0
  %1908 = vmatpush1.msra.mxu0 0.0
  %1909 = vmatprep.subr.mxu0 0.0
  %1910 = vmatpush1.msra.mxu0 0.0
  %1911 = vmatprep.subr.mxu0 0.0
  %1912 = vmatpush1.msra.mxu0 0.0
  %1913 = vmatprep.subr.mxu0 0.0
  %1914 = vmatpush1.msra.mxu0 0.0
  %1915 = vmatprep.subr.mxu0 0.0
  %1916 = vmatpush1.msra.mxu0 0.0
  %1917 = vmatprep.subr.mxu0 0.0
  %1918 = vmatpush1.msra.mxu0 0.0
  %1919 = vmatprep.subr.mxu0 0.0
  %1920 = vmatpush1.msra.mxu0 0.0
  %1921 = vmatprep.subr.mxu0 0.0
  %1922 = vmatpush1.msra.mxu0 0.0
  %1923 = vmatprep.subr.mxu0 0.0
  %1924 = vmatpush1.msra.mxu0 0.0
  %1925 = vmatprep.subr.mxu0 0.0
  %1926 = vmatpush1.msra.mxu0 0.0
  %1927 = vmatprep.subr.mxu0 0.0
  %1928 = vmatpush1.msra.mxu0 0.0
  %1929 = vmatprep.subr.mxu0 0.0
  %1930 = vmatpush1.msra.mxu0 %v1725
  %1931 = vmatprep.subr.mxu0 0.0
  %1932 = vmatpush1.msra.mxu0 %v1724
  %1933 = vmatprep.subr.mxu0 0.0
  %1934 = vmatpush1.msra.mxu0 %v1723
  %1935 = vmatprep.subr.mxu0 0.0
  %1936 = vmatpush1.msra.mxu0 %v1722
  %1937 = vmatprep.subr.mxu0 0.0
  %1938 = vmatpush2.msra.mxu0 0.0
  %1939 = vmatprep.subr.mxu0 0.0
  %1940 = vmatpush2.msra.mxu0 0.0
  %1941 = vmatprep.subr.mxu0 0.0
  %1942 = vmatpush2.msra.mxu0 0.0
  %1943 = vmatprep.subr.mxu0 0.0
  %1944 = vmatpush2.msra.mxu0 0.0
  %1945 = vmatprep.subr.mxu0 0.0
  %1946 = vmatpush2.msra.mxu0 0.0
  %1947 = vmatprep.subr.mxu0 0.0
  %1948 = vmatpush2.msra.mxu0 0.0
  %1949 = vmatprep.subr.mxu0 0.0
  %1950 = vmatpush2.msra.mxu0 0.0
  %1951 = vmatprep.subr.mxu0 0.0
  %1952 = vmatpush2.msra.mxu0 0.0
  %1953 = vmatprep.subr.mxu0 0.0
  %1954 = vmatpush2.msra.mxu0 0.0
  %1955 = vmatprep.subr.mxu0 0.0
  %1956 = vmatpush2.msra.mxu0 0.0
  %1957 = vmatprep.subr.mxu0 0.0
  %1958 = vmatpush2.msra.mxu0 0.0
  %1959 = vmatprep.subr.mxu0 0.0
  %1960 = vmatpush2.msra.mxu0 0.0
  %1961 = vmatprep.subr.mxu0 0.0
  %1962 = vmatpush2.msra.mxu0 0.0
  %1963 = vmatprep.subr.mxu0 0.0
  %1964 = vmatpush2.msra.mxu0 0.0
  %1965 = vmatprep.subr.mxu0 0.0
  %1966 = vmatpush2.msra.mxu0 0.0
  %1967 = vmatprep.subr.mxu0 0.0
  %1968 = vmatpush2.msra.mxu0 0.0
  %1969 = vmatprep.mubr.f32.mxu0 0.0
  %1970 = vmatmul.mubr.f32.gmra.mxu0 %v1901
  %v1971 = vpop.f32.mrf.mxu0
  %v1972 = vadd.f32 %v1851, %v1971
  %v1973 = vpop.f32.mrf.mxu0
  %1974 = vmatprep.mubr.f32.mxu0 0.0
  %1975 = vmatmul.mubr.f32.gmra.mxu0 %v1903
  %v1976 = vpop.f32.mrf.mxu0
  %v1977 = vadd.f32 %v1856, %v1976
  %v1978 = vpop.f32.mrf.mxu0
  %1979 = vdwg.mxu0
  %v1980 = vld [vmem:[%s9] sm:$0x1]
  %v1982 = vlaneseq
  %v1983 = vshrl.u32 %v1982, 7
  %v1984 = vsub.s32 0, %v1983
  %v1985 = vrot.slane %v1980, %v1984
  %v1987 = vadd.f32 %v1972, %v1985
  %v1988 = vadd.f32 %v1977, %v1985
  %v1991 = vcombine.high %v1987, %v1987
  %v1993 = vunpack.c.l.s4 1983009808
  %v1994 = vunpack.c.0.s8 %v1993
  %v1995 = vlaneseq
  %v1996 = vshrl.u32 %v1995, 7
  %v1997 = vsub.s32 %v1994, %v1996
  %v1998 = vrot.slane %v1987, %v1997
  %v2000 = vunpack.c.l.s4 1983009808
  %v2001 = vunpack.c.0.s8 %v2000
  %v2002 = vlaneseq
  %v2003 = vshrl.u32 %v2002, 7
  %v2004 = vsub.s32 %v2001, %v2003
  %v2005 = vrot.slane %v1991, %v2004
  %v2006 = vcombine.high %v1998, %v1998
  %v2007 = vcombine.high %v2005, %v2005
  %v2008 = vcombine.high %v1988, %v1988
  %v2010 = vunpack.c.l.s4 1983009808
  %v2011 = vunpack.c.0.s8 %v2010
  %v2012 = vlaneseq
  %v2013 = vshrl.u32 %v2012, 7
  %v2014 = vsub.s32 %v2011, %v2013
  %v2015 = vrot.slane %v1988, %v2014
  %v2017 = vunpack.c.l.s4 1983009808
  %v2018 = vunpack.c.0.s8 %v2017
  %v2019 = vlaneseq
  %v2020 = vshrl.u32 %v2019, 7
  %v2021 = vsub.s32 %v2018, %v2020
  %v2022 = vrot.slane %v2008, %v2021
  %v2023 = vcombine.high %v2015, %v2015
  %v2024 = vcombine.high %v2022, %v2022
  %vm2033 = vcmask 58368
  %2034 = vst.msk [vmem:[#allocation5] sm:$0x3] %vm2033, %v1998
  %2035 = vst.msk [vmem:[#allocation5 + $0x2] sm:$0x3] %vm2033, %v2006
  %2036 = vst.msk [vmem:[#allocation5 + $0x4] sm:$0x3] %vm2033, %v2005
  %2037 = vst.msk [vmem:[#allocation5 + $0x6] sm:$0x3] %vm2033, %v2007
  %2038 = vst.msk [vmem:[#allocation5 + $0x8] sm:$0x3] %vm2033, %v2015
  %2039 = vst.msk [vmem:[#allocation5 + $0xa] sm:$0x3] %vm2033, %v2023
  %2040 = vst.msk [vmem:[#allocation5 + $0xc] sm:$0x3] %vm2033, %v2022
  %2041 = vst.msk [vmem:[#allocation5 + $0xe] sm:$0x3] %vm2033, %v2024
  %v2042 = vld [vmem:[%s10] sm:$0xff]
  %v2043 = vlaneseq
  %v2044 = vand.u32 %v2043, 127
  %v2045 = vlaneseq
  %v2046 = vshrl.u32 %v2045, 7
  %vm2047 = vcmp.eq.s32.totalorder %v2046, %v2044
  %v2048 = vsel %vm2047, 1, 0
  %v2049 = vcvt.s32.f32 %v2048
  %vm2050 = vcmp.lt.s32.totalorder %v2044, 8
  %v2051 = vsel %vm2050, 0.0, -10000.0
  %vm2052 = vcmp.eq.s32.totalorder %v2044, 3
  %v2053 = vsel %vm2052, 0.0, -10000.0
  %v2054 = vld [vmem:[#allocation5] sm:$0x3]
  %v2057 = vunpack.c.l.s4 1966171168
  %v2058 = vunpack.c.0.s8 %v2057
  %v2059 = vlaneseq
  %v2060 = vshrl.u32 %v2059, 7
  %v2061 = vsub.s32 %v2058, %v2060
  %v2062 = vrot.slane %v2053, %v2061
  %v2063 = vcombine.high %v2062, %v2062
  %v2065 = vunpack.c.l.s4 1966171168
  %v2066 = vunpack.c.0.s8 %v2065
  %v2067 = vlaneseq
  %v2068 = vshrl.u32 %v2067, 7
  %v2069 = vsub.s32 %v2066, %v2068
  %v2070 = vrot.slane %v2062, %v2069
  %v2072 = vunpack.c.l.s4 1966171168
  %v2073 = vunpack.c.0.s8 %v2072
  %v2074 = vlaneseq
  %v2075 = vshrl.u32 %v2074, 7
  %v2076 = vsub.s32 %v2073, %v2075
  %v2077 = vrot.slane %v2063, %v2076
  %v2078 = vlaneseq
  %v2079 = vshrl.u32 %v2078, 7
  %v2080 = vsub.s32 0, %v2079
  %v2081 = vrot.slane %v2070, %v2080
  %v2082 = vlaneseq
  %v2083 = vshrl.u32 %v2082, 7
  %v2084 = vsub.s32 0, %v2083
  %v2085 = vrot.slane %v2077, %v2084
  %v2088 = vadd.f32 %v2081, %v2042
  %v2089 = vadd.f32 %v2085, %v2042
  %2090 = vmax.xlane.f32.xlu0 %v2088
  %v2091 = vpop.xlane.xlu0 %2090
  %2092 = vmax.xlane.f32.xlu0 %v2089
  %v2093 = vpop.xlane.xlu0 %2092
  %vm2094 = vcmp.eq.f32.partialorder %v2088, %v2091
  %vm2095 = vcmp.eq.f32.partialorder %v2089, %v2093
  %v2096 = vsel %vm2094, %v2044, 128
  %v2097 = vsel %vm2095, %v2044, 128
  %v2098 = vand.u32 %v2096, 65535
  %v2099 = vshra.s32 %v2096, 16
  %v2100 = vcvt.s32.f32 %v2098
  %v2101 = vcvt.s32.f32 %v2099
  %2102 = vmin.xlane.f32.xlu0 %v2101
  %v2103 = vpop.xlane.xlu0 %2102
  %vm2104 = vcmp.eq.f32.partialorder %v2101, %v2103
  %v2105 = vsel %vm2104, %v2100, inf
  %2106 = vmin.xlane.f32.xlu0 %v2105
  %v2107 = vpop.xlane.xlu0 %2106
  %v2108 = vcvt.f32.s32 %v2107
  %v2109 = vcvt.f32.s32 %v2103
  %v2110 = vshll.u32 %v2109, 16
  %v2111 = vadd.s32 %v2110, %v2108
  %v2112 = vand.u32 %v2097, 65535
  %v2113 = vshra.s32 %v2097, 16
  %v2114 = vcvt.s32.f32 %v2112
  %v2115 = vcvt.s32.f32 %v2113
  %2116 = vmin.xlane.f32.xlu0 %v2115
  %v2117 = vpop.xlane.xlu0 %2116
  %vm2118 = vcmp.eq.f32.partialorder %v2115, %v2117
  %v2119 = vsel %vm2118, %v2114, inf
  %2120 = vmin.xlane.f32.xlu0 %v2119
  %v2121 = vpop.xlane.xlu0 %2120
  %v2122 = vcvt.f32.s32 %v2121
  %v2123 = vcvt.f32.s32 %v2117
  %v2124 = vshll.u32 %v2123, 16
  %v2125 = vadd.s32 %v2124, %v2122
  %v2126 = vlaneseq
  %v2127 = vshrl.u32 %v2126, 7
  %v2128 = vsub.s32 %v2044, %v2127
  %v2129 = vrot.slane %v2111, %v2128
  %v2130 = vlaneseq
  %v2131 = vshrl.u32 %v2130, 7
  %v2132 = vsub.s32 %v2044, %v2131
  %v2133 = vrot.slane %v2125, %v2132
  %vm2134 = vcmask 1041409
  %v2135 = vsel %vm2134, %v2133, %v2129
  %2136 = vst.msk [vmem:[#allocation6] sm:$0x3] %vm2033, %v2135
  %v2138 = vlaneseq
  %v2139 = vshrl.u32 %v2138, 7
  %v2140 = vsub.s32 0, %v2139
  %v2141 = vrot.slane %v2054, %v2140
  %2143 = vbcast.lane.b32.xlu0 %v2141, 256
  %v2144 = vpop.permute.xlu0 %2143
  %v2145 = vlaneseq
  %v2146 = vshrl.u32 %v2145, 7
  %v2147 = vsub.s32 1, %v2146
  %v2148 = vrot.slane %v2054, %v2147
  %2150 = vbcast.lane.b32.xlu0 %v2148, 256
  %v2151 = vpop.permute.xlu0 %2150
  %v2154 = vadd.f32 %v2091, %v2144
  %v2155 = vadd.f32 %v2093, %v2151
  %2158 = vset.pattern.permute.xlu0 0
  %2159 = vperm.xlu0 %2158, %v2154
  %v2160 = vpop.permute.xlu0 %2159
  %2161 = vset.pattern.permute.xlu0 0
  %2162 = vperm.xlu0 %2161, %v2155
  %v2163 = vpop.permute.xlu0 %2162
  %v2164 = vlaneseq
  %v2165 = vshrl.u32 %v2164, 7
  %v2166 = vsub.s32 %v2044, %v2165
  %v2167 = vrot.slane %v2160, %v2166
  %v2168 = vlaneseq
  %v2169 = vshrl.u32 %v2168, 7
  %v2170 = vsub.s32 %v2044, %v2169
  %v2171 = vrot.slane %v2163, %v2170
  %v2172 = vsel %vm2134, %v2171, %v2167
  %vm2173 = vcmask 64512
  %v2174 = vsel %vm2173, %v2172, 0
  %2176 = vmatprep.subr.mxu0 0.0
  %2177 = vmatpush1.msra.mxu0 0.0
  %2178 = vmatprep.subr.mxu0 0.0
  %2179 = vmatpush1.msra.mxu0 0.0
  %2180 = vmatprep.subr.mxu0 0.0
  %2181 = vmatpush1.msra.mxu0 0.0
  %2182 = vmatprep.subr.mxu0 0.0
  %2183 = vmatpush1.msra.mxu0 0.0
  %2184 = vmatprep.subr.mxu0 0.0
  %2185 = vmatpush1.msra.mxu0 0.0
  %2186 = vmatprep.subr.mxu0 0.0
  %2187 = vmatpush1.msra.mxu0 0.0
  %2188 = vmatprep.subr.mxu0 0.0
  %2189 = vmatpush1.msra.mxu0 0.0
  %2190 = vmatprep.subr.mxu0 0.0
  %2191 = vmatpush1.msra.mxu0 0.0
  %2192 = vmatprep.subr.mxu0 0.0
  %2193 = vmatpush1.msra.mxu0 0.0
  %2194 = vmatprep.subr.mxu0 0.0
  %2195 = vmatpush1.msra.mxu0 0.0
  %2196 = vmatprep.subr.mxu0 0.0
  %2197 = vmatpush1.msra.mxu0 0.0
  %2198 = vmatprep.subr.mxu0 0.0
  %2199 = vmatpush1.msra.mxu0 0.0
  %2200 = vmatprep.subr.mxu0 0.0
  %2201 = vmatpush1.msra.mxu0 0.0
  %2202 = vmatprep.subr.mxu0 0.0
  %2203 = vmatpush1.msra.mxu0 0.0
  %2204 = vmatprep.subr.mxu0 0.0
  %2205 = vmatpush1.msra.mxu0 0.0
  %2206 = vmatprep.subr.mxu0 0.0
  %2207 = vmatpush1.msra.mxu0 %v2049
  %2208 = vmatprep.subr.mxu0 0.0
  %2209 = vmatpush2.msra.mxu0 0.0
  %2210 = vmatprep.subr.mxu0 0.0
  %2211 = vmatpush2.msra.mxu0 0.0
  %2212 = vmatprep.subr.mxu0 0.0
  %2213 = vmatpush2.msra.mxu0 0.0
  %2214 = vmatprep.subr.mxu0 0.0
  %2215 = vmatpush2.msra.mxu0 0.0
  %2216 = vmatprep.subr.mxu0 0.0
  %2217 = vmatpush2.msra.mxu0 0.0
  %2218 = vmatprep.subr.mxu0 0.0
  %2219 = vmatpush2.msra.mxu0 0.0
  %2220 = vmatprep.subr.mxu0 0.0
  %2221 = vmatpush2.msra.mxu0 0.0
  %2222 = vmatprep.subr.mxu0 0.0
  %2223 = vmatpush2.msra.mxu0 0.0
  %2224 = vmatprep.subr.mxu0 0.0
  %2225 = vmatpush2.msra.mxu0 0.0
  %2226 = vmatprep.subr.mxu0 0.0
  %2227 = vmatpush2.msra.mxu0 0.0
  %2228 = vmatprep.subr.mxu0 0.0
  %2229 = vmatpush2.msra.mxu0 0.0
  %2230 = vmatprep.subr.mxu0 0.0
  %2231 = vmatpush2.msra.mxu0 0.0
  %2232 = vmatprep.subr.mxu0 0.0
  %2233 = vmatpush2.msra.mxu0 0.0
  %2234 = vmatprep.subr.mxu0 0.0
  %2235 = vmatpush2.msra.mxu0 0.0
  %2236 = vmatprep.subr.mxu0 0.0
  %2237 = vmatpush2.msra.mxu0 0.0
  %2238 = vmatprep.subr.mxu0 0.0
  %2239 = vmatpush2.msra.mxu0 0.0
  %2240 = vmatprep.mubr.f32.mxu0 0.0
  %2241 = vmatmul.mubr.f32.gmra.mxu0 %v2174
  %v2242 = vpop.f32.mrf.mxu0
  %v2243 = vadd.f32 %v2051, %v2242
  %v2244 = vpop.f32.mrf.mxu0
  %2245 = vdwg.mxu0
  %s2246 = scalar_lea.vmem [#allocation5], 2
  %v2247 = vld [vmem:[%s2246] sm:$0x3]
  %v2250 = vunpack.c.l.s4 1966171168
  %v2251 = vunpack.c.0.s8 %v2250
  %v2252 = vlaneseq
  %v2253 = vshrl.u32 %v2252, 7
  %v2254 = vsub.s32 %v2251, %v2253
  %v2255 = vrot.slane %v2243, %v2254
  %v2256 = vcombine.high %v2255, %v2255
  %v2258 = vunpack.c.l.s4 1966171168
  %v2259 = vunpack.c.0.s8 %v2258
  %v2260 = vlaneseq
  %v2261 = vshrl.u32 %v2260, 7
  %v2262 = vsub.s32 %v2259, %v2261
  %v2263 = vrot.slane %v2255, %v2262
  %v2265 = vunpack.c.l.s4 1966171168
  %v2266 = vunpack.c.0.s8 %v2265
  %v2267 = vlaneseq
  %v2268 = vshrl.u32 %v2267, 7
  %v2269 = vsub.s32 %v2266, %v2268
  %v2270 = vrot.slane %v2256, %v2269
  %v2271 = vlaneseq
  %v2272 = vshrl.u32 %v2271, 7
  %v2273 = vsub.s32 0, %v2272
  %v2274 = vrot.slane %v2263, %v2273
  %v2275 = vlaneseq
  %v2276 = vshrl.u32 %v2275, 7
  %v2277 = vsub.s32 0, %v2276
  %v2278 = vrot.slane %v2270, %v2277
  %v2281 = vadd.f32 %v2274, %v2042
  %v2282 = vadd.f32 %v2278, %v2042
  %2283 = vmax.xlane.f32.xlu0 %v2281
  %v2284 = vpop.xlane.xlu0 %2283
  %2285 = vmax.xlane.f32.xlu0 %v2282
  %v2286 = vpop.xlane.xlu0 %2285
  %vm2287 = vcmp.eq.f32.partialorder %v2281, %v2284
  %vm2288 = vcmp.eq.f32.partialorder %v2282, %v2286
  %v2289 = vsel %vm2287, %v2044, 128
  %v2290 = vsel %vm2288, %v2044, 128
  %v2291 = vand.u32 %v2289, 65535
  %v2292 = vshra.s32 %v2289, 16
  %v2293 = vcvt.s32.f32 %v2291
  %v2294 = vcvt.s32.f32 %v2292
  %2295 = vmin.xlane.f32.xlu0 %v2294
  %v2296 = vpop.xlane.xlu0 %2295
  %vm2297 = vcmp.eq.f32.partialorder %v2294, %v2296
  %v2298 = vsel %vm2297, %v2293, inf
  %2299 = vmin.xlane.f32.xlu0 %v2298
  %v2300 = vpop.xlane.xlu0 %2299
  %v2301 = vcvt.f32.s32 %v2300
  %v2302 = vcvt.f32.s32 %v2296
  %v2303 = vshll.u32 %v2302, 16
  %v2304 = vadd.s32 %v2303, %v2301
  %v2305 = vand.u32 %v2290, 65535
  %v2306 = vshra.s32 %v2290, 16
  %v2307 = vcvt.s32.f32 %v2305
  %v2308 = vcvt.s32.f32 %v2306
  %2309 = vmin.xlane.f32.xlu0 %v2308
  %v2310 = vpop.xlane.xlu0 %2309
  %vm2311 = vcmp.eq.f32.partialorder %v2308, %v2310
  %v2312 = vsel %vm2311, %v2307, inf
  %2313 = vmin.xlane.f32.xlu0 %v2312
  %v2314 = vpop.xlane.xlu0 %2313
  %v2315 = vcvt.f32.s32 %v2314
  %v2316 = vcvt.f32.s32 %v2310
  %v2317 = vshll.u32 %v2316, 16
  %v2318 = vadd.s32 %v2317, %v2315
  %v2319 = vlaneseq
  %v2320 = vshrl.u32 %v2319, 7
  %v2321 = vsub.s32 %v2044, %v2320
  %v2322 = vrot.slane %v2304, %v2321
  %v2323 = vlaneseq
  %v2324 = vshrl.u32 %v2323, 7
  %v2325 = vsub.s32 %v2044, %v2324
  %v2326 = vrot.slane %v2318, %v2325
  %v2327 = vsel %vm2134, %v2326, %v2322
  %s2328 = scalar_lea.vmem [#allocation6], 2
  %2329 = vst.msk [vmem:[%s2328] sm:$0x3] %vm2033, %v2327
  %v2331 = vlaneseq
  %v2332 = vshrl.u32 %v2331, 7
  %v2333 = vsub.s32 0, %v2332
  %v2334 = vrot.slane %v2247, %v2333
  %2336 = vbcast.lane.b32.xlu0 %v2334, 256
  %v2337 = vpop.permute.xlu0 %2336
  %v2338 = vlaneseq
  %v2339 = vshrl.u32 %v2338, 7
  %v2340 = vsub.s32 1, %v2339
  %v2341 = vrot.slane %v2247, %v2340
  %2343 = vbcast.lane.b32.xlu0 %v2341, 256
  %v2344 = vpop.permute.xlu0 %2343
  %v2347 = vadd.f32 %v2284, %v2337
  %v2348 = vadd.f32 %v2286, %v2344
  %2351 = vset.pattern.permute.xlu0 0
  %2352 = vperm.xlu0 %2351, %v2347
  %v2353 = vpop.permute.xlu0 %2352
  %2354 = vset.pattern.permute.xlu0 0
  %2355 = vperm.xlu0 %2354, %v2348
  %v2356 = vpop.permute.xlu0 %2355
  %v2357 = vlaneseq
  %v2358 = vshrl.u32 %v2357, 7
  %v2359 = vsub.s32 %v2044, %v2358
  %v2360 = vrot.slane %v2353, %v2359
  %v2361 = vlaneseq
  %v2362 = vshrl.u32 %v2361, 7
  %v2363 = vsub.s32 %v2044, %v2362
  %v2364 = vrot.slane %v2356, %v2363
  %v2365 = vsel %vm2134, %v2364, %v2360
  %v2366 = vsel %vm2173, %v2365, 0
  %2368 = vmatprep.subr.mxu0 0.0
  %2369 = vmatpush1.msra.mxu0 0.0
  %2370 = vmatprep.subr.mxu0 0.0
  %2371 = vmatpush1.msra.mxu0 0.0
  %2372 = vmatprep.subr.mxu0 0.0
  %2373 = vmatpush1.msra.mxu0 0.0
  %2374 = vmatprep.subr.mxu0 0.0
  %2375 = vmatpush1.msra.mxu0 0.0
  %2376 = vmatprep.subr.mxu0 0.0
  %2377 = vmatpush1.msra.mxu0 0.0
  %2378 = vmatprep.subr.mxu0 0.0
  %2379 = vmatpush1.msra.mxu0 0.0
  %2380 = vmatprep.subr.mxu0 0.0
  %2381 = vmatpush1.msra.mxu0 0.0
  %2382 = vmatprep.subr.mxu0 0.0
  %2383 = vmatpush1.msra.mxu0 0.0
  %2384 = vmatprep.subr.mxu0 0.0
  %2385 = vmatpush1.msra.mxu0 0.0
  %2386 = vmatprep.subr.mxu0 0.0
  %2387 = vmatpush1.msra.mxu0 0.0
  %2388 = vmatprep.subr.mxu0 0.0
  %2389 = vmatpush1.msra.mxu0 0.0
  %2390 = vmatprep.subr.mxu0 0.0
  %2391 = vmatpush1.msra.mxu0 0.0
  %2392 = vmatprep.subr.mxu0 0.0
  %2393 = vmatpush1.msra.mxu0 0.0
  %2394 = vmatprep.subr.mxu0 0.0
  %2395 = vmatpush1.msra.mxu0 0.0
  %2396 = vmatprep.subr.mxu0 0.0
  %2397 = vmatpush1.msra.mxu0 0.0
  %2398 = vmatprep.subr.mxu0 0.0
  %2399 = vmatpush1.msra.mxu0 %v2049
  %2400 = vmatprep.subr.mxu0 0.0
  %2401 = vmatpush2.msra.mxu0 0.0
  %2402 = vmatprep.subr.mxu0 0.0
  %2403 = vmatpush2.msra.mxu0 0.0
  %2404 = vmatprep.subr.mxu0 0.0
  %2405 = vmatpush2.msra.mxu0 0.0
  %2406 = vmatprep.subr.mxu0 0.0
  %2407 = vmatpush2.msra.mxu0 0.0
  %2408 = vmatprep.subr.mxu0 0.0
  %2409 = vmatpush2.msra.mxu0 0.0
  %2410 = vmatprep.subr.mxu0 0.0
  %2411 = vmatpush2.msra.mxu0 0.0
  %2412 = vmatprep.subr.mxu0 0.0
  %2413 = vmatpush2.msra.mxu0 0.0
  %2414 = vmatprep.subr.mxu0 0.0
  %2415 = vmatpush2.msra.mxu0 0.0
  %2416 = vmatprep.subr.mxu0 0.0
  %2417 = vmatpush2.msra.mxu0 0.0
  %2418 = vmatprep.subr.mxu0 0.0
  %2419 = vmatpush2.msra.mxu0 0.0
  %2420 = vmatprep.subr.mxu0 0.0
  %2421 = vmatpush2.msra.mxu0 0.0
  %2422 = vmatprep.subr.mxu0 0.0
  %2423 = vmatpush2.msra.mxu0 0.0
  %2424 = vmatprep.subr.mxu0 0.0
  %2425 = vmatpush2.msra.mxu0 0.0
  %2426 = vmatprep.subr.mxu0 0.0
  %2427 = vmatpush2.msra.mxu0 0.0
  %2428 = vmatprep.subr.mxu0 0.0
  %2429 = vmatpush2.msra.mxu0 0.0
  %2430 = vmatprep.subr.mxu0 0.0
  %2431 = vmatpush2.msra.mxu0 0.0
  %2432 = vmatprep.mubr.f32.mxu0 0.0
  %2433 = vmatmul.mubr.f32.gmra.mxu0 %v2366
  %v2434 = vpop.f32.mrf.mxu0
  %v2435 = vadd.f32 %v2051, %v2434
  %v2436 = vpop.f32.mrf.mxu0
  %2437 = vdwg.mxu0
  %s2438 = scalar_lea.vmem [#allocation5], 4
  %v2439 = vld [vmem:[%s2438] sm:$0x3]
  %v2442 = vunpack.c.l.s4 1966171168
  %v2443 = vunpack.c.0.s8 %v2442
  %v2444 = vlaneseq
  %v2445 = vshrl.u32 %v2444, 7
  %v2446 = vsub.s32 %v2443, %v2445
  %v2447 = vrot.slane %v2435, %v2446
  %v2448 = vcombine.high %v2447, %v2447
  %v2450 = vunpack.c.l.s4 1966171168
  %v2451 = vunpack.c.0.s8 %v2450
  %v2452 = vlaneseq
  %v2453 = vshrl.u32 %v2452, 7
  %v2454 = vsub.s32 %v2451, %v2453
  %v2455 = vrot.slane %v2447, %v2454
  %v2457 = vunpack.c.l.s4 1966171168
  %v2458 = vunpack.c.0.s8 %v2457
  %v2459 = vlaneseq
  %v2460 = vshrl.u32 %v2459, 7
  %v2461 = vsub.s32 %v2458, %v2460
  %v2462 = vrot.slane %v2448, %v2461
  %v2463 = vlaneseq
  %v2464 = vshrl.u32 %v2463, 7
  %v2465 = vsub.s32 0, %v2464
  %v2466 = vrot.slane %v2455, %v2465
  %v2467 = vlaneseq
  %v2468 = vshrl.u32 %v2467, 7
  %v2469 = vsub.s32 0, %v2468
  %v2470 = vrot.slane %v2462, %v2469
  %v2473 = vadd.f32 %v2466, %v2042
  %v2474 = vadd.f32 %v2470, %v2042
  %2475 = vmax.xlane.f32.xlu0 %v2473
  %v2476 = vpop.xlane.xlu0 %2475
  %2477 = vmax.xlane.f32.xlu0 %v2474
  %v2478 = vpop.xlane.xlu0 %2477
  %vm2479 = vcmp.eq.f32.partialorder %v2473, %v2476
  %vm2480 = vcmp.eq.f32.partialorder %v2474, %v2478
  %v2481 = vsel %vm2479, %v2044, 128
  %v2482 = vsel %vm2480, %v2044, 128
  %v2483 = vand.u32 %v2481, 65535
  %v2484 = vshra.s32 %v2481, 16
  %v2485 = vcvt.s32.f32 %v2483
  %v2486 = vcvt.s32.f32 %v2484
  %2487 = vmin.xlane.f32.xlu0 %v2486
  %v2488 = vpop.xlane.xlu0 %2487
  %vm2489 = vcmp.eq.f32.partialorder %v2486, %v2488
  %v2490 = vsel %vm2489, %v2485, inf
  %2491 = vmin.xlane.f32.xlu0 %v2490
  %v2492 = vpop.xlane.xlu0 %2491
  %v2493 = vcvt.f32.s32 %v2492
  %v2494 = vcvt.f32.s32 %v2488
  %v2495 = vshll.u32 %v2494, 16
  %v2496 = vadd.s32 %v2495, %v2493
  %v2497 = vand.u32 %v2482, 65535
  %v2498 = vshra.s32 %v2482, 16
  %v2499 = vcvt.s32.f32 %v2497
  %v2500 = vcvt.s32.f32 %v2498
  %2501 = vmin.xlane.f32.xlu0 %v2500
  %v2502 = vpop.xlane.xlu0 %2501
  %vm2503 = vcmp.eq.f32.partialorder %v2500, %v2502
  %v2504 = vsel %vm2503, %v2499, inf
  %2505 = vmin.xlane.f32.xlu0 %v2504
  %v2506 = vpop.xlane.xlu0 %2505
  %v2507 = vcvt.f32.s32 %v2506
  %v2508 = vcvt.f32.s32 %v2502
  %v2509 = vshll.u32 %v2508, 16
  %v2510 = vadd.s32 %v2509, %v2507
  %v2511 = vlaneseq
  %v2512 = vshrl.u32 %v2511, 7
  %v2513 = vsub.s32 %v2044, %v2512
  %v2514 = vrot.slane %v2496, %v2513
  %v2515 = vlaneseq
  %v2516 = vshrl.u32 %v2515, 7
  %v2517 = vsub.s32 %v2044, %v2516
  %v2518 = vrot.slane %v2510, %v2517
  %v2519 = vsel %vm2134, %v2518, %v2514
  %s2520 = scalar_lea.vmem [#allocation6], 4
  %2521 = vst.msk [vmem:[%s2520] sm:$0x3] %vm2033, %v2519
  %v2523 = vlaneseq
  %v2524 = vshrl.u32 %v2523, 7
  %v2525 = vsub.s32 0, %v2524
  %v2526 = vrot.slane %v2439, %v2525
  %2528 = vbcast.lane.b32.xlu0 %v2526, 256
  %v2529 = vpop.permute.xlu0 %2528
  %v2530 = vlaneseq
  %v2531 = vshrl.u32 %v2530, 7
  %v2532 = vsub.s32 1, %v2531
  %v2533 = vrot.slane %v2439, %v2532
  %2535 = vbcast.lane.b32.xlu0 %v2533, 256
  %v2536 = vpop.permute.xlu0 %2535
  %v2539 = vadd.f32 %v2476, %v2529
  %v2540 = vadd.f32 %v2478, %v2536
  %2543 = vset.pattern.permute.xlu0 0
  %2544 = vperm.xlu0 %2543, %v2539
  %v2545 = vpop.permute.xlu0 %2544
  %2546 = vset.pattern.permute.xlu0 0
  %2547 = vperm.xlu0 %2546, %v2540
  %v2548 = vpop.permute.xlu0 %2547
  %v2549 = vlaneseq
  %v2550 = vshrl.u32 %v2549, 7
  %v2551 = vsub.s32 %v2044, %v2550
  %v2552 = vrot.slane %v2545, %v2551
  %v2553 = vlaneseq
  %v2554 = vshrl.u32 %v2553, 7
  %v2555 = vsub.s32 %v2044, %v2554
  %v2556 = vrot.slane %v2548, %v2555
  %v2557 = vsel %vm2134, %v2556, %v2552
  %v2558 = vsel %vm2173, %v2557, 0
  %2560 = vmatprep.subr.mxu0 0.0
  %2561 = vmatpush1.msra.mxu0 0.0
  %2562 = vmatprep.subr.mxu0 0.0
  %2563 = vmatpush1.msra.mxu0 0.0
  %2564 = vmatprep.subr.mxu0 0.0
  %2565 = vmatpush1.msra.mxu0 0.0
  %2566 = vmatprep.subr.mxu0 0.0
  %2567 = vmatpush1.msra.mxu0 0.0
  %2568 = vmatprep.subr.mxu0 0.0
  %2569 = vmatpush1.msra.mxu0 0.0
  %2570 = vmatprep.subr.mxu0 0.0
  %2571 = vmatpush1.msra.mxu0 0.0
  %2572 = vmatprep.subr.mxu0 0.0
  %2573 = vmatpush1.msra.mxu0 0.0
  %2574 = vmatprep.subr.mxu0 0.0
  %2575 = vmatpush1.msra.mxu0 0.0
  %2576 = vmatprep.subr.mxu0 0.0
  %2577 = vmatpush1.msra.mxu0 0.0
  %2578 = vmatprep.subr.mxu0 0.0
  %2579 = vmatpush1.msra.mxu0 0.0
  %2580 = vmatprep.subr.mxu0 0.0
  %2581 = vmatpush1.msra.mxu0 0.0
  %2582 = vmatprep.subr.mxu0 0.0
  %2583 = vmatpush1.msra.mxu0 0.0
  %2584 = vmatprep.subr.mxu0 0.0
  %2585 = vmatpush1.msra.mxu0 0.0
  %2586 = vmatprep.subr.mxu0 0.0
  %2587 = vmatpush1.msra.mxu0 0.0
  %2588 = vmatprep.subr.mxu0 0.0
  %2589 = vmatpush1.msra.mxu0 0.0
  %2590 = vmatprep.subr.mxu0 0.0
  %2591 = vmatpush1.msra.mxu0 %v2049
  %2592 = vmatprep.subr.mxu0 0.0
  %2593 = vmatpush2.msra.mxu0 0.0
  %2594 = vmatprep.subr.mxu0 0.0
  %2595 = vmatpush2.msra.mxu0 0.0
  %2596 = vmatprep.subr.mxu0 0.0
  %2597 = vmatpush2.msra.mxu0 0.0
  %2598 = vmatprep.subr.mxu0 0.0
  %2599 = vmatpush2.msra.mxu0 0.0
  %2600 = vmatprep.subr.mxu0 0.0
  %2601 = vmatpush2.msra.mxu0 0.0
  %2602 = vmatprep.subr.mxu0 0.0
  %2603 = vmatpush2.msra.mxu0 0.0
  %2604 = vmatprep.subr.mxu0 0.0
  %2605 = vmatpush2.msra.mxu0 0.0
  %2606 = vmatprep.subr.mxu0 0.0
  %2607 = vmatpush2.msra.mxu0 0.0
  %2608 = vmatprep.subr.mxu0 0.0
  %2609 = vmatpush2.msra.mxu0 0.0
  %2610 = vmatprep.subr.mxu0 0.0
  %2611 = vmatpush2.msra.mxu0 0.0
  %2612 = vmatprep.subr.mxu0 0.0
  %2613 = vmatpush2.msra.mxu0 0.0
  %2614 = vmatprep.subr.mxu0 0.0
  %2615 = vmatpush2.msra.mxu0 0.0
  %2616 = vmatprep.subr.mxu0 0.0
  %2617 = vmatpush2.msra.mxu0 0.0
  %2618 = vmatprep.subr.mxu0 0.0
  %2619 = vmatpush2.msra.mxu0 0.0
  %2620 = vmatprep.subr.mxu0 0.0
  %2621 = vmatpush2.msra.mxu0 0.0
  %2622 = vmatprep.subr.mxu0 0.0
  %2623 = vmatpush2.msra.mxu0 0.0
  %2624 = vmatprep.mubr.f32.mxu0 0.0
  %2625 = vmatmul.mubr.f32.gmra.mxu0 %v2558
  %v2626 = vpop.f32.mrf.mxu0
  %v2627 = vadd.f32 %v2051, %v2626
  %v2628 = vpop.f32.mrf.mxu0
  %2629 = vdwg.mxu0
  %s2630 = scalar_lea.vmem [#allocation5], 6
  %v2631 = vld [vmem:[%s2630] sm:$0x3]
  %v2634 = vunpack.c.l.s4 1966171168
  %v2635 = vunpack.c.0.s8 %v2634
  %v2636 = vlaneseq
  %v2637 = vshrl.u32 %v2636, 7
  %v2638 = vsub.s32 %v2635, %v2637
  %v2639 = vrot.slane %v2627, %v2638
  %v2640 = vcombine.high %v2639, %v2639
  %v2642 = vunpack.c.l.s4 1966171168
  %v2643 = vunpack.c.0.s8 %v2642
  %v2644 = vlaneseq
  %v2645 = vshrl.u32 %v2644, 7
  %v2646 = vsub.s32 %v2643, %v2645
  %v2647 = vrot.slane %v2639, %v2646
  %v2649 = vunpack.c.l.s4 1966171168
  %v2650 = vunpack.c.0.s8 %v2649
  %v2651 = vlaneseq
  %v2652 = vshrl.u32 %v2651, 7
  %v2653 = vsub.s32 %v2650, %v2652
  %v2654 = vrot.slane %v2640, %v2653
  %v2655 = vlaneseq
  %v2656 = vshrl.u32 %v2655, 7
  %v2657 = vsub.s32 0, %v2656
  %v2658 = vrot.slane %v2647, %v2657
  %v2659 = vlaneseq
  %v2660 = vshrl.u32 %v2659, 7
  %v2661 = vsub.s32 0, %v2660
  %v2662 = vrot.slane %v2654, %v2661
  %v2665 = vadd.f32 %v2658, %v2042
  %v2666 = vadd.f32 %v2662, %v2042
  %2667 = vmax.xlane.f32.xlu0 %v2665
  %v2668 = vpop.xlane.xlu0 %2667
  %2669 = vmax.xlane.f32.xlu0 %v2666
  %v2670 = vpop.xlane.xlu0 %2669
  %vm2671 = vcmp.eq.f32.partialorder %v2665, %v2668
  %vm2672 = vcmp.eq.f32.partialorder %v2666, %v2670
  %v2673 = vsel %vm2671, %v2044, 128
  %v2674 = vsel %vm2672, %v2044, 128
  %v2675 = vand.u32 %v2673, 65535
  %v2676 = vshra.s32 %v2673, 16
  %v2677 = vcvt.s32.f32 %v2675
  %v2678 = vcvt.s32.f32 %v2676
  %2679 = vmin.xlane.f32.xlu0 %v2678
  %v2680 = vpop.xlane.xlu0 %2679
  %vm2681 = vcmp.eq.f32.partialorder %v2678, %v2680
  %v2682 = vsel %vm2681, %v2677, inf
  %2683 = vmin.xlane.f32.xlu0 %v2682
  %v2684 = vpop.xlane.xlu0 %2683
  %v2685 = vcvt.f32.s32 %v2684
  %v2686 = vcvt.f32.s32 %v2680
  %v2687 = vshll.u32 %v2686, 16
  %v2688 = vadd.s32 %v2687, %v2685
  %v2689 = vand.u32 %v2674, 65535
  %v2690 = vshra.s32 %v2674, 16
  %v2691 = vcvt.s32.f32 %v2689
  %v2692 = vcvt.s32.f32 %v2690
  %2693 = vmin.xlane.f32.xlu0 %v2692
  %v2694 = vpop.xlane.xlu0 %2693
  %vm2695 = vcmp.eq.f32.partialorder %v2692, %v2694
  %v2696 = vsel %vm2695, %v2691, inf
  %2697 = vmin.xlane.f32.xlu0 %v2696
  %v2698 = vpop.xlane.xlu0 %2697
  %v2699 = vcvt.f32.s32 %v2698
  %v2700 = vcvt.f32.s32 %v2694
  %v2701 = vshll.u32 %v2700, 16
  %v2702 = vadd.s32 %v2701, %v2699
  %v2703 = vlaneseq
  %v2704 = vshrl.u32 %v2703, 7
  %v2705 = vsub.s32 %v2044, %v2704
  %v2706 = vrot.slane %v2688, %v2705
  %v2707 = vlaneseq
  %v2708 = vshrl.u32 %v2707, 7
  %v2709 = vsub.s32 %v2044, %v2708
  %v2710 = vrot.slane %v2702, %v2709
  %v2711 = vsel %vm2134, %v2710, %v2706
  %s2712 = scalar_lea.vmem [#allocation6], 6
  %2713 = vst.msk [vmem:[%s2712] sm:$0x3] %vm2033, %v2711
  %v2715 = vlaneseq
  %v2716 = vshrl.u32 %v2715, 7
  %v2717 = vsub.s32 0, %v2716
  %v2718 = vrot.slane %v2631, %v2717
  %2720 = vbcast.lane.b32.xlu0 %v2718, 256
  %v2721 = vpop.permute.xlu0 %2720
  %v2722 = vlaneseq
  %v2723 = vshrl.u32 %v2722, 7
  %v2724 = vsub.s32 1, %v2723
  %v2725 = vrot.slane %v2631, %v2724
  %2727 = vbcast.lane.b32.xlu0 %v2725, 256
  %v2728 = vpop.permute.xlu0 %2727
  %v2731 = vadd.f32 %v2668, %v2721
  %v2732 = vadd.f32 %v2670, %v2728
  %2735 = vset.pattern.permute.xlu0 0
  %2736 = vperm.xlu0 %2735, %v2731
  %v2737 = vpop.permute.xlu0 %2736
  %2738 = vset.pattern.permute.xlu0 0
  %2739 = vperm.xlu0 %2738, %v2732
  %v2740 = vpop.permute.xlu0 %2739
  %v2741 = vlaneseq
  %v2742 = vshrl.u32 %v2741, 7
  %v2743 = vsub.s32 %v2044, %v2742
  %v2744 = vrot.slane %v2737, %v2743
  %v2745 = vlaneseq
  %v2746 = vshrl.u32 %v2745, 7
  %v2747 = vsub.s32 %v2044, %v2746
  %v2748 = vrot.slane %v2740, %v2747
  %v2749 = vsel %vm2134, %v2748, %v2744
  %v2750 = vsel %vm2173, %v2749, 0
  %2752 = vmatprep.subr.mxu0 0.0
  %2753 = vmatpush1.msra.mxu0 0.0
  %2754 = vmatprep.subr.mxu0 0.0
  %2755 = vmatpush1.msra.mxu0 0.0
  %2756 = vmatprep.subr.mxu0 0.0
  %2757 = vmatpush1.msra.mxu0 0.0
  %2758 = vmatprep.subr.mxu0 0.0
  %2759 = vmatpush1.msra.mxu0 0.0
  %2760 = vmatprep.subr.mxu0 0.0
  %2761 = vmatpush1.msra.mxu0 0.0
  %2762 = vmatprep.subr.mxu0 0.0
  %2763 = vmatpush1.msra.mxu0 0.0
  %2764 = vmatprep.subr.mxu0 0.0
  %2765 = vmatpush1.msra.mxu0 0.0
  %2766 = vmatprep.subr.mxu0 0.0
  %2767 = vmatpush1.msra.mxu0 0.0
  %2768 = vmatprep.subr.mxu0 0.0
  %2769 = vmatpush1.msra.mxu0 0.0
  %2770 = vmatprep.subr.mxu0 0.0
  %2771 = vmatpush1.msra.mxu0 0.0
  %2772 = vmatprep.subr.mxu0 0.0
  %2773 = vmatpush1.msra.mxu0 0.0
  %2774 = vmatprep.subr.mxu0 0.0
  %2775 = vmatpush1.msra.mxu0 0.0
  %2776 = vmatprep.subr.mxu0 0.0
  %2777 = vmatpush1.msra.mxu0 0.0
  %2778 = vmatprep.subr.mxu0 0.0
  %2779 = vmatpush1.msra.mxu0 0.0
  %2780 = vmatprep.subr.mxu0 0.0
  %2781 = vmatpush1.msra.mxu0 0.0
  %2782 = vmatprep.subr.mxu0 0.0
  %2783 = vmatpush1.msra.mxu0 %v2049
  %2784 = vmatprep.subr.mxu0 0.0
  %2785 = vmatpush2.msra.mxu0 0.0
  %2786 = vmatprep.subr.mxu0 0.0
  %2787 = vmatpush2.msra.mxu0 0.0
  %2788 = vmatprep.subr.mxu0 0.0
  %2789 = vmatpush2.msra.mxu0 0.0
  %2790 = vmatprep.subr.mxu0 0.0
  %2791 = vmatpush2.msra.mxu0 0.0
  %2792 = vmatprep.subr.mxu0 0.0
  %2793 = vmatpush2.msra.mxu0 0.0
  %2794 = vmatprep.subr.mxu0 0.0
  %2795 = vmatpush2.msra.mxu0 0.0
  %2796 = vmatprep.subr.mxu0 0.0
  %2797 = vmatpush2.msra.mxu0 0.0
  %2798 = vmatprep.subr.mxu0 0.0
  %2799 = vmatpush2.msra.mxu0 0.0
  %2800 = vmatprep.subr.mxu0 0.0
  %2801 = vmatpush2.msra.mxu0 0.0
  %2802 = vmatprep.subr.mxu0 0.0
  %2803 = vmatpush2.msra.mxu0 0.0
  %2804 = vmatprep.subr.mxu0 0.0
  %2805 = vmatpush2.msra.mxu0 0.0
  %2806 = vmatprep.subr.mxu0 0.0
  %2807 = vmatpush2.msra.mxu0 0.0
  %2808 = vmatprep.subr.mxu0 0.0
  %2809 = vmatpush2.msra.mxu0 0.0
  %2810 = vmatprep.subr.mxu0 0.0
  %2811 = vmatpush2.msra.mxu0 0.0
  %2812 = vmatprep.subr.mxu0 0.0
  %2813 = vmatpush2.msra.mxu0 0.0
  %2814 = vmatprep.subr.mxu0 0.0
  %2815 = vmatpush2.msra.mxu0 0.0
  %2816 = vmatprep.mubr.f32.mxu0 0.0
  %2817 = vmatmul.mubr.f32.gmra.mxu0 %v2750
  %v2818 = vpop.f32.mrf.mxu0
  %v2819 = vadd.f32 %v2051, %v2818
  %v2820 = vpop.f32.mrf.mxu0
  %2821 = vdwg.mxu0
  %s2822 = scalar_lea.vmem [#allocation5], 8
  %v2823 = vld [vmem:[%s2822] sm:$0x3]
  %v2826 = vunpack.c.l.s4 1966171168
  %v2827 = vunpack.c.0.s8 %v2826
  %v2828 = vlaneseq
  %v2829 = vshrl.u32 %v2828, 7
  %v2830 = vsub.s32 %v2827, %v2829
  %v2831 = vrot.slane %v2819, %v2830
  %v2832 = vcombine.high %v2831, %v2831
  %v2834 = vunpack.c.l.s4 1966171168
  %v2835 = vunpack.c.0.s8 %v2834
  %v2836 = vlaneseq
  %v2837 = vshrl.u32 %v2836, 7
  %v2838 = vsub.s32 %v2835, %v2837
  %v2839 = vrot.slane %v2831, %v2838
  %v2841 = vunpack.c.l.s4 1966171168
  %v2842 = vunpack.c.0.s8 %v2841
  %v2843 = vlaneseq
  %v2844 = vshrl.u32 %v2843, 7
  %v2845 = vsub.s32 %v2842, %v2844
  %v2846 = vrot.slane %v2832, %v2845
  %v2847 = vlaneseq
  %v2848 = vshrl.u32 %v2847, 7
  %v2849 = vsub.s32 0, %v2848
  %v2850 = vrot.slane %v2839, %v2849
  %v2851 = vlaneseq
  %v2852 = vshrl.u32 %v2851, 7
  %v2853 = vsub.s32 0, %v2852
  %v2854 = vrot.slane %v2846, %v2853
  %v2857 = vadd.f32 %v2850, %v2042
  %v2858 = vadd.f32 %v2854, %v2042
  %2859 = vmax.xlane.f32.xlu0 %v2857
  %v2860 = vpop.xlane.xlu0 %2859
  %2861 = vmax.xlane.f32.xlu0 %v2858
  %v2862 = vpop.xlane.xlu0 %2861
  %vm2863 = vcmp.eq.f32.partialorder %v2857, %v2860
  %vm2864 = vcmp.eq.f32.partialorder %v2858, %v2862
  %v2865 = vsel %vm2863, %v2044, 128
  %v2866 = vsel %vm2864, %v2044, 128
  %v2867 = vand.u32 %v2865, 65535
  %v2868 = vshra.s32 %v2865, 16
  %v2869 = vcvt.s32.f32 %v2867
  %v2870 = vcvt.s32.f32 %v2868
  %2871 = vmin.xlane.f32.xlu0 %v2870
  %v2872 = vpop.xlane.xlu0 %2871
  %vm2873 = vcmp.eq.f32.partialorder %v2870, %v2872
  %v2874 = vsel %vm2873, %v2869, inf
  %2875 = vmin.xlane.f32.xlu0 %v2874
  %v2876 = vpop.xlane.xlu0 %2875
  %v2877 = vcvt.f32.s32 %v2876
  %v2878 = vcvt.f32.s32 %v2872
  %v2879 = vshll.u32 %v2878, 16
  %v2880 = vadd.s32 %v2879, %v2877
  %v2881 = vand.u32 %v2866, 65535
  %v2882 = vshra.s32 %v2866, 16
  %v2883 = vcvt.s32.f32 %v2881
  %v2884 = vcvt.s32.f32 %v2882
  %2885 = vmin.xlane.f32.xlu0 %v2884
  %v2886 = vpop.xlane.xlu0 %2885
  %vm2887 = vcmp.eq.f32.partialorder %v2884, %v2886
  %v2888 = vsel %vm2887, %v2883, inf
  %2889 = vmin.xlane.f32.xlu0 %v2888
  %v2890 = vpop.xlane.xlu0 %2889
  %v2891 = vcvt.f32.s32 %v2890
  %v2892 = vcvt.f32.s32 %v2886
  %v2893 = vshll.u32 %v2892, 16
  %v2894 = vadd.s32 %v2893, %v2891
  %v2895 = vlaneseq
  %v2896 = vshrl.u32 %v2895, 7
  %v2897 = vsub.s32 %v2044, %v2896
  %v2898 = vrot.slane %v2880, %v2897
  %v2899 = vlaneseq
  %v2900 = vshrl.u32 %v2899, 7
  %v2901 = vsub.s32 %v2044, %v2900
  %v2902 = vrot.slane %v2894, %v2901
  %v2903 = vsel %vm2134, %v2902, %v2898
  %s2904 = scalar_lea.vmem [#allocation6], 8
  %2905 = vst.msk [vmem:[%s2904] sm:$0x3] %vm2033, %v2903
  %v2907 = vlaneseq
  %v2908 = vshrl.u32 %v2907, 7
  %v2909 = vsub.s32 0, %v2908
  %v2910 = vrot.slane %v2823, %v2909
  %2912 = vbcast.lane.b32.xlu0 %v2910, 256
  %v2913 = vpop.permute.xlu0 %2912
  %v2914 = vlaneseq
  %v2915 = vshrl.u32 %v2914, 7
  %v2916 = vsub.s32 1, %v2915
  %v2917 = vrot.slane %v2823, %v2916
  %2919 = vbcast.lane.b32.xlu0 %v2917, 256
  %v2920 = vpop.permute.xlu0 %2919
  %v2923 = vadd.f32 %v2860, %v2913
  %v2924 = vadd.f32 %v2862, %v2920
  %2927 = vset.pattern.permute.xlu0 0
  %2928 = vperm.xlu0 %2927, %v2923
  %v2929 = vpop.permute.xlu0 %2928
  %2930 = vset.pattern.permute.xlu0 0
  %2931 = vperm.xlu0 %2930, %v2924
  %v2932 = vpop.permute.xlu0 %2931
  %v2933 = vlaneseq
  %v2934 = vshrl.u32 %v2933, 7
  %v2935 = vsub.s32 %v2044, %v2934
  %v2936 = vrot.slane %v2929, %v2935
  %v2937 = vlaneseq
  %v2938 = vshrl.u32 %v2937, 7
  %v2939 = vsub.s32 %v2044, %v2938
  %v2940 = vrot.slane %v2932, %v2939
  %v2941 = vsel %vm2134, %v2940, %v2936
  %v2942 = vsel %vm2173, %v2941, 0
  %2944 = vmatprep.subr.mxu0 0.0
  %2945 = vmatpush1.msra.mxu0 0.0
  %2946 = vmatprep.subr.mxu0 0.0
  %2947 = vmatpush1.msra.mxu0 0.0
  %2948 = vmatprep.subr.mxu0 0.0
  %2949 = vmatpush1.msra.mxu0 0.0
  %2950 = vmatprep.subr.mxu0 0.0
  %2951 = vmatpush1.msra.mxu0 0.0
  %2952 = vmatprep.subr.mxu0 0.0
  %2953 = vmatpush1.msra.mxu0 0.0
  %2954 = vmatprep.subr.mxu0 0.0
  %2955 = vmatpush1.msra.mxu0 0.0
  %2956 = vmatprep.subr.mxu0 0.0
  %2957 = vmatpush1.msra.mxu0 0.0
  %2958 = vmatprep.subr.mxu0 0.0
  %2959 = vmatpush1.msra.mxu0 0.0
  %2960 = vmatprep.subr.mxu0 0.0
  %2961 = vmatpush1.msra.mxu0 0.0
  %2962 = vmatprep.subr.mxu0 0.0
  %2963 = vmatpush1.msra.mxu0 0.0
  %2964 = vmatprep.subr.mxu0 0.0
  %2965 = vmatpush1.msra.mxu0 0.0
  %2966 = vmatprep.subr.mxu0 0.0
  %2967 = vmatpush1.msra.mxu0 0.0
  %2968 = vmatprep.subr.mxu0 0.0
  %2969 = vmatpush1.msra.mxu0 0.0
  %2970 = vmatprep.subr.mxu0 0.0
  %2971 = vmatpush1.msra.mxu0 0.0
  %2972 = vmatprep.subr.mxu0 0.0
  %2973 = vmatpush1.msra.mxu0 0.0
  %2974 = vmatprep.subr.mxu0 0.0
  %2975 = vmatpush1.msra.mxu0 %v2049
  %2976 = vmatprep.subr.mxu0 0.0
  %2977 = vmatpush2.msra.mxu0 0.0
  %2978 = vmatprep.subr.mxu0 0.0
  %2979 = vmatpush2.msra.mxu0 0.0
  %2980 = vmatprep.subr.mxu0 0.0
  %2981 = vmatpush2.msra.mxu0 0.0
  %2982 = vmatprep.subr.mxu0 0.0
  %2983 = vmatpush2.msra.mxu0 0.0
  %2984 = vmatprep.subr.mxu0 0.0
  %2985 = vmatpush2.msra.mxu0 0.0
  %2986 = vmatprep.subr.mxu0 0.0
  %2987 = vmatpush2.msra.mxu0 0.0
  %2988 = vmatprep.subr.mxu0 0.0
  %2989 = vmatpush2.msra.mxu0 0.0
  %2990 = vmatprep.subr.mxu0 0.0
  %2991 = vmatpush2.msra.mxu0 0.0
  %2992 = vmatprep.subr.mxu0 0.0
  %2993 = vmatpush2.msra.mxu0 0.0
  %2994 = vmatprep.subr.mxu0 0.0
  %2995 = vmatpush2.msra.mxu0 0.0
  %2996 = vmatprep.subr.mxu0 0.0
  %2997 = vmatpush2.msra.mxu0 0.0
  %2998 = vmatprep.subr.mxu0 0.0
  %2999 = vmatpush2.msra.mxu0 0.0
  %3000 = vmatprep.subr.mxu0 0.0
  %3001 = vmatpush2.msra.mxu0 0.0
  %3002 = vmatprep.subr.mxu0 0.0
  %3003 = vmatpush2.msra.mxu0 0.0
  %3004 = vmatprep.subr.mxu0 0.0
  %3005 = vmatpush2.msra.mxu0 0.0
  %3006 = vmatprep.subr.mxu0 0.0
  %3007 = vmatpush2.msra.mxu0 0.0
  %3008 = vmatprep.mubr.f32.mxu0 0.0
  %3009 = vmatmul.mubr.f32.gmra.mxu0 %v2942
  %v3010 = vpop.f32.mrf.mxu0
  %v3011 = vadd.f32 %v2051, %v3010
  %v3012 = vpop.f32.mrf.mxu0
  %3013 = vdwg.mxu0
  %s3014 = scalar_lea.vmem [#allocation5], 10
  %v3015 = vld [vmem:[%s3014] sm:$0x3]
  %v3018 = vunpack.c.l.s4 1966171168
  %v3019 = vunpack.c.0.s8 %v3018
  %v3020 = vlaneseq
  %v3021 = vshrl.u32 %v3020, 7
  %v3022 = vsub.s32 %v3019, %v3021
  %v3023 = vrot.slane %v3011, %v3022
  %v3024 = vcombine.high %v3023, %v3023
  %v3026 = vunpack.c.l.s4 1966171168
  %v3027 = vunpack.c.0.s8 %v3026
  %v3028 = vlaneseq
  %v3029 = vshrl.u32 %v3028, 7
  %v3030 = vsub.s32 %v3027, %v3029
  %v3031 = vrot.slane %v3023, %v3030
  %v3033 = vunpack.c.l.s4 1966171168
  %v3034 = vunpack.c.0.s8 %v3033
  %v3035 = vlaneseq
  %v3036 = vshrl.u32 %v3035, 7
  %v3037 = vsub.s32 %v3034, %v3036
  %v3038 = vrot.slane %v3024, %v3037
  %v3039 = vlaneseq
  %v3040 = vshrl.u32 %v3039, 7
  %v3041 = vsub.s32 0, %v3040
  %v3042 = vrot.slane %v3031, %v3041
  %v3043 = vlaneseq
  %v3044 = vshrl.u32 %v3043, 7
  %v3045 = vsub.s32 0, %v3044
  %v3046 = vrot.slane %v3038, %v3045
  %v3049 = vadd.f32 %v3042, %v2042
  %v3050 = vadd.f32 %v3046, %v2042
  %3051 = vmax.xlane.f32.xlu0 %v3049
  %v3052 = vpop.xlane.xlu0 %3051
  %3053 = vmax.xlane.f32.xlu0 %v3050
  %v3054 = vpop.xlane.xlu0 %3053
  %vm3055 = vcmp.eq.f32.partialorder %v3049, %v3052
  %vm3056 = vcmp.eq.f32.partialorder %v3050, %v3054
  %v3057 = vsel %vm3055, %v2044, 128
  %v3058 = vsel %vm3056, %v2044, 128
  %v3059 = vand.u32 %v3057, 65535
  %v3060 = vshra.s32 %v3057, 16
  %v3061 = vcvt.s32.f32 %v3059
  %v3062 = vcvt.s32.f32 %v3060
  %3063 = vmin.xlane.f32.xlu0 %v3062
  %v3064 = vpop.xlane.xlu0 %3063
  %vm3065 = vcmp.eq.f32.partialorder %v3062, %v3064
  %v3066 = vsel %vm3065, %v3061, inf
  %3067 = vmin.xlane.f32.xlu0 %v3066
  %v3068 = vpop.xlane.xlu0 %3067
  %v3069 = vcvt.f32.s32 %v3068
  %v3070 = vcvt.f32.s32 %v3064
  %v3071 = vshll.u32 %v3070, 16
  %v3072 = vadd.s32 %v3071, %v3069
  %v3073 = vand.u32 %v3058, 65535
  %v3074 = vshra.s32 %v3058, 16
  %v3075 = vcvt.s32.f32 %v3073
  %v3076 = vcvt.s32.f32 %v3074
  %3077 = vmin.xlane.f32.xlu0 %v3076
  %v3078 = vpop.xlane.xlu0 %3077
  %vm3079 = vcmp.eq.f32.partialorder %v3076, %v3078
  %v3080 = vsel %vm3079, %v3075, inf
  %3081 = vmin.xlane.f32.xlu0 %v3080
  %v3082 = vpop.xlane.xlu0 %3081
  %v3083 = vcvt.f32.s32 %v3082
  %v3084 = vcvt.f32.s32 %v3078
  %v3085 = vshll.u32 %v3084, 16
  %v3086 = vadd.s32 %v3085, %v3083
  %v3087 = vlaneseq
  %v3088 = vshrl.u32 %v3087, 7
  %v3089 = vsub.s32 %v2044, %v3088
  %v3090 = vrot.slane %v3072, %v3089
  %v3091 = vlaneseq
  %v3092 = vshrl.u32 %v3091, 7
  %v3093 = vsub.s32 %v2044, %v3092
  %v3094 = vrot.slane %v3086, %v3093
  %v3095 = vsel %vm2134, %v3094, %v3090
  %s3096 = scalar_lea.vmem [#allocation6], 10
  %3097 = vst.msk [vmem:[%s3096] sm:$0x3] %vm2033, %v3095
  %v3099 = vlaneseq
  %v3100 = vshrl.u32 %v3099, 7
  %v3101 = vsub.s32 0, %v3100
  %v3102 = vrot.slane %v3015, %v3101
  %3104 = vbcast.lane.b32.xlu0 %v3102, 256
  %v3105 = vpop.permute.xlu0 %3104
  %v3106 = vlaneseq
  %v3107 = vshrl.u32 %v3106, 7
  %v3108 = vsub.s32 1, %v3107
  %v3109 = vrot.slane %v3015, %v3108
  %3111 = vbcast.lane.b32.xlu0 %v3109, 256
  %v3112 = vpop.permute.xlu0 %3111
  %v3115 = vadd.f32 %v3052, %v3105
  %v3116 = vadd.f32 %v3054, %v3112
  %3119 = vset.pattern.permute.xlu0 0
  %3120 = vperm.xlu0 %3119, %v3115
  %v3121 = vpop.permute.xlu0 %3120
  %3122 = vset.pattern.permute.xlu0 0
  %3123 = vperm.xlu0 %3122, %v3116
  %v3124 = vpop.permute.xlu0 %3123
  %v3125 = vlaneseq
  %v3126 = vshrl.u32 %v3125, 7
  %v3127 = vsub.s32 %v2044, %v3126
  %v3128 = vrot.slane %v3121, %v3127
  %v3129 = vlaneseq
  %v3130 = vshrl.u32 %v3129, 7
  %v3131 = vsub.s32 %v2044, %v3130
  %v3132 = vrot.slane %v3124, %v3131
  %v3133 = vsel %vm2134, %v3132, %v3128
  %v3134 = vsel %vm2173, %v3133, 0
  %3136 = vmatprep.subr.mxu0 0.0
  %3137 = vmatpush1.msra.mxu0 0.0
  %3138 = vmatprep.subr.mxu0 0.0
  %3139 = vmatpush1.msra.mxu0 0.0
  %3140 = vmatprep.subr.mxu0 0.0
  %3141 = vmatpush1.msra.mxu0 0.0
  %3142 = vmatprep.subr.mxu0 0.0
  %3143 = vmatpush1.msra.mxu0 0.0
  %3144 = vmatprep.subr.mxu0 0.0
  %3145 = vmatpush1.msra.mxu0 0.0
  %3146 = vmatprep.subr.mxu0 0.0
  %3147 = vmatpush1.msra.mxu0 0.0
  %3148 = vmatprep.subr.mxu0 0.0
  %3149 = vmatpush1.msra.mxu0 0.0
  %3150 = vmatprep.subr.mxu0 0.0
  %3151 = vmatpush1.msra.mxu0 0.0
  %3152 = vmatprep.subr.mxu0 0.0
  %3153 = vmatpush1.msra.mxu0 0.0
  %3154 = vmatprep.subr.mxu0 0.0
  %3155 = vmatpush1.msra.mxu0 0.0
  %3156 = vmatprep.subr.mxu0 0.0
  %3157 = vmatpush1.msra.mxu0 0.0
  %3158 = vmatprep.subr.mxu0 0.0
  %3159 = vmatpush1.msra.mxu0 0.0
  %3160 = vmatprep.subr.mxu0 0.0
  %3161 = vmatpush1.msra.mxu0 0.0
  %3162 = vmatprep.subr.mxu0 0.0
  %3163 = vmatpush1.msra.mxu0 0.0
  %3164 = vmatprep.subr.mxu0 0.0
  %3165 = vmatpush1.msra.mxu0 0.0
  %3166 = vmatprep.subr.mxu0 0.0
  %3167 = vmatpush1.msra.mxu0 %v2049
  %3168 = vmatprep.subr.mxu0 0.0
  %3169 = vmatpush2.msra.mxu0 0.0
  %3170 = vmatprep.subr.mxu0 0.0
  %3171 = vmatpush2.msra.mxu0 0.0
  %3172 = vmatprep.subr.mxu0 0.0
  %3173 = vmatpush2.msra.mxu0 0.0
  %3174 = vmatprep.subr.mxu0 0.0
  %3175 = vmatpush2.msra.mxu0 0.0
  %3176 = vmatprep.subr.mxu0 0.0
  %3177 = vmatpush2.msra.mxu0 0.0
  %3178 = vmatprep.subr.mxu0 0.0
  %3179 = vmatpush2.msra.mxu0 0.0
  %3180 = vmatprep.subr.mxu0 0.0
  %3181 = vmatpush2.msra.mxu0 0.0
  %3182 = vmatprep.subr.mxu0 0.0
  %3183 = vmatpush2.msra.mxu0 0.0
  %3184 = vmatprep.subr.mxu0 0.0
  %3185 = vmatpush2.msra.mxu0 0.0
  %3186 = vmatprep.subr.mxu0 0.0
  %3187 = vmatpush2.msra.mxu0 0.0
  %3188 = vmatprep.subr.mxu0 0.0
  %3189 = vmatpush2.msra.mxu0 0.0
  %3190 = vmatprep.subr.mxu0 0.0
  %3191 = vmatpush2.msra.mxu0 0.0
  %3192 = vmatprep.subr.mxu0 0.0
  %3193 = vmatpush2.msra.mxu0 0.0
  %3194 = vmatprep.subr.mxu0 0.0
  %3195 = vmatpush2.msra.mxu0 0.0
  %3196 = vmatprep.subr.mxu0 0.0
  %3197 = vmatpush2.msra.mxu0 0.0
  %3198 = vmatprep.subr.mxu0 0.0
  %3199 = vmatpush2.msra.mxu0 0.0
  %3200 = vmatprep.mubr.f32.mxu0 0.0
  %3201 = vmatmul.mubr.f32.gmra.mxu0 %v3134
  %v3202 = vpop.f32.mrf.mxu0
  %v3203 = vadd.f32 %v2051, %v3202
  %v3204 = vpop.f32.mrf.mxu0
  %3205 = vdwg.mxu0
  %s3206 = scalar_lea.vmem [#allocation5], 12
  %v3207 = vld [vmem:[%s3206] sm:$0x3]
  %v3210 = vunpack.c.l.s4 1966171168
  %v3211 = vunpack.c.0.s8 %v3210
  %v3212 = vlaneseq
  %v3213 = vshrl.u32 %v3212, 7
  %v3214 = vsub.s32 %v3211, %v3213
  %v3215 = vrot.slane %v3203, %v3214
  %v3216 = vcombine.high %v3215, %v3215
  %v3218 = vunpack.c.l.s4 1966171168
  %v3219 = vunpack.c.0.s8 %v3218
  %v3220 = vlaneseq
  %v3221 = vshrl.u32 %v3220, 7
  %v3222 = vsub.s32 %v3219, %v3221
  %v3223 = vrot.slane %v3215, %v3222
  %v3225 = vunpack.c.l.s4 1966171168
  %v3226 = vunpack.c.0.s8 %v3225
  %v3227 = vlaneseq
  %v3228 = vshrl.u32 %v3227, 7
  %v3229 = vsub.s32 %v3226, %v3228
  %v3230 = vrot.slane %v3216, %v3229
  %v3231 = vlaneseq
  %v3232 = vshrl.u32 %v3231, 7
  %v3233 = vsub.s32 0, %v3232
  %v3234 = vrot.slane %v3223, %v3233
  %v3235 = vlaneseq
  %v3236 = vshrl.u32 %v3235, 7
  %v3237 = vsub.s32 0, %v3236
  %v3238 = vrot.slane %v3230, %v3237
  %v3241 = vadd.f32 %v3234, %v2042
  %v3242 = vadd.f32 %v3238, %v2042
  %3243 = vmax.xlane.f32.xlu0 %v3241
  %v3244 = vpop.xlane.xlu0 %3243
  %3245 = vmax.xlane.f32.xlu0 %v3242
  %v3246 = vpop.xlane.xlu0 %3245
  %vm3247 = vcmp.eq.f32.partialorder %v3241, %v3244
  %vm3248 = vcmp.eq.f32.partialorder %v3242, %v3246
  %v3249 = vsel %vm3247, %v2044, 128
  %v3250 = vsel %vm3248, %v2044, 128
  %v3251 = vand.u32 %v3249, 65535
  %v3252 = vshra.s32 %v3249, 16
  %v3253 = vcvt.s32.f32 %v3251
  %v3254 = vcvt.s32.f32 %v3252
  %3255 = vmin.xlane.f32.xlu0 %v3254
  %v3256 = vpop.xlane.xlu0 %3255
  %vm3257 = vcmp.eq.f32.partialorder %v3254, %v3256
  %v3258 = vsel %vm3257, %v3253, inf
  %3259 = vmin.xlane.f32.xlu0 %v3258
  %v3260 = vpop.xlane.xlu0 %3259
  %v3261 = vcvt.f32.s32 %v3260
  %v3262 = vcvt.f32.s32 %v3256
  %v3263 = vshll.u32 %v3262, 16
  %v3264 = vadd.s32 %v3263, %v3261
  %v3265 = vand.u32 %v3250, 65535
  %v3266 = vshra.s32 %v3250, 16
  %v3267 = vcvt.s32.f32 %v3265
  %v3268 = vcvt.s32.f32 %v3266
  %3269 = vmin.xlane.f32.xlu0 %v3268
  %v3270 = vpop.xlane.xlu0 %3269
  %vm3271 = vcmp.eq.f32.partialorder %v3268, %v3270
  %v3272 = vsel %vm3271, %v3267, inf
  %3273 = vmin.xlane.f32.xlu0 %v3272
  %v3274 = vpop.xlane.xlu0 %3273
  %v3275 = vcvt.f32.s32 %v3274
  %v3276 = vcvt.f32.s32 %v3270
  %v3277 = vshll.u32 %v3276, 16
  %v3278 = vadd.s32 %v3277, %v3275
  %v3279 = vlaneseq
  %v3280 = vshrl.u32 %v3279, 7
  %v3281 = vsub.s32 %v2044, %v3280
  %v3282 = vrot.slane %v3264, %v3281
  %v3283 = vlaneseq
  %v3284 = vshrl.u32 %v3283, 7
  %v3285 = vsub.s32 %v2044, %v3284
  %v3286 = vrot.slane %v3278, %v3285
  %v3287 = vsel %vm2134, %v3286, %v3282
  %s3288 = scalar_lea.vmem [#allocation6], 12
  %3289 = vst.msk [vmem:[%s3288] sm:$0x3] %vm2033, %v3287
  %v3291 = vlaneseq
  %v3292 = vshrl.u32 %v3291, 7
  %v3293 = vsub.s32 0, %v3292
  %v3294 = vrot.slane %v3207, %v3293
  %3296 = vbcast.lane.b32.xlu0 %v3294, 256
  %v3297 = vpop.permute.xlu0 %3296
  %v3298 = vlaneseq
  %v3299 = vshrl.u32 %v3298, 7
  %v3300 = vsub.s32 1, %v3299
  %v3301 = vrot.slane %v3207, %v3300
  %3303 = vbcast.lane.b32.xlu0 %v3301, 256
  %v3304 = vpop.permute.xlu0 %3303
  %v3307 = vadd.f32 %v3244, %v3297
  %v3308 = vadd.f32 %v3246, %v3304
  %3311 = vset.pattern.permute.xlu0 0
  %3312 = vperm.xlu0 %3311, %v3307
  %v3313 = vpop.permute.xlu0 %3312
  %3314 = vset.pattern.permute.xlu0 0
  %3315 = vperm.xlu0 %3314, %v3308
  %v3316 = vpop.permute.xlu0 %3315
  %v3317 = vlaneseq
  %v3318 = vshrl.u32 %v3317, 7
  %v3319 = vsub.s32 %v2044, %v3318
  %v3320 = vrot.slane %v3313, %v3319
  %v3321 = vlaneseq
  %v3322 = vshrl.u32 %v3321, 7
  %v3323 = vsub.s32 %v2044, %v3322
  %v3324 = vrot.slane %v3316, %v3323
  %v3325 = vsel %vm2134, %v3324, %v3320
  %v3326 = vsel %vm2173, %v3325, 0
  %3328 = vmatprep.subr.mxu0 0.0
  %3329 = vmatpush1.msra.mxu0 0.0
  %3330 = vmatprep.subr.mxu0 0.0
  %3331 = vmatpush1.msra.mxu0 0.0
  %3332 = vmatprep.subr.mxu0 0.0
  %3333 = vmatpush1.msra.mxu0 0.0
  %3334 = vmatprep.subr.mxu0 0.0
  %3335 = vmatpush1.msra.mxu0 0.0
  %3336 = vmatprep.subr.mxu0 0.0
  %3337 = vmatpush1.msra.mxu0 0.0
  %3338 = vmatprep.subr.mxu0 0.0
  %3339 = vmatpush1.msra.mxu0 0.0
  %3340 = vmatprep.subr.mxu0 0.0
  %3341 = vmatpush1.msra.mxu0 0.0
  %3342 = vmatprep.subr.mxu0 0.0
  %3343 = vmatpush1.msra.mxu0 0.0
  %3344 = vmatprep.subr.mxu0 0.0
  %3345 = vmatpush1.msra.mxu0 0.0
  %3346 = vmatprep.subr.mxu0 0.0
  %3347 = vmatpush1.msra.mxu0 0.0
  %3348 = vmatprep.subr.mxu0 0.0
  %3349 = vmatpush1.msra.mxu0 0.0
  %3350 = vmatprep.subr.mxu0 0.0
  %3351 = vmatpush1.msra.mxu0 0.0
  %3352 = vmatprep.subr.mxu0 0.0
  %3353 = vmatpush1.msra.mxu0 0.0
  %3354 = vmatprep.subr.mxu0 0.0
  %3355 = vmatpush1.msra.mxu0 0.0
  %3356 = vmatprep.subr.mxu0 0.0
  %3357 = vmatpush1.msra.mxu0 0.0
  %3358 = vmatprep.subr.mxu0 0.0
  %3359 = vmatpush1.msra.mxu0 %v2049
  %3360 = vmatprep.subr.mxu0 0.0
  %3361 = vmatpush2.msra.mxu0 0.0
  %3362 = vmatprep.subr.mxu0 0.0
  %3363 = vmatpush2.msra.mxu0 0.0
  %3364 = vmatprep.subr.mxu0 0.0
  %3365 = vmatpush2.msra.mxu0 0.0
  %3366 = vmatprep.subr.mxu0 0.0
  %3367 = vmatpush2.msra.mxu0 0.0
  %3368 = vmatprep.subr.mxu0 0.0
  %3369 = vmatpush2.msra.mxu0 0.0
  %3370 = vmatprep.subr.mxu0 0.0
  %3371 = vmatpush2.msra.mxu0 0.0
  %3372 = vmatprep.subr.mxu0 0.0
  %3373 = vmatpush2.msra.mxu0 0.0
  %3374 = vmatprep.subr.mxu0 0.0
  %3375 = vmatpush2.msra.mxu0 0.0
  %3376 = vmatprep.subr.mxu0 0.0
  %3377 = vmatpush2.msra.mxu0 0.0
  %3378 = vmatprep.subr.mxu0 0.0
  %3379 = vmatpush2.msra.mxu0 0.0
  %3380 = vmatprep.subr.mxu0 0.0
  %3381 = vmatpush2.msra.mxu0 0.0
  %3382 = vmatprep.subr.mxu0 0.0
  %3383 = vmatpush2.msra.mxu0 0.0
  %3384 = vmatprep.subr.mxu0 0.0
  %3385 = vmatpush2.msra.mxu0 0.0
  %3386 = vmatprep.subr.mxu0 0.0
  %3387 = vmatpush2.msra.mxu0 0.0
  %3388 = vmatprep.subr.mxu0 0.0
  %3389 = vmatpush2.msra.mxu0 0.0
  %3390 = vmatprep.subr.mxu0 0.0
  %3391 = vmatpush2.msra.mxu0 0.0
  %3392 = vmatprep.mubr.f32.mxu0 0.0
  %3393 = vmatmul.mubr.f32.gmra.mxu0 %v3326
  %v3394 = vpop.f32.mrf.mxu0
  %v3395 = vadd.f32 %v2051, %v3394
  %v3396 = vpop.f32.mrf.mxu0
  %3397 = vdwg.mxu0
  %s3398 = scalar_lea.vmem [#allocation5], 14
  %v3399 = vld [vmem:[%s3398] sm:$0x3]
  %v3402 = vunpack.c.l.s4 1966171168
  %v3403 = vunpack.c.0.s8 %v3402
  %v3404 = vlaneseq
  %v3405 = vshrl.u32 %v3404, 7
  %v3406 = vsub.s32 %v3403, %v3405
  %v3407 = vrot.slane %v3395, %v3406
  %v3408 = vcombine.high %v3407, %v3407
  %v3410 = vunpack.c.l.s4 1966171168
  %v3411 = vunpack.c.0.s8 %v3410
  %v3412 = vlaneseq
  %v3413 = vshrl.u32 %v3412, 7
  %v3414 = vsub.s32 %v3411, %v3413
  %v3415 = vrot.slane %v3407, %v3414
  %v3417 = vunpack.c.l.s4 1966171168
  %v3418 = vunpack.c.0.s8 %v3417
  %v3419 = vlaneseq
  %v3420 = vshrl.u32 %v3419, 7
  %v3421 = vsub.s32 %v3418, %v3420
  %v3422 = vrot.slane %v3408, %v3421
  %v3423 = vlaneseq
  %v3424 = vshrl.u32 %v3423, 7
  %v3425 = vsub.s32 0, %v3424
  %v3426 = vrot.slane %v3415, %v3425
  %v3427 = vlaneseq
  %v3428 = vshrl.u32 %v3427, 7
  %v3429 = vsub.s32 0, %v3428
  %v3430 = vrot.slane %v3422, %v3429
  %v3433 = vadd.f32 %v3426, %v2042
  %v3434 = vadd.f32 %v3430, %v2042
  %3435 = vmax.xlane.f32.xlu0 %v3433
  %v3436 = vpop.xlane.xlu0 %3435
  %3437 = vmax.xlane.f32.xlu0 %v3434
  %v3438 = vpop.xlane.xlu0 %3437
  %vm3439 = vcmp.eq.f32.partialorder %v3433, %v3436
  %vm3440 = vcmp.eq.f32.partialorder %v3434, %v3438
  %v3441 = vsel %vm3439, %v2044, 128
  %v3442 = vsel %vm3440, %v2044, 128
  %v3443 = vand.u32 %v3441, 65535
  %v3444 = vshra.s32 %v3441, 16
  %v3445 = vcvt.s32.f32 %v3443
  %v3446 = vcvt.s32.f32 %v3444
  %3447 = vmin.xlane.f32.xlu0 %v3446
  %v3448 = vpop.xlane.xlu0 %3447
  %vm3449 = vcmp.eq.f32.partialorder %v3446, %v3448
  %v3450 = vsel %vm3449, %v3445, inf
  %3451 = vmin.xlane.f32.xlu0 %v3450
  %v3452 = vpop.xlane.xlu0 %3451
  %v3453 = vcvt.f32.s32 %v3452
  %v3454 = vcvt.f32.s32 %v3448
  %v3455 = vshll.u32 %v3454, 16
  %v3456 = vadd.s32 %v3455, %v3453
  %v3457 = vand.u32 %v3442, 65535
  %v3458 = vshra.s32 %v3442, 16
  %v3459 = vcvt.s32.f32 %v3457
  %v3460 = vcvt.s32.f32 %v3458
  %3461 = vmin.xlane.f32.xlu0 %v3460
  %v3462 = vpop.xlane.xlu0 %3461
  %vm3463 = vcmp.eq.f32.partialorder %v3460, %v3462
  %v3464 = vsel %vm3463, %v3459, inf
  %3465 = vmin.xlane.f32.xlu0 %v3464
  %v3466 = vpop.xlane.xlu0 %3465
  %v3467 = vcvt.f32.s32 %v3466
  %v3468 = vcvt.f32.s32 %v3462
  %v3469 = vshll.u32 %v3468, 16
  %v3470 = vadd.s32 %v3469, %v3467
  %v3471 = vlaneseq
  %v3472 = vshrl.u32 %v3471, 7
  %v3473 = vsub.s32 %v2044, %v3472
  %v3474 = vrot.slane %v3456, %v3473
  %v3475 = vlaneseq
  %v3476 = vshrl.u32 %v3475, 7
  %v3477 = vsub.s32 %v2044, %v3476
  %v3478 = vrot.slane %v3470, %v3477
  %v3479 = vsel %vm2134, %v3478, %v3474
  %s3480 = scalar_lea.vmem [#allocation6], 14
  %3481 = vst.msk [vmem:[%s3480] sm:$0x3] %vm2033, %v3479
  %v3483 = vlaneseq
  %v3484 = vshrl.u32 %v3483, 7
  %v3485 = vsub.s32 0, %v3484
  %v3486 = vrot.slane %v3399, %v3485
  %3488 = vbcast.lane.b32.xlu0 %v3486, 256
  %v3489 = vpop.permute.xlu0 %3488
  %v3490 = vlaneseq
  %v3491 = vshrl.u32 %v3490, 7
  %v3492 = vsub.s32 1, %v3491
  %v3493 = vrot.slane %v3399, %v3492
  %3495 = vbcast.lane.b32.xlu0 %v3493, 256
  %v3496 = vpop.permute.xlu0 %3495
  %v3499 = vadd.f32 %v3436, %v3489
  %v3500 = vadd.f32 %v3438, %v3496
  %3503 = vset.pattern.permute.xlu0 0
  %3504 = vperm.xlu0 %3503, %v3499
  %v3505 = vpop.permute.xlu0 %3504
  %3506 = vset.pattern.permute.xlu0 0
  %3507 = vperm.xlu0 %3506, %v3500
  %v3508 = vpop.permute.xlu0 %3507
  %v3509 = vlaneseq
  %v3510 = vshrl.u32 %v3509, 7
  %v3511 = vsub.s32 %v2044, %v3510
  %v3512 = vrot.slane %v3505, %v3511
  %v3513 = vlaneseq
  %v3514 = vshrl.u32 %v3513, 7
  %v3515 = vsub.s32 %v2044, %v3514
  %v3516 = vrot.slane %v3508, %v3515
  %v3517 = vsel %vm2134, %v3516, %v3512
  %v3518 = vsel %vm2173, %v3517, 0
  %3520 = vmatprep.subr.mxu0 0.0
  %3521 = vmatpush1.msra.mxu0 0.0
  %3522 = vmatprep.subr.mxu0 0.0
  %3523 = vmatpush1.msra.mxu0 0.0
  %3524 = vmatprep.subr.mxu0 0.0
  %3525 = vmatpush1.msra.mxu0 0.0
  %3526 = vmatprep.subr.mxu0 0.0
  %3527 = vmatpush1.msra.mxu0 0.0
  %3528 = vmatprep.subr.mxu0 0.0
  %3529 = vmatpush1.msra.mxu0 0.0
  %3530 = vmatprep.subr.mxu0 0.0
  %3531 = vmatpush1.msra.mxu0 0.0
  %3532 = vmatprep.subr.mxu0 0.0
  %3533 = vmatpush1.msra.mxu0 0.0
  %3534 = vmatprep.subr.mxu0 0.0
  %3535 = vmatpush1.msra.mxu0 0.0
  %3536 = vmatprep.subr.mxu0 0.0
  %3537 = vmatpush1.msra.mxu0 0.0
  %3538 = vmatprep.subr.mxu0 0.0
  %3539 = vmatpush1.msra.mxu0 0.0
  %3540 = vmatprep.subr.mxu0 0.0
  %3541 = vmatpush1.msra.mxu0 0.0
  %3542 = vmatprep.subr.mxu0 0.0
  %3543 = vmatpush1.msra.mxu0 0.0
  %3544 = vmatprep.subr.mxu0 0.0
  %3545 = vmatpush1.msra.mxu0 0.0
  %3546 = vmatprep.subr.mxu0 0.0
  %3547 = vmatpush1.msra.mxu0 0.0
  %3548 = vmatprep.subr.mxu0 0.0
  %3549 = vmatpush1.msra.mxu0 0.0
  %3550 = vmatprep.subr.mxu0 0.0
  %3551 = vmatpush1.msra.mxu0 %v2049
  %3552 = vmatprep.subr.mxu0 0.0
  %3553 = vmatpush2.msra.mxu0 0.0
  %3554 = vmatprep.subr.mxu0 0.0
  %3555 = vmatpush2.msra.mxu0 0.0
  %3556 = vmatprep.subr.mxu0 0.0
  %3557 = vmatpush2.msra.mxu0 0.0
  %3558 = vmatprep.subr.mxu0 0.0
  %3559 = vmatpush2.msra.mxu0 0.0
  %3560 = vmatprep.subr.mxu0 0.0
  %3561 = vmatpush2.msra.mxu0 0.0
  %3562 = vmatprep.subr.mxu0 0.0
  %3563 = vmatpush2.msra.mxu0 0.0
  %3564 = vmatprep.subr.mxu0 0.0
  %3565 = vmatpush2.msra.mxu0 0.0
  %3566 = vmatprep.subr.mxu0 0.0
  %3567 = vmatpush2.msra.mxu0 0.0
  %3568 = vmatprep.subr.mxu0 0.0
  %3569 = vmatpush2.msra.mxu0 0.0
  %3570 = vmatprep.subr.mxu0 0.0
  %3571 = vmatpush2.msra.mxu0 0.0
  %3572 = vmatprep.subr.mxu0 0.0
  %3573 = vmatpush2.msra.mxu0 0.0
  %3574 = vmatprep.subr.mxu0 0.0
  %3575 = vmatpush2.msra.mxu0 0.0
  %3576 = vmatprep.subr.mxu0 0.0
  %3577 = vmatpush2.msra.mxu0 0.0
  %3578 = vmatprep.subr.mxu0 0.0
  %3579 = vmatpush2.msra.mxu0 0.0
  %3580 = vmatprep.subr.mxu0 0.0
  %3581 = vmatpush2.msra.mxu0 0.0
  %3582 = vmatprep.subr.mxu0 0.0
  %3583 = vmatpush2.msra.mxu0 0.0
  %3584 = vmatprep.mubr.f32.mxu0 0.0
  %3585 = vmatmul.mubr.f32.gmra.mxu0 %v3518
  %v3586 = vpop.f32.mrf.mxu0
  %v3587 = vadd.f32 %v2051, %v3586
  %v3588 = vpop.f32.mrf.mxu0
  %3589 = vdwg.mxu0
  %v3590 = vlaneseq
  %v3591 = vshrl.u32 %v3590, 7
  %v3592 = vsub.s32 4, %v3591
  %v3593 = vrot.slane %v2042, %v3592
  %v3594 = vadd.f32 %v3587, %v3593
  %vm3595 = vcmask 1041408
  %v3596 = vsel %vm3595, %v3594, -inf
  %3597 = vmax.xlane.f32.xlu0 %v3596
  %v3598 = vpop.xlane.xlu0 %3597
  %vm3599 = vcmp.eq.f32.partialorder %v3594, %v3598
  %v3600 = vsel %vm3599, %v2044, 128
  %v3601 = vsel %vm3595, %v3600, 2147483647
  %v3602 = vand.u32 %v3601, 65535
  %v3603 = vshra.s32 %v3601, 16
  %v3604 = vcvt.s32.f32 %v3602
  %v3605 = vcvt.s32.f32 %v3603
  %3606 = vmin.xlane.f32.xlu0 %v3605
  %v3607 = vpop.xlane.xlu0 %3606
  %vm3608 = vcmp.eq.f32.partialorder %v3605, %v3607
  %v3609 = vsel %vm3608, %v3604, inf
  %3610 = vmin.xlane.f32.xlu0 %v3609
  %v3611 = vpop.xlane.xlu0 %3610
  %v3612 = vcvt.f32.s32 %v3611
  %v3613 = vcvt.f32.s32 %v3607
  %v3614 = vshll.u32 %v3613, 16
  %v3615 = vadd.s32 %v3614, %v3612
  %v3616 = vcvt.s32.f32 %v3615
  %s3617 = scalar_lea.vmem %s11, 14
  %vm3618 = vcmask 1024
  %3619 = vst.msk [vmem:[%s3617] sm:$0x3] %vm3618, %v3616
  %v3620 = vld [vmem:[%s3480] sm:$0x3]
  %vm3621 = vcmp.eq.s32.totalorder %v2044, %v3615
  %v3622 = vsel %vm3621, %v3620, 0
  %v3623 = vsel %vm2033, %v3622, 0
  %v3624 = vand.u32 %v3623, 65535
  %v3625 = vshrl.u32 %v3623, 16
  %v3626 = vcvt.s32.f32 %v3624
  %v3627 = vcvt.s32.f32 %v3625
  %3628 = vadd.xlane.f32.xlu0 %v3626
  %v3629 = vpop.xlane.xlu0 %3628
  %3630 = vadd.xlane.f32.xlu0 %v3627
  %v3631 = vpop.xlane.xlu0 %3630
  %v3632 = vcvt.f32.s32 %v3629
  %v3633 = vcvt.f32.s32 %v3631
  %v3634 = vshll.u32 %v3633, 16
  %v3635 = vadd.s32 %v3634, %v3632
  %v3636 = vcvt.s32.f32 %v3635
  %s3637 = scalar_lea.vmem %s11, 12
  %3638 = vst.msk [vmem:[%s3637] sm:$0x3] %vm3618, %v3636
  %v3639 = vld [vmem:[%s3288] sm:$0x3]
  %vm3640 = vcmp.eq.s32.totalorder %v2044, %v3635
  %v3641 = vsel %vm3640, %v3639, 0
  %v3642 = vsel %vm2033, %v3641, 0
  %v3643 = vand.u32 %v3642, 65535
  %v3644 = vshrl.u32 %v3642, 16
  %v3645 = vcvt.s32.f32 %v3643
  %v3646 = vcvt.s32.f32 %v3644
  %3647 = vadd.xlane.f32.xlu0 %v3645
  %v3648 = vpop.xlane.xlu0 %3647
  %3649 = vadd.xlane.f32.xlu0 %v3646
  %v3650 = vpop.xlane.xlu0 %3649
  %v3651 = vcvt.f32.s32 %v3648
  %v3652 = vcvt.f32.s32 %v3650
  %v3653 = vshll.u32 %v3652, 16
  %v3654 = vadd.s32 %v3653, %v3651
  %v3655 = vcvt.s32.f32 %v3654
  %s3656 = scalar_lea.vmem %s11, 10
  %3657 = vst.msk [vmem:[%s3656] sm:$0x3] %vm3618, %v3655
  %v3658 = vld [vmem:[%s3096] sm:$0x3]
  %vm3659 = vcmp.eq.s32.totalorder %v2044, %v3654
  %v3660 = vsel %vm3659, %v3658, 0
  %v3661 = vsel %vm2033, %v3660, 0
  %v3662 = vand.u32 %v3661, 65535
  %v3663 = vshrl.u32 %v3661, 16
  %v3664 = vcvt.s32.f32 %v3662
  %v3665 = vcvt.s32.f32 %v3663
  %3666 = vadd.xlane.f32.xlu0 %v3664
  %v3667 = vpop.xlane.xlu0 %3666
  %3668 = vadd.xlane.f32.xlu0 %v3665
  %v3669 = vpop.xlane.xlu0 %3668
  %v3670 = vcvt.f32.s32 %v3667
  %v3671 = vcvt.f32.s32 %v3669
  %v3672 = vshll.u32 %v3671, 16
  %v3673 = vadd.s32 %v3672, %v3670
  %v3674 = vcvt.s32.f32 %v3673
  %s3675 = scalar_lea.vmem %s11, 8
  %3676 = vst.msk [vmem:[%s3675] sm:$0x3] %vm3618, %v3674
  %v3677 = vld [vmem:[%s2904] sm:$0x3]
  %vm3678 = vcmp.eq.s32.totalorder %v2044, %v3673
  %v3679 = vsel %vm3678, %v3677, 0
  %v3680 = vsel %vm2033, %v3679, 0
  %v3681 = vand.u32 %v3680, 65535
  %v3682 = vshrl.u32 %v3680, 16
  %v3683 = vcvt.s32.f32 %v3681
  %v3684 = vcvt.s32.f32 %v3682
  %3685 = vadd.xlane.f32.xlu0 %v3683
  %v3686 = vpop.xlane.xlu0 %3685
  %3687 = vadd.xlane.f32.xlu0 %v3684
  %v3688 = vpop.xlane.xlu0 %3687
  %v3689 = vcvt.f32.s32 %v3686
  %v3690 = vcvt.f32.s32 %v3688
  %v3691 = vshll.u32 %v3690, 16
  %v3692 = vadd.s32 %v3691, %v3689
  %v3693 = vcvt.s32.f32 %v3692
  %s3694 = scalar_lea.vmem %s11, 6
  %3695 = vst.msk [vmem:[%s3694] sm:$0x3] %vm3618, %v3693
  %v3696 = vld [vmem:[%s2712] sm:$0x3]
  %vm3697 = vcmp.eq.s32.totalorder %v2044, %v3692
  %v3698 = vsel %vm3697, %v3696, 0
  %v3699 = vsel %vm2033, %v3698, 0
  %v3700 = vand.u32 %v3699, 65535
  %v3701 = vshrl.u32 %v3699, 16
  %v3702 = vcvt.s32.f32 %v3700
  %v3703 = vcvt.s32.f32 %v3701
  %3704 = vadd.xlane.f32.xlu0 %v3702
  %v3705 = vpop.xlane.xlu0 %3704
  %3706 = vadd.xlane.f32.xlu0 %v3703
  %v3707 = vpop.xlane.xlu0 %3706
  %v3708 = vcvt.f32.s32 %v3705
  %v3709 = vcvt.f32.s32 %v3707
  %v3710 = vshll.u32 %v3709, 16
  %v3711 = vadd.s32 %v3710, %v3708
  %v3712 = vcvt.s32.f32 %v3711
  %s3713 = scalar_lea.vmem %s11, 4
  %3714 = vst.msk [vmem:[%s3713] sm:$0x3] %vm3618, %v3712
  %v3715 = vld [vmem:[%s2520] sm:$0x3]
  %vm3716 = vcmp.eq.s32.totalorder %v2044, %v3711
  %v3717 = vsel %vm3716, %v3715, 0
  %v3718 = vsel %vm2033, %v3717, 0
  %v3719 = vand.u32 %v3718, 65535
  %v3720 = vshrl.u32 %v3718, 16
  %v3721 = vcvt.s32.f32 %v3719
  %v3722 = vcvt.s32.f32 %v3720
  %3723 = vadd.xlane.f32.xlu0 %v3721
  %v3724 = vpop.xlane.xlu0 %3723
  %3725 = vadd.xlane.f32.xlu0 %v3722
  %v3726 = vpop.xlane.xlu0 %3725
  %v3727 = vcvt.f32.s32 %v3724
  %v3728 = vcvt.f32.s32 %v3726
  %v3729 = vshll.u32 %v3728, 16
  %v3730 = vadd.s32 %v3729, %v3727
  %v3731 = vcvt.s32.f32 %v3730
  %s3732 = scalar_lea.vmem %s11, 2
  %3733 = vst.msk [vmem:[%s3732] sm:$0x3] %vm3618, %v3731
  %v3734 = vld [vmem:[%s2328] sm:$0x3]
  %vm3735 = vcmp.eq.s32.totalorder %v2044, %v3730
  %v3736 = vsel %vm3735, %v3734, 0
  %v3737 = vsel %vm2033, %v3736, 0
  %v3738 = vand.u32 %v3737, 65535
  %v3739 = vshrl.u32 %v3737, 16
  %v3740 = vcvt.s32.f32 %v3738
  %v3741 = vcvt.s32.f32 %v3739
  %3742 = vadd.xlane.f32.xlu0 %v3740
  %v3743 = vpop.xlane.xlu0 %3742
  %3744 = vadd.xlane.f32.xlu0 %v3741
  %v3745 = vpop.xlane.xlu0 %3744
  %v3746 = vcvt.f32.s32 %v3743
  %v3747 = vcvt.f32.s32 %v3745
  %v3748 = vshll.u32 %v3747, 16
  %v3749 = vadd.s32 %v3748, %v3746
  %v3750 = vcvt.s32.f32 %v3749
  %3751 = vst.msk [vmem:[%s11] sm:$0x3] %vm3618, %v3750
  // Predicated region
  $region46: #{bilstm_crf_forward.1} parent=0 // pred_check
    _
  $region47: #{bilstm_crf_forward.1} parent=0 // pred_check_branch
    %3753 = sbr.rel (0) target = $region49
  $region48: #{bilstm_crf_forward.1} parent=0 // pred_region
    _
  $region49: #{bilstm_crf_forward.1} parent=0 // pred_fallthru
    _
  // Predicated region
  $region50: #{bilstm_crf_forward.1} parent=0 // pred_check
    _
  $region51: #{bilstm_crf_forward.1} parent=0 // pred_check_branch
    %3755 = sbr.rel (0) target = $region53
  $region52: #{bilstm_crf_forward.1} parent=0 // pred_region
    _
  $region53: #{bilstm_crf_forward.1} parent=0 // pred_fallthru
    _

</llo_original>
